<compile_context>
chip_gen: v7x
topology: tpu7x:2x2x1
jax: 0.10.0
libtpu: 0.0.40
codegen_flags: <defaults>
</compile_context>

<pallas_src>
import math
from functools import partial

import jax
import jax.numpy as jnp
from jax import lax
from jax.experimental import pallas as pl
from jax.experimental.pallas import tpu as pltpu


def causal_attention_kernel(qf_ref, kf_ref, wq_ref, bq_ref, wk_ref, bk_ref,
                            wv_ref, bv_ref, o_ref, *, n_head, compute_dtype):
    seq = qf_ref.shape[1]
    channel = wq_ref.shape[1]
    dim_head = channel // n_head

    q_in = qf_ref[0]                      # (seq, Cq)
    k_in = kf_ref[0]                      # (seq, Ck)

    # Channel-wide projections: one MXU matmul per projection for ALL heads.
    # The 1/sqrt(dim_head) scale is already folded into wq/bq by the wrapper.
    q = (jnp.dot(q_in, wq_ref[...], preferred_element_type=jnp.float32)
         + bq_ref[...]).astype(compute_dtype)
    k = (jnp.dot(k_in, wk_ref[...], preferred_element_type=jnp.float32)
         + bk_ref[...]).astype(compute_dtype)
    v = (jnp.dot(k_in, wv_ref[...], preferred_element_type=jnp.float32)
         + bv_ref[...]).astype(compute_dtype)

    # Masks hoisted out of the per-head loop.
    row = lax.broadcasted_iota(jnp.int32, (seq, seq), 0)
    col = lax.broadcasted_iota(jnp.int32, (seq, seq), 1)
    causal = row > col                              # attend strictly to the past
    neg = jnp.float32(-10000.0)
    # start_mask: query position 0 has no valid keys -> zero its output row.
    start = (lax.broadcasted_iota(jnp.int32, (seq, 1), 0) > 0).astype(jnp.float32)

    # TODO(synk): nn.Dropout(0.1) omitted (identity in eval mode).
    head_outs = []
    for h in range(n_head):
        lo = h * dim_head
        q_h = q[:, lo:lo + dim_head]
        k_h = k[:, lo:lo + dim_head]
        v_h = v[:, lo:lo + dim_head]

        # q_h @ k_h^T without materializing the transpose.
        s = lax.dot_general(q_h, k_h, (((1,), (1,)), ((), ())),
                            preferred_element_type=jnp.float32)
        s = jnp.where(causal, s, neg)

        # softmax over keys (f32); normalization via approx EUP reciprocal.
        m = jnp.max(s, axis=-1, keepdims=True)
        e = jnp.exp(s - m)
        p = e * pl.reciprocal(jnp.sum(e, axis=-1, keepdims=True), approx=True)

        head_outs.append(
            jnp.dot(p.astype(compute_dtype), v_h,
                    preferred_element_type=jnp.float32))

    # Lane-dense (seq, channel) output; start_mask applied once to all heads.
    out = jnp.concatenate(head_outs, axis=-1) * start
    o_ref[0] = out.astype(o_ref.dtype)


def causal_attention_pallas(q_nchw, k_nchw, wq, bq, wk, bk, wv, bv, n_head,
                            *, compute_dtype=jnp.bfloat16):
    """wq/wk/wv: (in_dim, channel) effective weight-norm weights (x @ W layout);
    bq/bk/bv: (1, channel)."""
    batch, cq, h, w = q_nchw.shape
    ck = k_nchw.shape[1]
    seq = h * w
    channel = wq.shape[1]
    dim_head = channel // n_head
    assert n_head * dim_head == channel

    # Fold the attention scale into the query projection (free at runtime).
    scale = 1.0 / math.sqrt(dim_head)
    wq_k = (wq * scale).astype(compute_dtype)
    bq_k = (bq * scale).astype(jnp.float32)
    wk_k = wk.astype(compute_dtype)
    bk_k = bk.astype(jnp.float32)
    wv_k = wv.astype(compute_dtype)
    bv_k = bv.astype(jnp.float32)

    # NCHW -> lane-dense (batch, seq, C), cast to the MXU input dtype.
    q_flat = q_nchw.reshape(batch, cq, seq).transpose(0, 2, 1).astype(compute_dtype)
    k_flat = k_nchw.reshape(batch, ck, seq).transpose(0, 2, 1).astype(compute_dtype)

    kernel = partial(causal_attention_kernel, n_head=n_head,
                     compute_dtype=compute_dtype)

    out = pl.pallas_call(
        kernel,
        out_shape=jax.ShapeDtypeStruct((batch, seq, channel), jnp.float32),
        grid_spec=pltpu.PrefetchScalarGridSpec(
            num_scalar_prefetch=0,
            grid=(batch,),
            in_specs=[
                pl.BlockSpec((1, seq, cq), lambda b: (b, 0, 0)),
                pl.BlockSpec((1, seq, ck), lambda b: (b, 0, 0)),
                # All-head weights/biases as single resident blocks
                # (constant index_map -> DMA'd once, reused every step).
                pl.BlockSpec((cq, channel), lambda b: (0, 0)),
                pl.BlockSpec((1, channel), lambda b: (0, 0)),
                pl.BlockSpec((ck, channel), lambda b: (0, 0)),
                pl.BlockSpec((1, channel), lambda b: (0, 0)),
                pl.BlockSpec((ck, channel), lambda b: (0, 0)),
                pl.BlockSpec((1, channel), lambda b: (0, 0)),
            ],
            out_specs=pl.BlockSpec((1, seq, channel), lambda b: (b, 0, 0)),
        ),
        compiler_params=pltpu.CompilerParams(
            dimension_semantics=("parallel",),
            vmem_limit_bytes=32 * 1024 * 1024),
    )(q_flat, k_flat, wq_k, bq_k, wk_k, bk_k, wv_k, bv_k)

    # lane-dense (batch, seq, channel) -> (batch, H, W, channel) -> NCHW
    out = out.reshape(batch, h, w, channel)
    return out.transpose(0, 3, 1, 2)


# ------------------------- parameter setup (glue) ---------------------------

def wn_effective_weight(v, g):
    """weight_norm with dim=0 for nn.Linear: per-output-row normalization."""
    norm = jnp.sqrt(jnp.sum(v * v, axis=1, keepdims=True))
    return g[:, None] * v / norm


def make_linear_params(key, in_dim, out_dim):
    kv, kg, kb = jax.random.split(key, 3)
    v = jax.random.normal(kv, (out_dim, in_dim), jnp.float32) * 0.1
    g = jax.random.uniform(kg, (out_dim,), jnp.float32, 0.5, 1.5)
    b = jax.random.normal(kb, (out_dim,), jnp.float32) * 0.05
    w_eff = wn_effective_weight(v, g)          # (out_dim, in_dim)
    return w_eff, b


# ------------------------- pure-JAX reference --------------------------------

def reference(q_nchw, k_nchw, wq_full, bq_full, wk_full, bk_full,
              wv_full, bv_full, n_head):
    batch, cq, h, w = q_nchw.shape
    ck = k_nchw.shape[1]
    seq = h * w
    channel = wq_full.shape[0]
    dim_head = channel // n_head

    qf = q_nchw.reshape(batch, cq, seq).transpose(0, 2, 1)
    kf = k_nchw.reshape(batch, ck, seq).transpose(0, 2, 1)

    def split(x):
        return x.reshape(batch, seq, n_head, dim_head).transpose(0, 2, 1, 3)

    q = split(qf @ wq_full.T + bq_full)
    k = split(kf @ wk_full.T + bk_full)
    v = split(kf @ wv_full.T + bv_full)

    attn = jnp.einsum('bhqd,bhkd->bhqk', q, k) / math.sqrt(dim_head)
    row = lax.broadcasted_iota(jnp.int32, (seq, seq), 0)
    col = lax.broadcasted_iota(jnp.int32, (seq, seq), 1)
    attn = jnp.where(row > col, attn, -10000.0)
    attn = jax.nn.softmax(attn, axis=-1)
    attn = attn * (row > 0).astype(attn.dtype)
    out = jnp.einsum('bhqk,bhkd->bhqd', attn, v)
    out = out.transpose(0, 2, 1, 3).reshape(batch, h, w, channel)
    return out.transpose(0, 3, 1, 2)


if __name__ == "__main__":
    batch, H, W = 2, 8, 8
    query_channel, key_channel = 16, 20
    channel, n_head = 32, 8
    dim_head = channel // n_head

    root = jax.random.PRNGKey(0)
    kq, kk, kwq, kwk, kwv = jax.random.split(root, 5)

    query = jax.random.normal(kq, (batch, query_channel, H, W), jnp.float32)
    key_in = jax.random.normal(kk, (batch, key_channel, H, W), jnp.float32)

    wq_full, bq_full = make_linear_params(kwq, query_channel, channel)
    wk_full, bk_full = make_linear_params(kwk, key_channel, channel)
    wv_full, bv_full = make_linear_params(kwv, key_channel, channel)

    # Pack for the kernel: x @ W layout, bias as (1, channel).
    wq, bq = wq_full.T, bq_full.reshape(1, channel)
    wk, bk = wk_full.T, bk_full.reshape(1, channel)
    wv, bv = wv_full.T, bv_full.reshape(1, channel)

    ref = reference(query, key_in, wq_full, bq_full, wk_full, bk_full,
                    wv_full, bv_full, n_head)

    # f32 MXU path: tight-ish check (tolerance covers the approx EUP
    # reciprocal used in the softmax normalization).
    out_f32 = causal_attention_pallas(query, key_in, wq, bq, wk, bk, wv, bv,
                                      n_head, compute_dtype=jnp.float32)
    out_f32 = jax.block_until_ready(out_f32)
    assert out_f32.shape == (batch, channel, H, W)
    assert jnp.allclose(out_f32, ref, rtol=2e-2, atol=2e-2), \
        "f32 kernel mismatch vs JAX reference"

    # bf16 MXU path (recommended perf config on v6e/v7x): looser tolerance.
    out_bf16 = causal_attention_pallas(query, key_in, wq, bq, wk, bk, wv, bv,
                                       n_head, compute_dtype=jnp.bfloat16)
    out_bf16 = jax.block_until_ready(out_bf16)
    assert out_bf16.shape == (batch, channel, H, W)
    assert jnp.allclose(out_bf16, ref, rtol=1e-1, atol=1e-1), \
        "bf16 kernel mismatch vs JAX reference"

    print("KERNEL_OK")
</pallas_src>

<mosaic_0001>
module attributes {stable_mosaic.version = 11 : i64} {
  func.func @causal_attention_kernel(%arg0: i32, %arg1: memref<1x64x16xf32, #tpu.memory_space<vmem>>, %arg2: memref<1x64x20xf32, #tpu.memory_space<vmem>>, %arg3: memref<16x32xf32, #tpu.memory_space<vmem>>, %arg4: memref<1x32xf32, #tpu.memory_space<vmem>>, %arg5: memref<20x32xf32, #tpu.memory_space<vmem>>, %arg6: memref<1x32xf32, #tpu.memory_space<vmem>>, %arg7: memref<20x32xf32, #tpu.memory_space<vmem>>, %arg8: memref<1x32xf32, #tpu.memory_space<vmem>>, %arg9: memref<1x64x32xf32, #tpu.memory_space<vmem>>) attributes {dimension_semantics = [#tpu.dimension_semantics<parallel>], iteration_bounds = array<i64: 2>, scalar_prefetch = 0 : i64, scratch_operands = 0 : i64, tpu.core_type = #tpu.core_type<tc>, window_params = [{transform_indices = @transform_0, window_bounds = array<i64: 1, 64, 16>}, {transform_indices = @transform_1, window_bounds = array<i64: 1, 64, 20>}, {pipeline_mode = #tpu.pipeline_mode<synchronous>, transform_indices = @transform_2, window_bounds = array<i64: 16, 32>}, {pipeline_mode = #tpu.pipeline_mode<synchronous>, transform_indices = @transform_3, window_bounds = array<i64: 1, 32>}, {pipeline_mode = #tpu.pipeline_mode<synchronous>, transform_indices = @transform_4, window_bounds = array<i64: 20, 32>}, {pipeline_mode = #tpu.pipeline_mode<synchronous>, transform_indices = @transform_5, window_bounds = array<i64: 1, 32>}, {pipeline_mode = #tpu.pipeline_mode<synchronous>, transform_indices = @transform_6, window_bounds = array<i64: 20, 32>}, {pipeline_mode = #tpu.pipeline_mode<synchronous>, transform_indices = @transform_7, window_bounds = array<i64: 1, 32>}, {transform_indices = @transform_8, window_bounds = array<i64: 1, 64, 32>}]} {
    %c0 = arith.constant 0 : index
    %c0_0 = arith.constant 0 : index
    %c0_1 = arith.constant 0 : index
    %0 = vector.load %arg1[%c0, %c0_0, %c0_1] : memref<1x64x16xf32, #tpu.memory_space<vmem>>, vector<1x64x16xf32>
    %1 = vector.shape_cast %0 : vector<1x64x16xf32> to vector<64x16xf32>
    %c0_2 = arith.constant 0 : index
    %c0_3 = arith.constant 0 : index
    %c0_4 = arith.constant 0 : index
    %2 = vector.load %arg2[%c0_2, %c0_3, %c0_4] : memref<1x64x20xf32, #tpu.memory_space<vmem>>, vector<1x64x20xf32>
    %3 = vector.shape_cast %2 : vector<1x64x20xf32> to vector<64x20xf32>
    %c0_5 = arith.constant 0 : index
    %c0_6 = arith.constant 0 : index
    %4 = vector.load %arg3[%c0_5, %c0_6] : memref<16x32xf32, #tpu.memory_space<vmem>>, vector<16x32xf32>
    %cst = arith.constant dense<0.000000e+00> : vector<64x32xf32>
    %5 = tpu.matmul %1, %4, %cst {dimension_numbers = #tpu.dot_dimension_numbers<[1], [0], [0], [1], [0, 0, 1, 1], [], []>} : vector<64x16xf32>, vector<16x32xf32>, vector<64x32xf32> -> vector<64x32xf32>
    %c0_7 = arith.constant 0 : index
    %c0_8 = arith.constant 0 : index
    %6 = vector.load %arg4[%c0_7, %c0_8] : memref<1x32xf32, #tpu.memory_space<vmem>>, vector<1x32xf32>
    %7 = vector.broadcast %6 : vector<1x32xf32> to vector<64x32xf32>
    %8 = arith.addf %5, %7 : vector<64x32xf32>
    %c0_9 = arith.constant 0 : index
    %c0_10 = arith.constant 0 : index
    %9 = vector.load %arg5[%c0_9, %c0_10] : memref<20x32xf32, #tpu.memory_space<vmem>>, vector<20x32xf32>
    %cst_11 = arith.constant dense<0.000000e+00> : vector<64x32xf32>
    %10 = tpu.matmul %3, %9, %cst_11 {dimension_numbers = #tpu.dot_dimension_numbers<[1], [0], [0], [1], [0, 0, 1, 1], [], []>} : vector<64x20xf32>, vector<20x32xf32>, vector<64x32xf32> -> vector<64x32xf32>
    %c0_12 = arith.constant 0 : index
    %c0_13 = arith.constant 0 : index
    %11 = vector.load %arg6[%c0_12, %c0_13] : memref<1x32xf32, #tpu.memory_space<vmem>>, vector<1x32xf32>
    %12 = vector.broadcast %11 : vector<1x32xf32> to vector<64x32xf32>
    %13 = arith.addf %10, %12 : vector<64x32xf32>
    %c0_14 = arith.constant 0 : index
    %c0_15 = arith.constant 0 : index
    %14 = vector.load %arg7[%c0_14, %c0_15] : memref<20x32xf32, #tpu.memory_space<vmem>>, vector<20x32xf32>
    %cst_16 = arith.constant dense<0.000000e+00> : vector<64x32xf32>
    %15 = tpu.matmul %3, %14, %cst_16 {dimension_numbers = #tpu.dot_dimension_numbers<[1], [0], [0], [1], [0, 0, 1, 1], [], []>} : vector<64x20xf32>, vector<20x32xf32>, vector<64x32xf32> -> vector<64x32xf32>
    %c0_17 = arith.constant 0 : index
    %c0_18 = arith.constant 0 : index
    %16 = vector.load %arg8[%c0_17, %c0_18] : memref<1x32xf32, #tpu.memory_space<vmem>>, vector<1x32xf32>
    %17 = vector.broadcast %16 : vector<1x32xf32> to vector<64x32xf32>
    %18 = arith.addf %15, %17 : vector<64x32xf32>
    %19 = tpu.iota {dimensions = array<i32: 0>} : vector<64x64xi32>
    %20 = tpu.iota {dimensions = array<i32: 1>} : vector<64x64xi32>
    %21 = arith.cmpi sgt, %19, %20 : vector<64x64xi32>
    %22 = tpu.iota {dimensions = array<i32: 0>} : vector<64x1xi32>
    %c0_i32 = arith.constant 0 : i32
    %23 = vector.broadcast %c0_i32 : i32 to vector<64x1xi32>
    %24 = arith.cmpi sgt, %22, %23 : vector<64x1xi32>
    %25 = arith.extui %24 : vector<64x1xi1> to vector<64x1xi32>
    %26 = arith.sitofp %25 : vector<64x1xi32> to vector<64x1xf32>
    %27 = vector.extract_strided_slice %8 {offsets = [0, 0], sizes = [64, 4], strides = [1, 1]} : vector<64x32xf32> to vector<64x4xf32>
    %28 = vector.extract_strided_slice %13 {offsets = [0, 0], sizes = [64, 4], strides = [1, 1]} : vector<64x32xf32> to vector<64x4xf32>
    %29 = vector.extract_strided_slice %18 {offsets = [0, 0], sizes = [64, 4], strides = [1, 1]} : vector<64x32xf32> to vector<64x4xf32>
    %cst_19 = arith.constant dense<0.000000e+00> : vector<64x64xf32>
    %30 = tpu.matmul %27, %28, %cst_19 {dimension_numbers = #tpu.dot_dimension_numbers<[1], [1], [0], [0], [0, 0, 1, 0], [], []>} : vector<64x4xf32>, vector<64x4xf32>, vector<64x64xf32> -> vector<64x64xf32>
    %cst_20 = arith.constant -1.000000e+04 : f32
    %31 = vector.broadcast %cst_20 : f32 to vector<64x64xf32>
    %32 = arith.select %21, %30, %31 : vector<64x64xi1>, vector<64x64xf32>
    %cst_21 = arith.constant dense<0xFF800000> : vector<64xf32>
    %33 = vector.multi_reduction <maximumf>, %32, %cst_21 [1] : vector<64x64xf32> to vector<64xf32>
    %34 = vector.shape_cast %33 : vector<64xf32> to vector<64x1xf32>
    %35 = vector.broadcast %34 : vector<64x1xf32> to vector<64x64xf32>
    %36 = arith.subf %32, %35 : vector<64x64xf32>
    %37 = math.exp %36 : vector<64x64xf32>
    %cst_22 = arith.constant dense<0.000000e+00> : vector<64xf32>
    %38 = vector.multi_reduction <add>, %37, %cst_22 [1] : vector<64x64xf32> to vector<64xf32>
    %39 = vector.shape_cast %38 : vector<64xf32> to vector<64x1xf32>
    %40 = tpu.reciprocal %39 {approx = true} : vector<64x1xf32> -> vector<64x1xf32>
    %41 = vector.broadcast %40 : vector<64x1xf32> to vector<64x64xf32>
    %42 = arith.mulf %37, %41 : vector<64x64xf32>
    %cst_23 = arith.constant dense<0.000000e+00> : vector<64x4xf32>
    %43 = tpu.matmul %42, %29, %cst_23 {dimension_numbers = #tpu.dot_dimension_numbers<[1], [0], [0], [1], [0, 0, 1, 1], [], []>} : vector<64x64xf32>, vector<64x4xf32>, vector<64x4xf32> -> vector<64x4xf32>
    %44 = vector.extract_strided_slice %8 {offsets = [0, 4], sizes = [64, 4], strides = [1, 1]} : vector<64x32xf32> to vector<64x4xf32>
    %45 = vector.extract_strided_slice %13 {offsets = [0, 4], sizes = [64, 4], strides = [1, 1]} : vector<64x32xf32> to vector<64x4xf32>
    %46 = vector.extract_strided_slice %18 {offsets = [0, 4], sizes = [64, 4], strides = [1, 1]} : vector<64x32xf32> to vector<64x4xf32>
    %cst_24 = arith.constant dense<0.000000e+00> : vector<64x64xf32>
    %47 = tpu.matmul %44, %45, %cst_24 {dimension_numbers = #tpu.dot_dimension_numbers<[1], [1], [0], [0], [0, 0, 1, 0], [], []>} : vector<64x4xf32>, vector<64x4xf32>, vector<64x64xf32> -> vector<64x64xf32>
    %cst_25 = arith.constant -1.000000e+04 : f32
    %48 = vector.broadcast %cst_25 : f32 to vector<64x64xf32>
    %49 = arith.select %21, %47, %48 : vector<64x64xi1>, vector<64x64xf32>
    %cst_26 = arith.constant dense<0xFF800000> : vector<64xf32>
    %50 = vector.multi_reduction <maximumf>, %49, %cst_26 [1] : vector<64x64xf32> to vector<64xf32>
    %51 = vector.shape_cast %50 : vector<64xf32> to vector<64x1xf32>
    %52 = vector.broadcast %51 : vector<64x1xf32> to vector<64x64xf32>
    %53 = arith.subf %49, %52 : vector<64x64xf32>
    %54 = math.exp %53 : vector<64x64xf32>
    %cst_27 = arith.constant dense<0.000000e+00> : vector<64xf32>
    %55 = vector.multi_reduction <add>, %54, %cst_27 [1] : vector<64x64xf32> to vector<64xf32>
    %56 = vector.shape_cast %55 : vector<64xf32> to vector<64x1xf32>
    %57 = tpu.reciprocal %56 {approx = true} : vector<64x1xf32> -> vector<64x1xf32>
    %58 = vector.broadcast %57 : vector<64x1xf32> to vector<64x64xf32>
    %59 = arith.mulf %54, %58 : vector<64x64xf32>
    %cst_28 = arith.constant dense<0.000000e+00> : vector<64x4xf32>
    %60 = tpu.matmul %59, %46, %cst_28 {dimension_numbers = #tpu.dot_dimension_numbers<[1], [0], [0], [1], [0, 0, 1, 1], [], []>} : vector<64x64xf32>, vector<64x4xf32>, vector<64x4xf32> -> vector<64x4xf32>
    %61 = vector.extract_strided_slice %8 {offsets = [0, 8], sizes = [64, 4], strides = [1, 1]} : vector<64x32xf32> to vector<64x4xf32>
    %62 = vector.extract_strided_slice %13 {offsets = [0, 8], sizes = [64, 4], strides = [1, 1]} : vector<64x32xf32> to vector<64x4xf32>
    %63 = vector.extract_strided_slice %18 {offsets = [0, 8], sizes = [64, 4], strides = [1, 1]} : vector<64x32xf32> to vector<64x4xf32>
    %cst_29 = arith.constant dense<0.000000e+00> : vector<64x64xf32>
    %64 = tpu.matmul %61, %62, %cst_29 {dimension_numbers = #tpu.dot_dimension_numbers<[1], [1], [0], [0], [0, 0, 1, 0], [], []>} : vector<64x4xf32>, vector<64x4xf32>, vector<64x64xf32> -> vector<64x64xf32>
    %cst_30 = arith.constant -1.000000e+04 : f32
    %65 = vector.broadcast %cst_30 : f32 to vector<64x64xf32>
    %66 = arith.select %21, %64, %65 : vector<64x64xi1>, vector<64x64xf32>
    %cst_31 = arith.constant dense<0xFF800000> : vector<64xf32>
    %67 = vector.multi_reduction <maximumf>, %66, %cst_31 [1] : vector<64x64xf32> to vector<64xf32>
    %68 = vector.shape_cast %67 : vector<64xf32> to vector<64x1xf32>
    %69 = vector.broadcast %68 : vector<64x1xf32> to vector<64x64xf32>
    %70 = arith.subf %66, %69 : vector<64x64xf32>
    %71 = math.exp %70 : vector<64x64xf32>
    %cst_32 = arith.constant dense<0.000000e+00> : vector<64xf32>
    %72 = vector.multi_reduction <add>, %71, %cst_32 [1] : vector<64x64xf32> to vector<64xf32>
    %73 = vector.shape_cast %72 : vector<64xf32> to vector<64x1xf32>
    %74 = tpu.reciprocal %73 {approx = true} : vector<64x1xf32> -> vector<64x1xf32>
    %75 = vector.broadcast %74 : vector<64x1xf32> to vector<64x64xf32>
    %76 = arith.mulf %71, %75 : vector<64x64xf32>
    %cst_33 = arith.constant dense<0.000000e+00> : vector<64x4xf32>
    %77 = tpu.matmul %76, %63, %cst_33 {dimension_numbers = #tpu.dot_dimension_numbers<[1], [0], [0], [1], [0, 0, 1, 1], [], []>} : vector<64x64xf32>, vector<64x4xf32>, vector<64x4xf32> -> vector<64x4xf32>
    %78 = vector.extract_strided_slice %8 {offsets = [0, 12], sizes = [64, 4], strides = [1, 1]} : vector<64x32xf32> to vector<64x4xf32>
    %79 = vector.extract_strided_slice %13 {offsets = [0, 12], sizes = [64, 4], strides = [1, 1]} : vector<64x32xf32> to vector<64x4xf32>
    %80 = vector.extract_strided_slice %18 {offsets = [0, 12], sizes = [64, 4], strides = [1, 1]} : vector<64x32xf32> to vector<64x4xf32>
    %cst_34 = arith.constant dense<0.000000e+00> : vector<64x64xf32>
    %81 = tpu.matmul %78, %79, %cst_34 {dimension_numbers = #tpu.dot_dimension_numbers<[1], [1], [0], [0], [0, 0, 1, 0], [], []>} : vector<64x4xf32>, vector<64x4xf32>, vector<64x64xf32> -> vector<64x64xf32>
    %cst_35 = arith.constant -1.000000e+04 : f32
    %82 = vector.broadcast %cst_35 : f32 to vector<64x64xf32>
    %83 = arith.select %21, %81, %82 : vector<64x64xi1>, vector<64x64xf32>
    %cst_36 = arith.constant dense<0xFF800000> : vector<64xf32>
    %84 = vector.multi_reduction <maximumf>, %83, %cst_36 [1] : vector<64x64xf32> to vector<64xf32>
    %85 = vector.shape_cast %84 : vector<64xf32> to vector<64x1xf32>
    %86 = vector.broadcast %85 : vector<64x1xf32> to vector<64x64xf32>
    %87 = arith.subf %83, %86 : vector<64x64xf32>
    %88 = math.exp %87 : vector<64x64xf32>
    %cst_37 = arith.constant dense<0.000000e+00> : vector<64xf32>
    %89 = vector.multi_reduction <add>, %88, %cst_37 [1] : vector<64x64xf32> to vector<64xf32>
    %90 = vector.shape_cast %89 : vector<64xf32> to vector<64x1xf32>
    %91 = tpu.reciprocal %90 {approx = true} : vector<64x1xf32> -> vector<64x1xf32>
    %92 = vector.broadcast %91 : vector<64x1xf32> to vector<64x64xf32>
    %93 = arith.mulf %88, %92 : vector<64x64xf32>
    %cst_38 = arith.constant dense<0.000000e+00> : vector<64x4xf32>
    %94 = tpu.matmul %93, %80, %cst_38 {dimension_numbers = #tpu.dot_dimension_numbers<[1], [0], [0], [1], [0, 0, 1, 1], [], []>} : vector<64x64xf32>, vector<64x4xf32>, vector<64x4xf32> -> vector<64x4xf32>
    %95 = vector.extract_strided_slice %8 {offsets = [0, 16], sizes = [64, 4], strides = [1, 1]} : vector<64x32xf32> to vector<64x4xf32>
    %96 = vector.extract_strided_slice %13 {offsets = [0, 16], sizes = [64, 4], strides = [1, 1]} : vector<64x32xf32> to vector<64x4xf32>
    %97 = vector.extract_strided_slice %18 {offsets = [0, 16], sizes = [64, 4], strides = [1, 1]} : vector<64x32xf32> to vector<64x4xf32>
    %cst_39 = arith.constant dense<0.000000e+00> : vector<64x64xf32>
    %98 = tpu.matmul %95, %96, %cst_39 {dimension_numbers = #tpu.dot_dimension_numbers<[1], [1], [0], [0], [0, 0, 1, 0], [], []>} : vector<64x4xf32>, vector<64x4xf32>, vector<64x64xf32> -> vector<64x64xf32>
    %cst_40 = arith.constant -1.000000e+04 : f32
    %99 = vector.broadcast %cst_40 : f32 to vector<64x64xf32>
    %100 = arith.select %21, %98, %99 : vector<64x64xi1>, vector<64x64xf32>
    %cst_41 = arith.constant dense<0xFF800000> : vector<64xf32>
    %101 = vector.multi_reduction <maximumf>, %100, %cst_41 [1] : vector<64x64xf32> to vector<64xf32>
    %102 = vector.shape_cast %101 : vector<64xf32> to vector<64x1xf32>
    %103 = vector.broadcast %102 : vector<64x1xf32> to vector<64x64xf32>
    %104 = arith.subf %100, %103 : vector<64x64xf32>
    %105 = math.exp %104 : vector<64x64xf32>
    %cst_42 = arith.constant dense<0.000000e+00> : vector<64xf32>
    %106 = vector.multi_reduction <add>, %105, %cst_42 [1] : vector<64x64xf32> to vector<64xf32>
    %107 = vector.shape_cast %106 : vector<64xf32> to vector<64x1xf32>
    %108 = tpu.reciprocal %107 {approx = true} : vector<64x1xf32> -> vector<64x1xf32>
    %109 = vector.broadcast %108 : vector<64x1xf32> to vector<64x64xf32>
    %110 = arith.mulf %105, %109 : vector<64x64xf32>
    %cst_43 = arith.constant dense<0.000000e+00> : vector<64x4xf32>
    %111 = tpu.matmul %110, %97, %cst_43 {dimension_numbers = #tpu.dot_dimension_numbers<[1], [0], [0], [1], [0, 0, 1, 1], [], []>} : vector<64x64xf32>, vector<64x4xf32>, vector<64x4xf32> -> vector<64x4xf32>
    %112 = vector.extract_strided_slice %8 {offsets = [0, 20], sizes = [64, 4], strides = [1, 1]} : vector<64x32xf32> to vector<64x4xf32>
    %113 = vector.extract_strided_slice %13 {offsets = [0, 20], sizes = [64, 4], strides = [1, 1]} : vector<64x32xf32> to vector<64x4xf32>
    %114 = vector.extract_strided_slice %18 {offsets = [0, 20], sizes = [64, 4], strides = [1, 1]} : vector<64x32xf32> to vector<64x4xf32>
    %cst_44 = arith.constant dense<0.000000e+00> : vector<64x64xf32>
    %115 = tpu.matmul %112, %113, %cst_44 {dimension_numbers = #tpu.dot_dimension_numbers<[1], [1], [0], [0], [0, 0, 1, 0], [], []>} : vector<64x4xf32>, vector<64x4xf32>, vector<64x64xf32> -> vector<64x64xf32>
    %cst_45 = arith.constant -1.000000e+04 : f32
    %116 = vector.broadcast %cst_45 : f32 to vector<64x64xf32>
    %117 = arith.select %21, %115, %116 : vector<64x64xi1>, vector<64x64xf32>
    %cst_46 = arith.constant dense<0xFF800000> : vector<64xf32>
    %118 = vector.multi_reduction <maximumf>, %117, %cst_46 [1] : vector<64x64xf32> to vector<64xf32>
    %119 = vector.shape_cast %118 : vector<64xf32> to vector<64x1xf32>
    %120 = vector.broadcast %119 : vector<64x1xf32> to vector<64x64xf32>
    %121 = arith.subf %117, %120 : vector<64x64xf32>
    %122 = math.exp %121 : vector<64x64xf32>
    %cst_47 = arith.constant dense<0.000000e+00> : vector<64xf32>
    %123 = vector.multi_reduction <add>, %122, %cst_47 [1] : vector<64x64xf32> to vector<64xf32>
    %124 = vector.shape_cast %123 : vector<64xf32> to vector<64x1xf32>
    %125 = tpu.reciprocal %124 {approx = true} : vector<64x1xf32> -> vector<64x1xf32>
    %126 = vector.broadcast %125 : vector<64x1xf32> to vector<64x64xf32>
    %127 = arith.mulf %122, %126 : vector<64x64xf32>
    %cst_48 = arith.constant dense<0.000000e+00> : vector<64x4xf32>
    %128 = tpu.matmul %127, %114, %cst_48 {dimension_numbers = #tpu.dot_dimension_numbers<[1], [0], [0], [1], [0, 0, 1, 1], [], []>} : vector<64x64xf32>, vector<64x4xf32>, vector<64x4xf32> -> vector<64x4xf32>
    %129 = vector.extract_strided_slice %8 {offsets = [0, 24], sizes = [64, 4], strides = [1, 1]} : vector<64x32xf32> to vector<64x4xf32>
    %130 = vector.extract_strided_slice %13 {offsets = [0, 24], sizes = [64, 4], strides = [1, 1]} : vector<64x32xf32> to vector<64x4xf32>
    %131 = vector.extract_strided_slice %18 {offsets = [0, 24], sizes = [64, 4], strides = [1, 1]} : vector<64x32xf32> to vector<64x4xf32>
    %cst_49 = arith.constant dense<0.000000e+00> : vector<64x64xf32>
    %132 = tpu.matmul %129, %130, %cst_49 {dimension_numbers = #tpu.dot_dimension_numbers<[1], [1], [0], [0], [0, 0, 1, 0], [], []>} : vector<64x4xf32>, vector<64x4xf32>, vector<64x64xf32> -> vector<64x64xf32>
    %cst_50 = arith.constant -1.000000e+04 : f32
    %133 = vector.broadcast %cst_50 : f32 to vector<64x64xf32>
    %134 = arith.select %21, %132, %133 : vector<64x64xi1>, vector<64x64xf32>
    %cst_51 = arith.constant dense<0xFF800000> : vector<64xf32>
    %135 = vector.multi_reduction <maximumf>, %134, %cst_51 [1] : vector<64x64xf32> to vector<64xf32>
    %136 = vector.shape_cast %135 : vector<64xf32> to vector<64x1xf32>
    %137 = vector.broadcast %136 : vector<64x1xf32> to vector<64x64xf32>
    %138 = arith.subf %134, %137 : vector<64x64xf32>
    %139 = math.exp %138 : vector<64x64xf32>
    %cst_52 = arith.constant dense<0.000000e+00> : vector<64xf32>
    %140 = vector.multi_reduction <add>, %139, %cst_52 [1] : vector<64x64xf32> to vector<64xf32>
    %141 = vector.shape_cast %140 : vector<64xf32> to vector<64x1xf32>
    %142 = tpu.reciprocal %141 {approx = true} : vector<64x1xf32> -> vector<64x1xf32>
    %143 = vector.broadcast %142 : vector<64x1xf32> to vector<64x64xf32>
    %144 = arith.mulf %139, %143 : vector<64x64xf32>
    %cst_53 = arith.constant dense<0.000000e+00> : vector<64x4xf32>
    %145 = tpu.matmul %144, %131, %cst_53 {dimension_numbers = #tpu.dot_dimension_numbers<[1], [0], [0], [1], [0, 0, 1, 1], [], []>} : vector<64x64xf32>, vector<64x4xf32>, vector<64x4xf32> -> vector<64x4xf32>
    %146 = vector.extract_strided_slice %8 {offsets = [0, 28], sizes = [64, 4], strides = [1, 1]} : vector<64x32xf32> to vector<64x4xf32>
    %147 = vector.extract_strided_slice %13 {offsets = [0, 28], sizes = [64, 4], strides = [1, 1]} : vector<64x32xf32> to vector<64x4xf32>
    %148 = vector.extract_strided_slice %18 {offsets = [0, 28], sizes = [64, 4], strides = [1, 1]} : vector<64x32xf32> to vector<64x4xf32>
    %cst_54 = arith.constant dense<0.000000e+00> : vector<64x64xf32>
    %149 = tpu.matmul %146, %147, %cst_54 {dimension_numbers = #tpu.dot_dimension_numbers<[1], [1], [0], [0], [0, 0, 1, 0], [], []>} : vector<64x4xf32>, vector<64x4xf32>, vector<64x64xf32> -> vector<64x64xf32>
    %cst_55 = arith.constant -1.000000e+04 : f32
    %150 = vector.broadcast %cst_55 : f32 to vector<64x64xf32>
    %151 = arith.select %21, %149, %150 : vector<64x64xi1>, vector<64x64xf32>
    %cst_56 = arith.constant dense<0xFF800000> : vector<64xf32>
    %152 = vector.multi_reduction <maximumf>, %151, %cst_56 [1] : vector<64x64xf32> to vector<64xf32>
    %153 = vector.shape_cast %152 : vector<64xf32> to vector<64x1xf32>
    %154 = vector.broadcast %153 : vector<64x1xf32> to vector<64x64xf32>
    %155 = arith.subf %151, %154 : vector<64x64xf32>
    %156 = math.exp %155 : vector<64x64xf32>
    %cst_57 = arith.constant dense<0.000000e+00> : vector<64xf32>
    %157 = vector.multi_reduction <add>, %156, %cst_57 [1] : vector<64x64xf32> to vector<64xf32>
    %158 = vector.shape_cast %157 : vector<64xf32> to vector<64x1xf32>
    %159 = tpu.reciprocal %158 {approx = true} : vector<64x1xf32> -> vector<64x1xf32>
    %160 = vector.broadcast %159 : vector<64x1xf32> to vector<64x64xf32>
    %161 = arith.mulf %156, %160 : vector<64x64xf32>
    %cst_58 = arith.constant dense<0.000000e+00> : vector<64x4xf32>
    %162 = tpu.matmul %161, %148, %cst_58 {dimension_numbers = #tpu.dot_dimension_numbers<[1], [0], [0], [1], [0, 0, 1, 1], [], []>} : vector<64x64xf32>, vector<64x4xf32>, vector<64x4xf32> -> vector<64x4xf32>
    %163 = tpu.concatenate %43, %60, %77, %94, %111, %128, %145, %162 in 1 : vector<64x4xf32>, vector<64x4xf32>, vector<64x4xf32>, vector<64x4xf32>, vector<64x4xf32>, vector<64x4xf32>, vector<64x4xf32>, vector<64x4xf32> -> vector<64x32xf32>
    %164 = vector.broadcast %26 : vector<64x1xf32> to vector<64x32xf32>
    %165 = arith.mulf %163, %164 : vector<64x32xf32>
    %c0_59 = arith.constant 0 : index
    %c0_60 = arith.constant 0 : index
    %c0_61 = arith.constant 0 : index
    %166 = vector.load %arg9[%c0_59, %c0_60, %c0_61] : memref<1x64x32xf32, #tpu.memory_space<vmem>>, vector<1x64x32xf32>
    %167 = vector.shape_cast %166 : vector<1x64x32xf32> to vector<64x32xf32>
    %168 = vector.shape_cast %165 : vector<64x32xf32> to vector<1x64x32xf32>
    tpu.vector_store %arg9[%c0_59, %c0_60, %c0_61], %168 {strides = array<i32>} : memref<1x64x32xf32, #tpu.memory_space<vmem>>, vector<1x64x32xf32>,
    return
  }
  func.func @transform_0(%arg0: i32) -> (i32, i32, i32) {
    %c0_i32 = arith.constant 0 : i32
    %c0_i32_0 = arith.constant 0 : i32
    %c0_i32_1 = arith.constant 0 : i32
    return %arg0, %c0_i32, %c0_i32_0 : i32, i32, i32
  }
  func.func @transform_1(%arg0: i32) -> (i32, i32, i32) {
    %c0_i32 = arith.constant 0 : i32
    %c0_i32_0 = arith.constant 0 : i32
    %c0_i32_1 = arith.constant 0 : i32
    return %arg0, %c0_i32, %c0_i32_0 : i32, i32, i32
  }
  func.func @transform_2(%arg0: i32) -> (i32, i32) {
    %c0_i32 = arith.constant 0 : i32
    %c0_i32_0 = arith.constant 0 : i32
    %c0_i32_1 = arith.constant 0 : i32
    return %c0_i32, %c0_i32_0 : i32, i32
  }
  func.func @transform_3(%arg0: i32) -> (i32, i32) {
    %c0_i32 = arith.constant 0 : i32
    %c0_i32_0 = arith.constant 0 : i32
    %c0_i32_1 = arith.constant 0 : i32
    return %c0_i32, %c0_i32_0 : i32, i32
  }
  func.func @transform_4(%arg0: i32) -> (i32, i32) {
    %c0_i32 = arith.constant 0 : i32
    %c0_i32_0 = arith.constant 0 : i32
    %c0_i32_1 = arith.constant 0 : i32
    return %c0_i32, %c0_i32_0 : i32, i32
  }
  func.func @transform_5(%arg0: i32) -> (i32, i32) {
    %c0_i32 = arith.constant 0 : i32
    %c0_i32_0 = arith.constant 0 : i32
    %c0_i32_1 = arith.constant 0 : i32
    return %c0_i32, %c0_i32_0 : i32, i32
  }
  func.func @transform_6(%arg0: i32) -> (i32, i32) {
    %c0_i32 = arith.constant 0 : i32
    %c0_i32_0 = arith.constant 0 : i32
    %c0_i32_1 = arith.constant 0 : i32
    return %c0_i32, %c0_i32_0 : i32, i32
  }
  func.func @transform_7(%arg0: i32) -> (i32, i32) {
    %c0_i32 = arith.constant 0 : i32
    %c0_i32_0 = arith.constant 0 : i32
    %c0_i32_1 = arith.constant 0 : i32
    return %c0_i32, %c0_i32_0 : i32, i32
  }
  func.func @transform_8(%arg0: i32) -> (i32, i32, i32) {
    %c0_i32 = arith.constant 0 : i32
    %c0_i32_0 = arith.constant 0 : i32
    %c0_i32_1 = arith.constant 0 : i32
    return %arg0, %c0_i32, %c0_i32_0 : i32, i32, i32
  }
}

</mosaic_0001>

<llo_original>
// kernel: tpu_custom_call.1
$region0: #{tpu_custom_call.1}
  #allocation0 [shape = 'u32[]', space=smem, size = 0x4, offset = 0x4, fixed_abs, tag = 'smem constant byte address 0x4 - core index']
  #allocation1 [shape = 'u32[144,128]{1,0:T(1,128)}', space=vmem, size = 0x12000, scoped, tag = 'internal scratch']
  %s0 = inlined_call_operand.vmem [shape: f32[2,64,16], index: 0, kind: input, shape index: {}]
  %s1 = inlined_call_operand.vmem [shape: f32[2,64,20], index: 1, kind: input, shape index: {}]
  %s2 = inlined_call_operand.vmem [shape: f32[16,32], index: 2, kind: input, shape index: {}]
  %s3 = inlined_call_operand.vmem [shape: f32[1,32], index: 3, kind: input, shape index: {}]
  %s4 = inlined_call_operand.vmem [shape: f32[20,32], index: 4, kind: input, shape index: {}]
  %s5 = inlined_call_operand.vmem [shape: f32[1,32], index: 5, kind: input, shape index: {}]
  %s6 = inlined_call_operand.vmem [shape: f32[20,32], index: 6, kind: input, shape index: {}]
  %s7 = inlined_call_operand.vmem [shape: f32[1,32], index: 7, kind: input, shape index: {}]
  %s8 = inlined_call_operand.vmem [shape: f32[2,64,32], index: 8, kind: output, shape index: {}]
  %s9 = sld [smem:[#allocation0]]
  $region65: #{tpu_custom_call.1} parent=0
    _
  %s11 = ssub.s32 1, %s9
  %s12 = scalar_select 0, %s11, %s9
  loop: start=0, step=1, limit=4
  $region2: #{tpu_custom_call.1} parent=0 // loop_pre_header
    _
  $region3: #{tpu_custom_call.1} parent=0 // loop_header
    %s14 = sphi 0, %s18
    %p15 = scmp.ge.s32.totalorder %s14, 4
    %s24 = sphi 0, %s26
    %s27 = sphi 0, %s24
    %s28 = sphi 0, %s27
    %s44 = sphi 0, %s28
    %s50 = sphi 0, %s52
    %s53 = sphi 0, %s50
    %s54 = sphi 0, %s53
    %s70 = sphi 0, %s54
    %s74 = sphi 0, %s74
    %s76 = sphi 0, %s74
    %s77 = sphi 0, %s76
    %s91 = sphi 0, %s77
    %s95 = sphi 0, %s95
    %s97 = sphi 0, %s95
    %s98 = sphi 0, %s97
    %s112 = sphi 0, %s98
    %s116 = sphi 0, %s116
    %s118 = sphi 0, %s116
    %s119 = sphi 0, %s118
    %s133 = sphi 0, %s119
    %s137 = sphi 0, %s137
    %s139 = sphi 0, %s137
    %s140 = sphi 0, %s139
    %s154 = sphi 0, %s140
    %s158 = sphi 0, %s158
    %s160 = sphi 0, %s158
    %s161 = sphi 0, %s160
    %s175 = sphi 0, %s161
    %s179 = sphi 0, %s179
    %s181 = sphi 0, %s179
    %s182 = sphi 0, %s181
    %s196 = sphi 0, %s182
    %s202 = sphi 0, %s204
    %s205 = sphi 0, %s202
    %s206 = sphi 0, %s205
    %s222 = sphi 0, %s206
  $region4: #{tpu_custom_call.1} parent=0 // loop_header_branch
    %17 = sbr.rel (%p15) target = $region8
  $region5: #{tpu_custom_call.1} parent=0 // loop_body
    %s19 = ssub.s32 %s14, 1
    %s20 = ssub.s32 %s14, 2
    %s21 = sadd.s32 %s14, 1
    %s22 = ssub.s32 %s14, %s21
    %p23 = scmp.eq.s32.totalorder %s22, 0
    %s25 = sadd.s32 %s24, 1
    %s26 = scalar_select %p23, %s24, %s25
    %p29 = pneg %p23
    %p30 = scmp.eq.s32.totalorder %s14, 1
    %p31 = por %p29, %p30
    %p32 = scmp.ne.s32.totalorder %s24, %s27
    %p33 = scmp.eq.s32.totalorder %s14, 0
    %p34 = por %p32, %p33
    %p35 = scmp.ne.s32.totalorder %s24, %s27
    %p36 = scmp.eq.s32.totalorder %s19, 1
    %p37 = por %p35, %p36
    %p38 = scmp.ne.s32.totalorder %s27, %s28
    %p39 = scmp.eq.s32.totalorder %s19, 0
    %p40 = por %p38, %p39
    %p41 = scmp.ne.s32.totalorder %s27, %s28
    %p42 = scmp.eq.s32.totalorder %s20, 1
    %p43 = por %p41, %p42
    %p45 = scmp.ne.s32.totalorder %s28, %s44
    %p46 = scmp.eq.s32.totalorder %s20, 0
    %p47 = por %p45, %p46
    %s48 = ssub.s32 %s14, %s21
    %p49 = scmp.eq.s32.totalorder %s48, 0
    %s51 = sadd.s32 %s50, 1
    %s52 = scalar_select %p49, %s50, %s51
    %p55 = pneg %p49
    %p56 = scmp.eq.s32.totalorder %s14, 1
    %p57 = por %p55, %p56
    %p58 = scmp.ne.s32.totalorder %s50, %s53
    %p59 = scmp.eq.s32.totalorder %s14, 0
    %p60 = por %p58, %p59
    %p61 = scmp.ne.s32.totalorder %s50, %s53
    %p62 = scmp.eq.s32.totalorder %s19, 1
    %p63 = por %p61, %p62
    %p64 = scmp.ne.s32.totalorder %s53, %s54
    %p65 = scmp.eq.s32.totalorder %s19, 0
    %p66 = por %p64, %p65
    %p67 = scmp.ne.s32.totalorder %s53, %s54
    %p68 = scmp.eq.s32.totalorder %s20, 1
    %p69 = por %p67, %p68
    %p71 = scmp.ne.s32.totalorder %s54, %s70
    %p72 = scmp.eq.s32.totalorder %s20, 0
    %p73 = por %p71, %p72
    %s75 = sadd.s32 %s74, 1
    %p78 = scmp.eq.s32.totalorder %s14, 1
    %p79 = scmp.ne.s32.totalorder %s74, %s76
    %p80 = scmp.eq.s32.totalorder %s14, 0
    %p81 = por %p79, %p80
    %p82 = scmp.ne.s32.totalorder %s74, %s76
    %p83 = scmp.eq.s32.totalorder %s19, 1
    %p84 = por %p82, %p83
    %p85 = scmp.ne.s32.totalorder %s76, %s77
    %p86 = scmp.eq.s32.totalorder %s19, 0
    %p87 = por %p85, %p86
    %p88 = scmp.ne.s32.totalorder %s76, %s77
    %p89 = scmp.eq.s32.totalorder %s20, 1
    %p90 = por %p88, %p89
    %p92 = scmp.ne.s32.totalorder %s77, %s91
    %p93 = scmp.eq.s32.totalorder %s20, 0
    %p94 = por %p92, %p93
    %s96 = sadd.s32 %s95, 1
    %p99 = scmp.eq.s32.totalorder %s14, 1
    %p100 = scmp.ne.s32.totalorder %s95, %s97
    %p101 = scmp.eq.s32.totalorder %s14, 0
    %p102 = por %p100, %p101
    %p103 = scmp.ne.s32.totalorder %s95, %s97
    %p104 = scmp.eq.s32.totalorder %s19, 1
    %p105 = por %p103, %p104
    %p106 = scmp.ne.s32.totalorder %s97, %s98
    %p107 = scmp.eq.s32.totalorder %s19, 0
    %p108 = por %p106, %p107
    %p109 = scmp.ne.s32.totalorder %s97, %s98
    %p110 = scmp.eq.s32.totalorder %s20, 1
    %p111 = por %p109, %p110
    %p113 = scmp.ne.s32.totalorder %s98, %s112
    %p114 = scmp.eq.s32.totalorder %s20, 0
    %p115 = por %p113, %p114
    %s117 = sadd.s32 %s116, 1
    %p120 = scmp.eq.s32.totalorder %s14, 1
    %p121 = scmp.ne.s32.totalorder %s116, %s118
    %p122 = scmp.eq.s32.totalorder %s14, 0
    %p123 = por %p121, %p122
    %p124 = scmp.ne.s32.totalorder %s116, %s118
    %p125 = scmp.eq.s32.totalorder %s19, 1
    %p126 = por %p124, %p125
    %p127 = scmp.ne.s32.totalorder %s118, %s119
    %p128 = scmp.eq.s32.totalorder %s19, 0
    %p129 = por %p127, %p128
    %p130 = scmp.ne.s32.totalorder %s118, %s119
    %p131 = scmp.eq.s32.totalorder %s20, 1
    %p132 = por %p130, %p131
    %p134 = scmp.ne.s32.totalorder %s119, %s133
    %p135 = scmp.eq.s32.totalorder %s20, 0
    %p136 = por %p134, %p135
    %s138 = sadd.s32 %s137, 1
    %p141 = scmp.eq.s32.totalorder %s14, 1
    %p142 = scmp.ne.s32.totalorder %s137, %s139
    %p143 = scmp.eq.s32.totalorder %s14, 0
    %p144 = por %p142, %p143
    %p145 = scmp.ne.s32.totalorder %s137, %s139
    %p146 = scmp.eq.s32.totalorder %s19, 1
    %p147 = por %p145, %p146
    %p148 = scmp.ne.s32.totalorder %s139, %s140
    %p149 = scmp.eq.s32.totalorder %s19, 0
    %p150 = por %p148, %p149
    %p151 = scmp.ne.s32.totalorder %s139, %s140
    %p152 = scmp.eq.s32.totalorder %s20, 1
    %p153 = por %p151, %p152
    %p155 = scmp.ne.s32.totalorder %s140, %s154
    %p156 = scmp.eq.s32.totalorder %s20, 0
    %p157 = por %p155, %p156
    %s159 = sadd.s32 %s158, 1
    %p162 = scmp.eq.s32.totalorder %s14, 1
    %p163 = scmp.ne.s32.totalorder %s158, %s160
    %p164 = scmp.eq.s32.totalorder %s14, 0
    %p165 = por %p163, %p164
    %p166 = scmp.ne.s32.totalorder %s158, %s160
    %p167 = scmp.eq.s32.totalorder %s19, 1
    %p168 = por %p166, %p167
    %p169 = scmp.ne.s32.totalorder %s160, %s161
    %p170 = scmp.eq.s32.totalorder %s19, 0
    %p171 = por %p169, %p170
    %p172 = scmp.ne.s32.totalorder %s160, %s161
    %p173 = scmp.eq.s32.totalorder %s20, 1
    %p174 = por %p172, %p173
    %p176 = scmp.ne.s32.totalorder %s161, %s175
    %p177 = scmp.eq.s32.totalorder %s20, 0
    %p178 = por %p176, %p177
    %s180 = sadd.s32 %s179, 1
    %p183 = scmp.eq.s32.totalorder %s14, 1
    %p184 = scmp.ne.s32.totalorder %s179, %s181
    %p185 = scmp.eq.s32.totalorder %s14, 0
    %p186 = por %p184, %p185
    %p187 = scmp.ne.s32.totalorder %s179, %s181
    %p188 = scmp.eq.s32.totalorder %s19, 1
    %p189 = por %p187, %p188
    %p190 = scmp.ne.s32.totalorder %s181, %s182
    %p191 = scmp.eq.s32.totalorder %s19, 0
    %p192 = por %p190, %p191
    %p193 = scmp.ne.s32.totalorder %s181, %s182
    %p194 = scmp.eq.s32.totalorder %s20, 1
    %p195 = por %p193, %p194
    %p197 = scmp.ne.s32.totalorder %s182, %s196
    %p198 = scmp.eq.s32.totalorder %s20, 0
    %p199 = por %p197, %p198
    %s200 = ssub.s32 %s14, %s21
    %p201 = scmp.eq.s32.totalorder %s200, 0
    %s203 = sadd.s32 %s202, 1
    %s204 = scalar_select %p201, %s202, %s203
    %p207 = pneg %p201
    %p208 = scmp.eq.s32.totalorder %s14, 1
    %p209 = por %p207, %p208
    %p210 = scmp.ne.s32.totalorder %s202, %s205
    %p211 = scmp.eq.s32.totalorder %s14, 0
    %p212 = por %p210, %p211
    %p213 = scmp.ne.s32.totalorder %s202, %s205
    %p214 = scmp.eq.s32.totalorder %s19, 1
    %p215 = por %p213, %p214
    %p216 = scmp.ne.s32.totalorder %s205, %s206
    %p217 = scmp.eq.s32.totalorder %s19, 0
    %p218 = por %p216, %p217
    %p219 = scmp.ne.s32.totalorder %s205, %s206
    %p220 = scmp.eq.s32.totalorder %s20, 1
    %p221 = por %p219, %p220
    %p223 = scmp.ne.s32.totalorder %s206, %s222
    %p224 = scmp.eq.s32.totalorder %s20, 0
    %p225 = por %p223, %p224
    %p226 = scmp.le.s32.totalorder 1, %s14
    %p227 = scmp.lt.s32.totalorder %s14, 3
    %p228 = pnand %p226, %p227
    %p229 = pneg %p228
    // Predicated region
    $region9: #{tpu_custom_call.1} parent=5 // pred_check
      _
    $region10: #{tpu_custom_call.1} parent=5 // pred_check_branch
      %231 = sbr.rel (%p228) target = $region12
    $region11: #{tpu_custom_call.1} parent=5 // pred_region
      %s232 = ssub.s32 %s14, 1
      // Predicated region
      $region13: #{tpu_custom_call.1} parent=11 // pred_check
        %p233 = pneg %p87
      $region14: #{tpu_custom_call.1} parent=11 // pred_check_branch
        %235 = sbr.rel (%p233) target = $region16
      $region15: #{tpu_custom_call.1} parent=11 // pred_region
        _
      $region16: #{tpu_custom_call.1} parent=11 // pred_fallthru
        _
      // Predicated region
      $region17: #{tpu_custom_call.1} parent=11 // pred_check
        %p236 = pneg %p108
      $region18: #{tpu_custom_call.1} parent=11 // pred_check_branch
        %238 = sbr.rel (%p236) target = $region20
      $region19: #{tpu_custom_call.1} parent=11 // pred_region
        _
      $region20: #{tpu_custom_call.1} parent=11 // pred_fallthru
        _
      // Predicated region
      $region21: #{tpu_custom_call.1} parent=11 // pred_check
        %p239 = pneg %p129
      $region22: #{tpu_custom_call.1} parent=11 // pred_check_branch
        %241 = sbr.rel (%p239) target = $region24
      $region23: #{tpu_custom_call.1} parent=11 // pred_region
        _
      $region24: #{tpu_custom_call.1} parent=11 // pred_fallthru
        _
      // Predicated region
      $region25: #{tpu_custom_call.1} parent=11 // pred_check
        %p242 = pneg %p150
      $region26: #{tpu_custom_call.1} parent=11 // pred_check_branch
        %244 = sbr.rel (%p242) target = $region28
      $region27: #{tpu_custom_call.1} parent=11 // pred_region
        _
      $region28: #{tpu_custom_call.1} parent=11 // pred_fallthru
        _
      // Predicated region
      $region29: #{tpu_custom_call.1} parent=11 // pred_check
        %p245 = pneg %p171
      $region30: #{tpu_custom_call.1} parent=11 // pred_check_branch
        %247 = sbr.rel (%p245) target = $region32
      $region31: #{tpu_custom_call.1} parent=11 // pred_region
        _
      $region32: #{tpu_custom_call.1} parent=11 // pred_fallthru
        _
      // Predicated region
      $region33: #{tpu_custom_call.1} parent=11 // pred_check
        %p248 = pneg %p192
      $region34: #{tpu_custom_call.1} parent=11 // pred_check_branch
        %250 = sbr.rel (%p248) target = $region36
      $region35: #{tpu_custom_call.1} parent=11 // pred_region
        _
      $region36: #{tpu_custom_call.1} parent=11 // pred_fallthru
        _
    $region12: #{tpu_custom_call.1} parent=5 // pred_fallthru
      _
    %p251 = scmp.lt.s32.totalorder %s14, 2
    // Predicated region
    $region37: #{tpu_custom_call.1} parent=5 // pred_check
      %p252 = pneg %p251
    $region38: #{tpu_custom_call.1} parent=5 // pred_check_branch
      %254 = sbr.rel (%p252) target = $region40
    $region39: #{tpu_custom_call.1} parent=5 // pred_region
      // Predicated region
      $region41: #{tpu_custom_call.1} parent=39 // pred_check
        %p255 = pneg %p34
      $region42: #{tpu_custom_call.1} parent=39 // pred_check_branch
        %257 = sbr.rel (%p255) target = $region44
      $region43: #{tpu_custom_call.1} parent=39 // pred_region
        %p258 = scmp.lt.s32.totalorder %s14, 1
        %s259 = scalar_select %p258, %s14, 1
        %s260 = smul.addr %s259, 8
        %s261 = smul.addr %s260, 8
        %s262 = scalar_lea.vmem %s0, %s261
      $region44: #{tpu_custom_call.1} parent=39 // pred_fallthru
        _
      // Predicated region
      $region45: #{tpu_custom_call.1} parent=39 // pred_check
        %p263 = pneg %p60
      $region46: #{tpu_custom_call.1} parent=39 // pred_check_branch
        %265 = sbr.rel (%p263) target = $region48
      $region47: #{tpu_custom_call.1} parent=39 // pred_region
        %p266 = scmp.lt.s32.totalorder %s14, 1
        %s267 = scalar_select %p266, %s14, 1
        %s268 = smul.addr %s267, 8
        %s269 = smul.addr %s268, 8
        %s270 = scalar_lea.vmem %s1, %s269
      $region48: #{tpu_custom_call.1} parent=39 // pred_fallthru
        _
    $region40: #{tpu_custom_call.1} parent=5 // pred_fallthru
      _
    %p271 = scmp.le.s32.totalorder 1, %s14
    %p272 = scmp.lt.s32.totalorder %s14, 3
    %p273 = pnand %p271, %p272
    %p274 = pneg %p273
    // Predicated region
    $region49: #{tpu_custom_call.1} parent=5 // pred_check
      _
    $region50: #{tpu_custom_call.1} parent=5 // pred_check_branch
      %276 = sbr.rel (%p273) target = $region52
    $region51: #{tpu_custom_call.1} parent=5 // pred_region
      %s277 = ssub.s32 %s14, 1
      %p278 = scmp.lt.s32.totalorder %s19, 1
      %s279 = scalar_select %p278, %s19, 1
      %s280 = smul.addr %s279, 8
      %s281 = smul.addr %s280, 8
      %s282 = scalar_lea.vmem %s0, %s281
      %p283 = pneg %p40
      %p284 = pneg %p37
      %p285 = scmp.lt.s32.totalorder %s19, 1
      %s286 = scalar_select %p285, %s19, 1
      %s287 = smul.addr %s286, 8
      %s288 = smul.addr %s287, 8
      %s289 = scalar_lea.vmem %s1, %s288
      %p290 = pneg %p66
      %p291 = pneg %p63
      %p292 = pneg %p87
      %p293 = pneg %p84
      %p294 = pneg %p108
      %p295 = pneg %p105
      %p296 = pneg %p129
      %p297 = pneg %p126
      %p298 = pneg %p150
      %p299 = pneg %p147
      %p300 = pneg %p171
      %p301 = pneg %p168
      %p302 = pneg %p192
      %p303 = pneg %p189
      %p304 = pneg %p218
      %p305 = pneg %p215
      %p306 = scmp.lt.s32.totalorder %s19, 1
      %s307 = scalar_select %p306, %s19, 1
      %s308 = smul.addr %s307, 8
      %s309 = smul.addr %s308, 8
      %s310 = scalar_lea.vmem %s8, %s309
      %p311 = scmp.lt.s32.totalorder %s19, 1
      %s312 = scalar_select %p311, %s19, 1
      %s313 = smul.addr %s312, 8
      %s314 = smul.addr %s313, 8
      %s315 = scalar_lea.vmem %s0, %s314
      %p316 = scmp.lt.s32.totalorder %s19, 1
      %s317 = scalar_select %p316, %s19, 1
      %s318 = smul.addr %s317, 8
      %s319 = smul.addr %s318, 8
      %s320 = scalar_lea.vmem %s1, %s319
      %p321 = scmp.lt.s32.totalorder %s19, 1
      %s322 = scalar_select %p321, %s19, 1
      %s323 = smul.addr %s322, 8
      %s324 = smul.addr %s323, 8
      %s325 = scalar_lea.vmem %s8, %s324
      %v326 = vld [vmem:[%s315] sm:$0xff]
      %v327 = vld [vmem:[%s315 + $0x8] sm:$0xff]
      %v328 = vld [vmem:[%s315 + $0x10] sm:$0xff]
      %v329 = vld [vmem:[%s315 + $0x18] sm:$0xff]
      %v330 = vld [vmem:[%s315 + $0x20] sm:$0xff]
      %v331 = vld [vmem:[%s315 + $0x28] sm:$0xff]
      %v332 = vld [vmem:[%s315 + $0x30] sm:$0xff]
      %v333 = vld [vmem:[%s315 + $0x38] sm:$0xff]
      %v334 = vld [vmem:[%s320] sm:$0xff]
      %v335 = vld [vmem:[%s320 + $0x8] sm:$0xff]
      %v336 = vld [vmem:[%s320 + $0x10] sm:$0xff]
      %v337 = vld [vmem:[%s320 + $0x18] sm:$0xff]
      %v338 = vld [vmem:[%s320 + $0x20] sm:$0xff]
      %v339 = vld [vmem:[%s320 + $0x28] sm:$0xff]
      %v340 = vld [vmem:[%s320 + $0x30] sm:$0xff]
      %v341 = vld [vmem:[%s320 + $0x38] sm:$0xff]
      %v342 = vld [vmem:[%s2] sm:$0xff]
      %v343 = vld [vmem:[%s2 + $0x8] sm:$0xff]
      %v344 = vld [vmem:[%s3] sm:$0x1]
      %v346 = vlaneseq
      %v347 = vshrl.u32 %v346, 7
      %v348 = vsub.s32 0, %v347
      %v349 = vrot.slane %v344, %v348
      %vm351 = vcmask 130048
      %v353 = vsel %vm351, %v326, 0
      %v356 = vsel %vm351, %v327, 0
      %v359 = vsel %vm351, %v328, 0
      %v362 = vsel %vm351, %v329, 0
      %v365 = vsel %vm351, %v330, 0
      %v368 = vsel %vm351, %v331, 0
      %v371 = vsel %vm351, %v332, 0
      %v374 = vsel %vm351, %v333, 0
      %376 = vmatprep.subr.mxu0 0.0
      %377 = vmatpush1.msra.mxu0 %v342
      %378 = vmatprep.subr.mxu0 0.0
      %379 = vmatpush1.msra.mxu0 %v343
      %380 = vmatprep.subr.mxu0 0.0
      %381 = vmatpush1.msra.mxu0 0.0
      %382 = vmatprep.subr.mxu0 0.0
      %383 = vmatpush1.msra.mxu0 0.0
      %384 = vmatprep.subr.mxu0 0.0
      %385 = vmatpush1.msra.mxu0 0.0
      %386 = vmatprep.subr.mxu0 0.0
      %387 = vmatpush1.msra.mxu0 0.0
      %388 = vmatprep.subr.mxu0 0.0
      %389 = vmatpush1.msra.mxu0 0.0
      %390 = vmatprep.subr.mxu0 0.0
      %391 = vmatpush1.msra.mxu0 0.0
      %392 = vmatprep.subr.mxu0 0.0
      %393 = vmatpush1.msra.mxu0 0.0
      %394 = vmatprep.subr.mxu0 0.0
      %395 = vmatpush1.msra.mxu0 0.0
      %396 = vmatprep.subr.mxu0 0.0
      %397 = vmatpush1.msra.mxu0 0.0
      %398 = vmatprep.subr.mxu0 0.0
      %399 = vmatpush1.msra.mxu0 0.0
      %400 = vmatprep.subr.mxu0 0.0
      %401 = vmatpush1.msra.mxu0 0.0
      %402 = vmatprep.subr.mxu0 0.0
      %403 = vmatpush1.msra.mxu0 0.0
      %404 = vmatprep.subr.mxu0 0.0
      %405 = vmatpush1.msra.mxu0 0.0
      %406 = vmatprep.subr.mxu0 0.0
      %407 = vmatpush1.msra.mxu0 0.0
      %408 = vmatprep.subr.mxu0 0.0
      %409 = vmatpush1.msra.mxu0 0.0
      %410 = vmatprep.subr.mxu0 0.0
      %411 = vmatpush1.msra.mxu0 0.0
      %412 = vmatprep.subr.mxu0 0.0
      %413 = vmatpush1.msra.mxu0 0.0
      %414 = vmatprep.subr.mxu0 0.0
      %415 = vmatpush1.msra.mxu0 0.0
      %416 = vmatprep.subr.mxu0 0.0
      %417 = vmatpush1.msra.mxu0 0.0
      %418 = vmatprep.subr.mxu0 0.0
      %419 = vmatpush1.msra.mxu0 0.0
      %420 = vmatprep.subr.mxu0 0.0
      %421 = vmatpush1.msra.mxu0 0.0
      %422 = vmatprep.subr.mxu0 0.0
      %423 = vmatpush1.msra.mxu0 0.0
      %424 = vmatprep.subr.mxu0 0.0
      %425 = vmatpush1.msra.mxu0 0.0
      %426 = vmatprep.subr.mxu0 0.0
      %427 = vmatpush1.msra.mxu0 0.0
      %428 = vmatprep.subr.mxu0 0.0
      %429 = vmatpush1.msra.mxu0 0.0
      %430 = vmatprep.subr.mxu0 0.0
      %431 = vmatpush1.msra.mxu0 0.0
      %432 = vmatprep.subr.mxu0 0.0
      %433 = vmatpush1.msra.mxu0 0.0
      %434 = vmatprep.subr.mxu0 0.0
      %435 = vmatpush1.msra.mxu0 0.0
      %436 = vmatprep.subr.mxu0 0.0
      %437 = vmatpush1.msra.mxu0 0.0
      %438 = vmatprep.subr.mxu0 0.0
      %439 = vmatpush1.msra.mxu0 0.0
      %440 = vmatprep.mubr.f32.mxu0 0.0
      %441 = vmatmul.mubr.f32.gmra.mrb[0].mxu0 %v353
      %v442 = vpop.f32.mrb[0].mxu0
      %v443 = vadd.f32 %v349, %v442
      %v444 = vpop.f32.mrb[0].mxu0
      %445 = vmatprep.mubr.f32.mxu0 0.0
      %446 = vmatmul.mubr.f32.gmra.mrb[0].mxu0 %v356
      %v447 = vpop.f32.mrb[0].mxu0
      %v448 = vadd.f32 %v349, %v447
      %v449 = vpop.f32.mrb[0].mxu0
      %450 = vmatprep.mubr.f32.mxu0 0.0
      %451 = vmatmul.mubr.f32.gmra.mrb[0].mxu0 %v359
      %v452 = vpop.f32.mrb[0].mxu0
      %v453 = vadd.f32 %v349, %v452
      %v454 = vpop.f32.mrb[0].mxu0
      %455 = vmatprep.mubr.f32.mxu0 0.0
      %456 = vmatmul.mubr.f32.gmra.mrb[0].mxu0 %v362
      %v457 = vpop.f32.mrb[0].mxu0
      %v458 = vadd.f32 %v349, %v457
      %v459 = vpop.f32.mrb[0].mxu0
      %460 = vmatprep.mubr.f32.mxu0 0.0
      %461 = vmatmul.mubr.f32.gmra.mrb[0].mxu0 %v365
      %v462 = vpop.f32.mrb[0].mxu0
      %v463 = vadd.f32 %v349, %v462
      %v464 = vpop.f32.mrb[0].mxu0
      %465 = vmatprep.mubr.f32.mxu0 0.0
      %466 = vmatmul.mubr.f32.gmra.mrb[0].mxu0 %v368
      %v467 = vpop.f32.mrb[0].mxu0
      %v468 = vadd.f32 %v349, %v467
      %v469 = vpop.f32.mrb[0].mxu0
      %470 = vmatprep.mubr.f32.mxu0 0.0
      %471 = vmatmul.mubr.f32.gmra.mrb[0].mxu0 %v371
      %v472 = vpop.f32.mrb[0].mxu0
      %v473 = vadd.f32 %v349, %v472
      %v474 = vpop.f32.mrb[0].mxu0
      %475 = vmatprep.mubr.f32.mxu0 0.0
      %476 = vmatmul.mubr.f32.gmra.mrb[0].mxu0 %v374
      %v477 = vpop.f32.mrb[0].mxu0
      %v478 = vadd.f32 %v349, %v477
      %v479 = vpop.f32.mrb[0].mxu0
      %480 = vdwg.mxu0
      %v481 = vld [vmem:[%s4] sm:$0xff]
      %v482 = vld [vmem:[%s4 + $0x8] sm:$0xff]
      %v483 = vld [vmem:[%s4 + $0x10] sm:$0xf]
      %v484 = vld [vmem:[%s5] sm:$0x1]
      %v486 = vlaneseq
      %v487 = vshrl.u32 %v486, 7
      %v488 = vsub.s32 0, %v487
      %v489 = vrot.slane %v484, %v488
      %vm491 = vcmask 162816
      %v493 = vsel %vm491, %v334, 0
      %v496 = vsel %vm491, %v335, 0
      %v499 = vsel %vm491, %v336, 0
      %v502 = vsel %vm491, %v337, 0
      %v505 = vsel %vm491, %v338, 0
      %v508 = vsel %vm491, %v339, 0
      %v511 = vsel %vm491, %v340, 0
      %v514 = vsel %vm491, %v341, 0
      %vm516 = vcmask 1043456
      %v518 = vsel %vm516, %v483, 0
      %520 = vmatprep.subr.mxu0 0.0
      %521 = vmatpush1.msra.mxu0 %v481
      %522 = vmatprep.subr.mxu0 0.0
      %523 = vmatpush1.msra.mxu0 %v482
      %524 = vmatprep.subr.mxu0 0.0
      %525 = vmatpush1.msra.mxu0 %v518
      %526 = vmatprep.subr.mxu0 0.0
      %527 = vmatpush1.msra.mxu0 0.0
      %528 = vmatprep.subr.mxu0 0.0
      %529 = vmatpush1.msra.mxu0 0.0
      %530 = vmatprep.subr.mxu0 0.0
      %531 = vmatpush1.msra.mxu0 0.0
      %532 = vmatprep.subr.mxu0 0.0
      %533 = vmatpush1.msra.mxu0 0.0
      %534 = vmatprep.subr.mxu0 0.0
      %535 = vmatpush1.msra.mxu0 0.0
      %536 = vmatprep.subr.mxu0 0.0
      %537 = vmatpush1.msra.mxu0 0.0
      %538 = vmatprep.subr.mxu0 0.0
      %539 = vmatpush1.msra.mxu0 0.0
      %540 = vmatprep.subr.mxu0 0.0
      %541 = vmatpush1.msra.mxu0 0.0
      %542 = vmatprep.subr.mxu0 0.0
      %543 = vmatpush1.msra.mxu0 0.0
      %544 = vmatprep.subr.mxu0 0.0
      %545 = vmatpush1.msra.mxu0 0.0
      %546 = vmatprep.subr.mxu0 0.0
      %547 = vmatpush1.msra.mxu0 0.0
      %548 = vmatprep.subr.mxu0 0.0
      %549 = vmatpush1.msra.mxu0 0.0
      %550 = vmatprep.subr.mxu0 0.0
      %551 = vmatpush1.msra.mxu0 0.0
      %552 = vmatprep.subr.mxu0 0.0
      %553 = vmatpush1.msra.mxu0 0.0
      %554 = vmatprep.subr.mxu0 0.0
      %555 = vmatpush1.msra.mxu0 0.0
      %556 = vmatprep.subr.mxu0 0.0
      %557 = vmatpush1.msra.mxu0 0.0
      %558 = vmatprep.subr.mxu0 0.0
      %559 = vmatpush1.msra.mxu0 0.0
      %560 = vmatprep.subr.mxu0 0.0
      %561 = vmatpush1.msra.mxu0 0.0
      %562 = vmatprep.subr.mxu0 0.0
      %563 = vmatpush1.msra.mxu0 0.0
      %564 = vmatprep.subr.mxu0 0.0
      %565 = vmatpush1.msra.mxu0 0.0
      %566 = vmatprep.subr.mxu0 0.0
      %567 = vmatpush1.msra.mxu0 0.0
      %568 = vmatprep.subr.mxu0 0.0
      %569 = vmatpush1.msra.mxu0 0.0
      %570 = vmatprep.subr.mxu0 0.0
      %571 = vmatpush1.msra.mxu0 0.0
      %572 = vmatprep.subr.mxu0 0.0
      %573 = vmatpush1.msra.mxu0 0.0
      %574 = vmatprep.subr.mxu0 0.0
      %575 = vmatpush1.msra.mxu0 0.0
      %576 = vmatprep.subr.mxu0 0.0
      %577 = vmatpush1.msra.mxu0 0.0
      %578 = vmatprep.subr.mxu0 0.0
      %579 = vmatpush1.msra.mxu0 0.0
      %580 = vmatprep.subr.mxu0 0.0
      %581 = vmatpush1.msra.mxu0 0.0
      %582 = vmatprep.subr.mxu0 0.0
      %583 = vmatpush1.msra.mxu0 0.0
      %584 = vmatprep.mubr.f32.mxu0 0.0
      %585 = vmatmul.mubr.f32.gmra.mrb[0].mxu0 %v493
      %v586 = vpop.f32.mrb[0].mxu0
      %v587 = vadd.f32 %v489, %v586
      %v588 = vpop.f32.mrb[0].mxu0
      %589 = vmatprep.mubr.f32.mxu0 0.0
      %590 = vmatmul.mubr.f32.gmra.mrb[0].mxu0 %v496
      %v591 = vpop.f32.mrb[0].mxu0
      %v592 = vadd.f32 %v489, %v591
      %v593 = vpop.f32.mrb[0].mxu0
      %594 = vmatprep.mubr.f32.mxu0 0.0
      %595 = vmatmul.mubr.f32.gmra.mrb[0].mxu0 %v499
      %v596 = vpop.f32.mrb[0].mxu0
      %v597 = vadd.f32 %v489, %v596
      %v598 = vpop.f32.mrb[0].mxu0
      %599 = vmatprep.mubr.f32.mxu0 0.0
      %600 = vmatmul.mubr.f32.gmra.mrb[0].mxu0 %v502
      %v601 = vpop.f32.mrb[0].mxu0
      %v602 = vadd.f32 %v489, %v601
      %v603 = vpop.f32.mrb[0].mxu0
      %604 = vmatprep.mubr.f32.mxu0 0.0
      %605 = vmatmul.mubr.f32.gmra.mrb[0].mxu0 %v505
      %v606 = vpop.f32.mrb[0].mxu0
      %v607 = vadd.f32 %v489, %v606
      %v608 = vpop.f32.mrb[0].mxu0
      %609 = vmatprep.mubr.f32.mxu0 0.0
      %610 = vmatmul.mubr.f32.gmra.mrb[0].mxu0 %v508
      %v611 = vpop.f32.mrb[0].mxu0
      %v612 = vadd.f32 %v489, %v611
      %v613 = vpop.f32.mrb[0].mxu0
      %614 = vmatprep.mubr.f32.mxu0 0.0
      %615 = vmatmul.mubr.f32.gmra.mrb[0].mxu0 %v511
      %v616 = vpop.f32.mrb[0].mxu0
      %v617 = vadd.f32 %v489, %v616
      %v618 = vpop.f32.mrb[0].mxu0
      %619 = vmatprep.mubr.f32.mxu0 0.0
      %620 = vmatmul.mubr.f32.gmra.mrb[0].mxu0 %v514
      %v621 = vpop.f32.mrb[0].mxu0
      %v622 = vadd.f32 %v489, %v621
      %v623 = vpop.f32.mrb[0].mxu0
      %624 = vdwg.mxu0
      %v625 = vld [vmem:[%s6] sm:$0xff]
      %v626 = vld [vmem:[%s6 + $0x8] sm:$0xff]
      %v627 = vld [vmem:[%s6 + $0x10] sm:$0xf]
      %v628 = vld [vmem:[%s7] sm:$0x1]
      %v630 = vlaneseq
      %v631 = vshrl.u32 %v630, 7
      %v632 = vsub.s32 0, %v631
      %v633 = vrot.slane %v628, %v632
      %v636 = vsel %vm516, %v627, 0
      %638 = vmatprep.subr.mxu0 0.0
      %639 = vmatpush1.msra.mxu0 %v625
      %640 = vmatprep.subr.mxu0 0.0
      %641 = vmatpush1.msra.mxu0 %v626
      %642 = vmatprep.subr.mxu0 0.0
      %643 = vmatpush1.msra.mxu0 %v636
      %644 = vmatprep.subr.mxu0 0.0
      %645 = vmatpush1.msra.mxu0 0.0
      %646 = vmatprep.subr.mxu0 0.0
      %647 = vmatpush1.msra.mxu0 0.0
      %648 = vmatprep.subr.mxu0 0.0
      %649 = vmatpush1.msra.mxu0 0.0
      %650 = vmatprep.subr.mxu0 0.0
      %651 = vmatpush1.msra.mxu0 0.0
      %652 = vmatprep.subr.mxu0 0.0
      %653 = vmatpush1.msra.mxu0 0.0
      %654 = vmatprep.subr.mxu0 0.0
      %655 = vmatpush1.msra.mxu0 0.0
      %656 = vmatprep.subr.mxu0 0.0
      %657 = vmatpush1.msra.mxu0 0.0
      %658 = vmatprep.subr.mxu0 0.0
      %659 = vmatpush1.msra.mxu0 0.0
      %660 = vmatprep.subr.mxu0 0.0
      %661 = vmatpush1.msra.mxu0 0.0
      %662 = vmatprep.subr.mxu0 0.0
      %663 = vmatpush1.msra.mxu0 0.0
      %664 = vmatprep.subr.mxu0 0.0
      %665 = vmatpush1.msra.mxu0 0.0
      %666 = vmatprep.subr.mxu0 0.0
      %667 = vmatpush1.msra.mxu0 0.0
      %668 = vmatprep.subr.mxu0 0.0
      %669 = vmatpush1.msra.mxu0 0.0
      %670 = vmatprep.subr.mxu0 0.0
      %671 = vmatpush1.msra.mxu0 0.0
      %672 = vmatprep.subr.mxu0 0.0
      %673 = vmatpush1.msra.mxu0 0.0
      %674 = vmatprep.subr.mxu0 0.0
      %675 = vmatpush1.msra.mxu0 0.0
      %676 = vmatprep.subr.mxu0 0.0
      %677 = vmatpush1.msra.mxu0 0.0
      %678 = vmatprep.subr.mxu0 0.0
      %679 = vmatpush1.msra.mxu0 0.0
      %680 = vmatprep.subr.mxu0 0.0
      %681 = vmatpush1.msra.mxu0 0.0
      %682 = vmatprep.subr.mxu0 0.0
      %683 = vmatpush1.msra.mxu0 0.0
      %684 = vmatprep.subr.mxu0 0.0
      %685 = vmatpush1.msra.mxu0 0.0
      %686 = vmatprep.subr.mxu0 0.0
      %687 = vmatpush1.msra.mxu0 0.0
      %688 = vmatprep.subr.mxu0 0.0
      %689 = vmatpush1.msra.mxu0 0.0
      %690 = vmatprep.subr.mxu0 0.0
      %691 = vmatpush1.msra.mxu0 0.0
      %692 = vmatprep.subr.mxu0 0.0
      %693 = vmatpush1.msra.mxu0 0.0
      %694 = vmatprep.subr.mxu0 0.0
      %695 = vmatpush1.msra.mxu0 0.0
      %696 = vmatprep.subr.mxu0 0.0
      %697 = vmatpush1.msra.mxu0 0.0
      %698 = vmatprep.subr.mxu0 0.0
      %699 = vmatpush1.msra.mxu0 0.0
      %700 = vmatprep.subr.mxu0 0.0
      %701 = vmatpush1.msra.mxu0 0.0
      %702 = vmatprep.mubr.f32.mxu0 0.0
      %703 = vmatmul.mubr.f32.gmra.mrb[0].mxu0 %v493
      %v704 = vpop.f32.mrb[0].mxu0
      %v705 = vadd.f32 %v633, %v704
      %v706 = vpop.f32.mrb[0].mxu0
      %707 = vmatprep.mubr.f32.mxu0 0.0
      %708 = vmatmul.mubr.f32.gmra.mrb[0].mxu0 %v496
      %v709 = vpop.f32.mrb[0].mxu0
      %v710 = vadd.f32 %v633, %v709
      %v711 = vpop.f32.mrb[0].mxu0
      %712 = vmatprep.mubr.f32.mxu0 0.0
      %713 = vmatmul.mubr.f32.gmra.mrb[0].mxu0 %v499
      %v714 = vpop.f32.mrb[0].mxu0
      %v715 = vadd.f32 %v633, %v714
      %v716 = vpop.f32.mrb[0].mxu0
      %717 = vmatprep.mubr.f32.mxu0 0.0
      %718 = vmatmul.mubr.f32.gmra.mrb[0].mxu0 %v502
      %v719 = vpop.f32.mrb[0].mxu0
      %v720 = vadd.f32 %v633, %v719
      %v721 = vpop.f32.mrb[0].mxu0
      %722 = vmatprep.mubr.f32.mxu0 0.0
      %723 = vmatmul.mubr.f32.gmra.mrb[0].mxu0 %v505
      %v724 = vpop.f32.mrb[0].mxu0
      %v725 = vadd.f32 %v633, %v724
      %v726 = vpop.f32.mrb[0].mxu0
      %727 = vmatprep.mubr.f32.mxu0 0.0
      %728 = vmatmul.mubr.f32.gmra.mrb[0].mxu0 %v508
      %v729 = vpop.f32.mrb[0].mxu0
      %v730 = vadd.f32 %v633, %v729
      %v731 = vpop.f32.mrb[0].mxu0
      %732 = vmatprep.mubr.f32.mxu0 0.0
      %733 = vmatmul.mubr.f32.gmra.mrb[0].mxu0 %v511
      %v734 = vpop.f32.mrb[0].mxu0
      %v735 = vadd.f32 %v633, %v734
      %v736 = vpop.f32.mrb[0].mxu0
      %737 = vmatprep.mubr.f32.mxu0 0.0
      %738 = vmatmul.mubr.f32.gmra.mrb[0].mxu0 %v514
      %v739 = vpop.f32.mrb[0].mxu0
      %v740 = vadd.f32 %v633, %v739
      %v741 = vpop.f32.mrb[0].mxu0
      %742 = vdwg.mxu0
      %v743 = vlaneseq
      %v744 = vshrl.u32 %v743, 7
      %v745 = vadd.s32 %v744, 8
      %v746 = vadd.s32 %v744, 16
      %v747 = vadd.s32 %v744, 24
      %v748 = vadd.s32 %v744, 32
      %v749 = vadd.s32 %v744, 40
      %v750 = vadd.s32 %v744, 48
      %v751 = vadd.s32 %v744, 56
      %v752 = vlaneseq
      %v753 = vand.u32 %v752, 127
      %vm754 = vcmp.gt.s32.totalorder %v744, %v753
      %vm755 = vcmp.gt.s32.totalorder %v745, %v753
      %vm756 = vcmp.gt.s32.totalorder %v746, %v753
      %vm757 = vcmp.gt.s32.totalorder %v747, %v753
      %vm758 = vcmp.gt.s32.totalorder %v748, %v753
      %vm759 = vcmp.gt.s32.totalorder %v749, %v753
      %vm760 = vcmp.gt.s32.totalorder %v750, %v753
      %vm761 = vcmp.gt.s32.totalorder %v751, %v753
      %vm762 = vcmp.gt.s32.totalorder %v744, 0
      %vm763 = vcmp.gt.s32.totalorder %v745, 0
      %vm764 = vcmp.gt.s32.totalorder %v746, 0
      %vm765 = vcmp.gt.s32.totalorder %v747, 0
      %vm766 = vcmp.gt.s32.totalorder %v748, 0
      %vm767 = vcmp.gt.s32.totalorder %v749, 0
      %vm768 = vcmp.gt.s32.totalorder %v750, 0
      %vm769 = vcmp.gt.s32.totalorder %v751, 0
      %v770 = vsel %vm762, 1, 0
      %v771 = vsel %vm763, 1, 0
      %v772 = vsel %vm764, 1, 0
      %v773 = vsel %vm765, 1, 0
      %v774 = vsel %vm766, 1, 0
      %v775 = vsel %vm767, 1, 0
      %v776 = vsel %vm768, 1, 0
      %v777 = vsel %vm769, 1, 0
      %v778 = vcvt.s32.f32 %v770
      %v779 = vcvt.s32.f32 %v771
      %v780 = vcvt.s32.f32 %v772
      %v781 = vcvt.s32.f32 %v773
      %v782 = vcvt.s32.f32 %v774
      %v783 = vcvt.s32.f32 %v775
      %v784 = vcvt.s32.f32 %v776
      %v785 = vcvt.s32.f32 %v777
      %vm786 = vcmask 31744
      %v788 = vsel %vm786, %v443, 0
      %v791 = vsel %vm786, %v448, 0
      %v794 = vsel %vm786, %v453, 0
      %v797 = vsel %vm786, %v458, 0
      %v800 = vsel %vm786, %v463, 0
      %v803 = vsel %vm786, %v468, 0
      %v806 = vsel %vm786, %v473, 0
      %v809 = vsel %vm786, %v478, 0
      %v812 = vsel %vm786, %v587, 0
      %v815 = vsel %vm786, %v592, 0
      %v818 = vsel %vm786, %v597, 0
      %v821 = vsel %vm786, %v602, 0
      %v824 = vsel %vm786, %v607, 0
      %v827 = vsel %vm786, %v612, 0
      %v830 = vsel %vm786, %v617, 0
      %v833 = vsel %vm786, %v622, 0
      %835 = vmatprep.subr.mxu0 0.0
      %836 = vmatpush1.xpose.msra.mxu0 %v812
      %837 = vmatprep.subr.mxu0 0.0
      %838 = vmatpush1.xpose.msra.mxu0 %v815
      %839 = vmatprep.subr.mxu0 0.0
      %840 = vmatpush1.xpose.msra.mxu0 %v818
      %841 = vmatprep.subr.mxu0 0.0
      %842 = vmatpush1.xpose.msra.mxu0 %v821
      %843 = vmatprep.subr.mxu0 0.0
      %844 = vmatpush1.xpose.msra.mxu0 %v824
      %845 = vmatprep.subr.mxu0 0.0
      %846 = vmatpush1.xpose.msra.mxu0 %v827
      %847 = vmatprep.subr.mxu0 0.0
      %848 = vmatpush1.xpose.msra.mxu0 %v830
      %849 = vmatprep.subr.mxu0 0.0
      %850 = vmatpush1.xpose.msra.mxu0 %v833
      %851 = vmatprep.subr.mxu0 0.0
      %852 = vmatpush1.xpose.msra.mxu0 0.0
      %853 = vmatprep.subr.mxu0 0.0
      %854 = vmatpush1.xpose.msra.mxu0 0.0
      %855 = vmatprep.subr.mxu0 0.0
      %856 = vmatpush1.xpose.msra.mxu0 0.0
      %857 = vmatprep.subr.mxu0 0.0
      %858 = vmatpush1.xpose.msra.mxu0 0.0
      %859 = vmatprep.subr.mxu0 0.0
      %860 = vmatpush1.xpose.msra.mxu0 0.0
      %861 = vmatprep.subr.mxu0 0.0
      %862 = vmatpush1.xpose.msra.mxu0 0.0
      %863 = vmatprep.subr.mxu0 0.0
      %864 = vmatpush1.xpose.msra.mxu0 0.0
      %865 = vmatprep.subr.mxu0 0.0
      %866 = vmatpush1.xpose.msra.mxu0 0.0
      %867 = vmatprep.subr.mxu0 0.0
      %868 = vmatpush1.xpose.msra.mxu0 0.0
      %869 = vmatprep.subr.mxu0 0.0
      %870 = vmatpush1.xpose.msra.mxu0 0.0
      %871 = vmatprep.subr.mxu0 0.0
      %872 = vmatpush1.xpose.msra.mxu0 0.0
      %873 = vmatprep.subr.mxu0 0.0
      %874 = vmatpush1.xpose.msra.mxu0 0.0
      %875 = vmatprep.subr.mxu0 0.0
      %876 = vmatpush1.xpose.msra.mxu0 0.0
      %877 = vmatprep.subr.mxu0 0.0
      %878 = vmatpush1.xpose.msra.mxu0 0.0
      %879 = vmatprep.subr.mxu0 0.0
      %880 = vmatpush1.xpose.msra.mxu0 0.0
      %881 = vmatprep.subr.mxu0 0.0
      %882 = vmatpush1.xpose.msra.mxu0 0.0
      %883 = vmatprep.subr.mxu0 0.0
      %884 = vmatpush1.xpose.msra.mxu0 0.0
      %885 = vmatprep.subr.mxu0 0.0
      %886 = vmatpush1.xpose.msra.mxu0 0.0
      %887 = vmatprep.subr.mxu0 0.0
      %888 = vmatpush1.xpose.msra.mxu0 0.0
      %889 = vmatprep.subr.mxu0 0.0
      %890 = vmatpush1.xpose.msra.mxu0 0.0
      %891 = vmatprep.subr.mxu0 0.0
      %892 = vmatpush1.xpose.msra.mxu0 0.0
      %893 = vmatprep.subr.mxu0 0.0
      %894 = vmatpush1.xpose.msra.mxu0 0.0
      %895 = vmatprep.subr.mxu0 0.0
      %896 = vmatpush1.xpose.msra.mxu0 0.0
      %897 = vmatprep.subr.mxu0 0.0
      %898 = vmatpush1.xpose.msra.mxu0 0.0
      %899 = vmatprep.mubr.f32.mxu0 0.0
      %900 = vmatmul.mubr.f32.gmra.mrb[0].mxu0 %v788
      %v901 = vpop.f32.mrb[0].mxu0
      %v902 = vadd.f32 0.0, %v901
      %v903 = vpop.f32.mrb[0].mxu0
      %904 = vmatprep.mubr.f32.mxu0 0.0
      %905 = vmatmul.mubr.f32.gmra.mrb[0].mxu0 %v791
      %v906 = vpop.f32.mrb[0].mxu0
      %v907 = vadd.f32 0.0, %v906
      %v908 = vpop.f32.mrb[0].mxu0
      %909 = vmatprep.mubr.f32.mxu0 0.0
      %910 = vmatmul.mubr.f32.gmra.mrb[0].mxu0 %v794
      %v911 = vpop.f32.mrb[0].mxu0
      %v912 = vadd.f32 0.0, %v911
      %v913 = vpop.f32.mrb[0].mxu0
      %914 = vmatprep.mubr.f32.mxu0 0.0
      %915 = vmatmul.mubr.f32.gmra.mrb[0].mxu0 %v797
      %v916 = vpop.f32.mrb[0].mxu0
      %v917 = vadd.f32 0.0, %v916
      %v918 = vpop.f32.mrb[0].mxu0
      %919 = vmatprep.mubr.f32.mxu0 0.0
      %920 = vmatmul.mubr.f32.gmra.mrb[0].mxu0 %v800
      %v921 = vpop.f32.mrb[0].mxu0
      %v922 = vadd.f32 0.0, %v921
      %v923 = vpop.f32.mrb[0].mxu0
      %924 = vmatprep.mubr.f32.mxu0 0.0
      %925 = vmatmul.mubr.f32.gmra.mrb[0].mxu0 %v803
      %v926 = vpop.f32.mrb[0].mxu0
      %v927 = vadd.f32 0.0, %v926
      %v928 = vpop.f32.mrb[0].mxu0
      %929 = vmatprep.mubr.f32.mxu0 0.0
      %930 = vmatmul.mubr.f32.gmra.mrb[0].mxu0 %v806
      %v931 = vpop.f32.mrb[0].mxu0
      %v932 = vadd.f32 0.0, %v931
      %v933 = vpop.f32.mrb[0].mxu0
      %934 = vmatprep.mubr.f32.mxu0 0.0
      %935 = vmatmul.mubr.f32.gmra.mrb[0].mxu0 %v809
      %v936 = vpop.f32.mrb[0].mxu0
      %v937 = vadd.f32 0.0, %v936
      %v938 = vpop.f32.mrb[0].mxu0
      %939 = vdwg.mxu0
      %v940 = vsel %vm754, %v902, -10000.0
      %v941 = vsel %vm755, %v907, -10000.0
      %v942 = vsel %vm756, %v912, -10000.0
      %v943 = vsel %vm757, %v917, -10000.0
      %v944 = vsel %vm758, %v922, -10000.0
      %v945 = vsel %vm759, %v927, -10000.0
      %v946 = vsel %vm760, %v932, -10000.0
      %v947 = vsel %vm761, %v937, -10000.0
      %vm948 = vcmask 523264
      %v949 = vsel %vm948, %v940, -inf
      %950 = vmax.xlane.f32.xlu0 %v949
      %v951 = vpop.xlane.xlu0 %950
      %v952 = vsel %vm948, %v941, -inf
      %953 = vmax.xlane.f32.xlu0 %v952
      %v954 = vpop.xlane.xlu0 %953
      %v955 = vsel %vm948, %v942, -inf
      %956 = vmax.xlane.f32.xlu0 %v955
      %v957 = vpop.xlane.xlu0 %956
      %v958 = vsel %vm948, %v943, -inf
      %959 = vmax.xlane.f32.xlu0 %v958
      %v960 = vpop.xlane.xlu0 %959
      %v961 = vsel %vm948, %v944, -inf
      %962 = vmax.xlane.f32.xlu0 %v961
      %v963 = vpop.xlane.xlu0 %962
      %v964 = vsel %vm948, %v945, -inf
      %965 = vmax.xlane.f32.xlu0 %v964
      %v966 = vpop.xlane.xlu0 %965
      %v967 = vsel %vm948, %v946, -inf
      %968 = vmax.xlane.f32.xlu0 %v967
      %v969 = vpop.xlane.xlu0 %968
      %v970 = vsel %vm948, %v947, -inf
      %971 = vmax.xlane.f32.xlu0 %v970
      %v972 = vpop.xlane.xlu0 %971
      %v973 = vsub.f32 %v940, %v951
      %v974 = vsub.f32 %v941, %v954
      %v975 = vsub.f32 %v942, %v957
      %v976 = vsub.f32 %v943, %v960
      %v977 = vsub.f32 %v944, %v963
      %v978 = vsub.f32 %v945, %v966
      %v979 = vsub.f32 %v946, %v969
      %v980 = vsub.f32 %v947, %v972
      %v981 = vmul.f32 %v973, 1.442695
      %v982 = vpow.pop %v981
      %v983 = vmul.f32 %v974, 1.442695
      %v984 = vpow.pop %v983
      %v985 = vmul.f32 %v975, 1.442695
      %v986 = vpow.pop %v985
      %v987 = vmul.f32 %v976, 1.442695
      %v988 = vpow.pop %v987
      %v989 = vmul.f32 %v977, 1.442695
      %v990 = vpow.pop %v989
      %v991 = vmul.f32 %v978, 1.442695
      %v992 = vpow.pop %v991
      %v993 = vmul.f32 %v979, 1.442695
      %v994 = vpow.pop %v993
      %v995 = vmul.f32 %v980, 1.442695
      %v996 = vpow.pop %v995
      %v997 = vsel %vm948, %v982, 0.0
      %998 = vadd.xlane.f32.xlu0 %v997
      %v999 = vpop.xlane.xlu0 %998
      %v1000 = vsel %vm948, %v984, 0.0
      %1001 = vadd.xlane.f32.xlu0 %v1000
      %v1002 = vpop.xlane.xlu0 %1001
      %v1003 = vsel %vm948, %v986, 0.0
      %1004 = vadd.xlane.f32.xlu0 %v1003
      %v1005 = vpop.xlane.xlu0 %1004
      %v1006 = vsel %vm948, %v988, 0.0
      %1007 = vadd.xlane.f32.xlu0 %v1006
      %v1008 = vpop.xlane.xlu0 %1007
      %v1009 = vsel %vm948, %v990, 0.0
      %1010 = vadd.xlane.f32.xlu0 %v1009
      %v1011 = vpop.xlane.xlu0 %1010
      %v1012 = vsel %vm948, %v992, 0.0
      %1013 = vadd.xlane.f32.xlu0 %v1012
      %v1014 = vpop.xlane.xlu0 %1013
      %v1015 = vsel %vm948, %v994, 0.0
      %1016 = vadd.xlane.f32.xlu0 %v1015
      %v1017 = vpop.xlane.xlu0 %1016
      %v1018 = vsel %vm948, %v996, 0.0
      %1019 = vadd.xlane.f32.xlu0 %v1018
      %v1020 = vpop.xlane.xlu0 %1019
      %v1021 = vrcp.pop %v999
      %v1022 = vrcp.pop %v1002
      %v1023 = vrcp.pop %v1005
      %v1024 = vrcp.pop %v1008
      %v1025 = vrcp.pop %v1011
      %v1026 = vrcp.pop %v1014
      %v1027 = vrcp.pop %v1017
      %v1028 = vrcp.pop %v1020
      %v1029 = vmul.f32 %v982, %v1021
      %v1030 = vmul.f32 %v984, %v1022
      %v1031 = vmul.f32 %v986, %v1023
      %v1032 = vmul.f32 %v988, %v1024
      %v1033 = vmul.f32 %v990, %v1025
      %v1034 = vmul.f32 %v992, %v1026
      %v1035 = vmul.f32 %v994, %v1027
      %v1036 = vmul.f32 %v996, %v1028
      %v1038 = vsel %vm948, %v1029, 0
      %v1041 = vsel %vm948, %v1030, 0
      %v1044 = vsel %vm948, %v1031, 0
      %v1047 = vsel %vm948, %v1032, 0
      %v1050 = vsel %vm948, %v1033, 0
      %v1053 = vsel %vm948, %v1034, 0
      %v1056 = vsel %vm948, %v1035, 0
      %v1059 = vsel %vm948, %v1036, 0
      %1061 = vmatprep.subr.mxu0 0.0
      %1062 = vmatpush1.msra.mxu0 %v705
      %1063 = vmatprep.subr.mxu0 0.0
      %1064 = vmatpush1.msra.mxu0 %v710
      %1065 = vmatprep.subr.mxu0 0.0
      %1066 = vmatpush1.msra.mxu0 %v715
      %1067 = vmatprep.subr.mxu0 0.0
      %1068 = vmatpush1.msra.mxu0 %v720
      %1069 = vmatprep.subr.mxu0 0.0
      %1070 = vmatpush1.msra.mxu0 %v725
      %1071 = vmatprep.subr.mxu0 0.0
      %1072 = vmatpush1.msra.mxu0 %v730
      %1073 = vmatprep.subr.mxu0 0.0
      %1074 = vmatpush1.msra.mxu0 %v735
      %1075 = vmatprep.subr.mxu0 0.0
      %1076 = vmatpush1.msra.mxu0 %v740
      %1077 = vmatprep.subr.mxu0 0.0
      %1078 = vmatpush1.msra.mxu0 0.0
      %1079 = vmatprep.subr.mxu0 0.0
      %1080 = vmatpush1.msra.mxu0 0.0
      %1081 = vmatprep.subr.mxu0 0.0
      %1082 = vmatpush1.msra.mxu0 0.0
      %1083 = vmatprep.subr.mxu0 0.0
      %1084 = vmatpush1.msra.mxu0 0.0
      %1085 = vmatprep.subr.mxu0 0.0
      %1086 = vmatpush1.msra.mxu0 0.0
      %1087 = vmatprep.subr.mxu0 0.0
      %1088 = vmatpush1.msra.mxu0 0.0
      %1089 = vmatprep.subr.mxu0 0.0
      %1090 = vmatpush1.msra.mxu0 0.0
      %1091 = vmatprep.subr.mxu0 0.0
      %1092 = vmatpush1.msra.mxu0 0.0
      %1093 = vmatprep.subr.mxu0 0.0
      %1094 = vmatpush1.msra.mxu0 0.0
      %1095 = vmatprep.subr.mxu0 0.0
      %1096 = vmatpush1.msra.mxu0 0.0
      %1097 = vmatprep.subr.mxu0 0.0
      %1098 = vmatpush1.msra.mxu0 0.0
      %1099 = vmatprep.subr.mxu0 0.0
      %1100 = vmatpush1.msra.mxu0 0.0
      %1101 = vmatprep.subr.mxu0 0.0
      %1102 = vmatpush1.msra.mxu0 0.0
      %1103 = vmatprep.subr.mxu0 0.0
      %1104 = vmatpush1.msra.mxu0 0.0
      %1105 = vmatprep.subr.mxu0 0.0
      %1106 = vmatpush1.msra.mxu0 0.0
      %1107 = vmatprep.subr.mxu0 0.0
      %1108 = vmatpush1.msra.mxu0 0.0
      %1109 = vmatprep.subr.mxu0 0.0
      %1110 = vmatpush1.msra.mxu0 0.0
      %1111 = vmatprep.subr.mxu0 0.0
      %1112 = vmatpush1.msra.mxu0 0.0
      %1113 = vmatprep.subr.mxu0 0.0
      %1114 = vmatpush1.msra.mxu0 0.0
      %1115 = vmatprep.subr.mxu0 0.0
      %1116 = vmatpush1.msra.mxu0 0.0
      %1117 = vmatprep.subr.mxu0 0.0
      %1118 = vmatpush1.msra.mxu0 0.0
      %1119 = vmatprep.subr.mxu0 0.0
      %1120 = vmatpush1.msra.mxu0 0.0
      %1121 = vmatprep.subr.mxu0 0.0
      %1122 = vmatpush1.msra.mxu0 0.0
      %1123 = vmatprep.subr.mxu0 0.0
      %1124 = vmatpush1.msra.mxu0 0.0
      %1125 = vmatprep.mubr.f32.mxu0 0.0
      %1126 = vmatmul.mubr.f32.gmra.mrb[0].mxu0 %v1038
      %v1127 = vpop.f32.mrb[0].mxu0
      %v1128 = vadd.f32 0.0, %v1127
      %v1129 = vpop.f32.mrb[0].mxu0
      %1130 = vmatprep.mubr.f32.mxu0 0.0
      %1131 = vmatmul.mubr.f32.gmra.mrb[0].mxu0 %v1041
      %v1132 = vpop.f32.mrb[0].mxu0
      %v1133 = vadd.f32 0.0, %v1132
      %v1134 = vpop.f32.mrb[0].mxu0
      %1135 = vmatprep.mubr.f32.mxu0 0.0
      %1136 = vmatmul.mubr.f32.gmra.mrb[0].mxu0 %v1044
      %v1137 = vpop.f32.mrb[0].mxu0
      %v1138 = vadd.f32 0.0, %v1137
      %v1139 = vpop.f32.mrb[0].mxu0
      %1140 = vmatprep.mubr.f32.mxu0 0.0
      %1141 = vmatmul.mubr.f32.gmra.mrb[0].mxu0 %v1047
      %v1142 = vpop.f32.mrb[0].mxu0
      %v1143 = vadd.f32 0.0, %v1142
      %v1144 = vpop.f32.mrb[0].mxu0
      %1145 = vmatprep.mubr.f32.mxu0 0.0
      %1146 = vmatmul.mubr.f32.gmra.mrb[0].mxu0 %v1050
      %v1147 = vpop.f32.mrb[0].mxu0
      %v1148 = vadd.f32 0.0, %v1147
      %v1149 = vpop.f32.mrb[0].mxu0
      %1150 = vmatprep.mubr.f32.mxu0 0.0
      %1151 = vmatmul.mubr.f32.gmra.mrb[0].mxu0 %v1053
      %v1152 = vpop.f32.mrb[0].mxu0
      %v1153 = vadd.f32 0.0, %v1152
      %v1154 = vpop.f32.mrb[0].mxu0
      %1155 = vmatprep.mubr.f32.mxu0 0.0
      %1156 = vmatmul.mubr.f32.gmra.mrb[0].mxu0 %v1056
      %v1157 = vpop.f32.mrb[0].mxu0
      %v1158 = vadd.f32 0.0, %v1157
      %v1159 = vpop.f32.mrb[0].mxu0
      %1160 = vmatprep.mubr.f32.mxu0 0.0
      %1161 = vmatmul.mubr.f32.gmra.mrb[0].mxu0 %v1059
      %v1162 = vpop.f32.mrb[0].mxu0
      %v1163 = vadd.f32 0.0, %v1162
      %v1164 = vpop.f32.mrb[0].mxu0
      %1165 = vdwg.mxu0
      %1166 = vrot.lane.b32.xlu0 %v443, 124
      %v1167 = vpop.permute.xlu0 %1166
      %1168 = vrot.lane.b32.xlu0 %v448, 124
      %v1169 = vpop.permute.xlu0 %1168
      %1170 = vrot.lane.b32.xlu0 %v453, 124
      %v1171 = vpop.permute.xlu0 %1170
      %1172 = vrot.lane.b32.xlu0 %v458, 124
      %v1173 = vpop.permute.xlu0 %1172
      %1174 = vrot.lane.b32.xlu0 %v463, 124
      %v1175 = vpop.permute.xlu0 %1174
      %1176 = vrot.lane.b32.xlu0 %v468, 124
      %v1177 = vpop.permute.xlu0 %1176
      %1178 = vrot.lane.b32.xlu0 %v473, 124
      %v1179 = vpop.permute.xlu0 %1178
      %1180 = vrot.lane.b32.xlu0 %v478, 124
      %v1181 = vpop.permute.xlu0 %1180
      %1182 = vrot.lane.b32.xlu0 %v587, 124
      %v1183 = vpop.permute.xlu0 %1182
      %1184 = vrot.lane.b32.xlu0 %v592, 124
      %v1185 = vpop.permute.xlu0 %1184
      %1186 = vrot.lane.b32.xlu0 %v597, 124
      %v1187 = vpop.permute.xlu0 %1186
      %1188 = vrot.lane.b32.xlu0 %v602, 124
      %v1189 = vpop.permute.xlu0 %1188
      %1190 = vrot.lane.b32.xlu0 %v607, 124
      %v1191 = vpop.permute.xlu0 %1190
      %1192 = vrot.lane.b32.xlu0 %v612, 124
      %v1193 = vpop.permute.xlu0 %1192
      %1194 = vrot.lane.b32.xlu0 %v617, 124
      %v1195 = vpop.permute.xlu0 %1194
      %1196 = vrot.lane.b32.xlu0 %v622, 124
      %v1197 = vpop.permute.xlu0 %1196
      %v1198 = vsel %vm786, %v1167, 0
      %v1200 = vsel %vm786, %v1169, 0
      %v1202 = vsel %vm786, %v1171, 0
      %v1204 = vsel %vm786, %v1173, 0
      %v1206 = vsel %vm786, %v1175, 0
      %v1208 = vsel %vm786, %v1177, 0
      %v1210 = vsel %vm786, %v1179, 0
      %v1212 = vsel %vm786, %v1181, 0
      %v1214 = vsel %vm786, %v1183, 0
      %v1216 = vsel %vm786, %v1185, 0
      %v1218 = vsel %vm786, %v1187, 0
      %v1220 = vsel %vm786, %v1189, 0
      %v1222 = vsel %vm786, %v1191, 0
      %v1224 = vsel %vm786, %v1193, 0
      %v1226 = vsel %vm786, %v1195, 0
      %v1228 = vsel %vm786, %v1197, 0
      %1230 = vmatprep.subr.mxu0 0.0
      %1231 = vmatpush1.xpose.msra.mxu0 %v1214
      %1232 = vmatprep.subr.mxu0 0.0
      %1233 = vmatpush1.xpose.msra.mxu0 %v1216
      %1234 = vmatprep.subr.mxu0 0.0
      %1235 = vmatpush1.xpose.msra.mxu0 %v1218
      %1236 = vmatprep.subr.mxu0 0.0
      %1237 = vmatpush1.xpose.msra.mxu0 %v1220
      %1238 = vmatprep.subr.mxu0 0.0
      %1239 = vmatpush1.xpose.msra.mxu0 %v1222
      %1240 = vmatprep.subr.mxu0 0.0
      %1241 = vmatpush1.xpose.msra.mxu0 %v1224
      %1242 = vmatprep.subr.mxu0 0.0
      %1243 = vmatpush1.xpose.msra.mxu0 %v1226
      %1244 = vmatprep.subr.mxu0 0.0
      %1245 = vmatpush1.xpose.msra.mxu0 %v1228
      %1246 = vmatprep.subr.mxu0 0.0
      %1247 = vmatpush1.xpose.msra.mxu0 0.0
      %1248 = vmatprep.subr.mxu0 0.0
      %1249 = vmatpush1.xpose.msra.mxu0 0.0
      %1250 = vmatprep.subr.mxu0 0.0
      %1251 = vmatpush1.xpose.msra.mxu0 0.0
      %1252 = vmatprep.subr.mxu0 0.0
      %1253 = vmatpush1.xpose.msra.mxu0 0.0
      %1254 = vmatprep.subr.mxu0 0.0
      %1255 = vmatpush1.xpose.msra.mxu0 0.0
      %1256 = vmatprep.subr.mxu0 0.0
      %1257 = vmatpush1.xpose.msra.mxu0 0.0
      %1258 = vmatprep.subr.mxu0 0.0
      %1259 = vmatpush1.xpose.msra.mxu0 0.0
      %1260 = vmatprep.subr.mxu0 0.0
      %1261 = vmatpush1.xpose.msra.mxu0 0.0
      %1262 = vmatprep.subr.mxu0 0.0
      %1263 = vmatpush1.xpose.msra.mxu0 0.0
      %1264 = vmatprep.subr.mxu0 0.0
      %1265 = vmatpush1.xpose.msra.mxu0 0.0
      %1266 = vmatprep.subr.mxu0 0.0
      %1267 = vmatpush1.xpose.msra.mxu0 0.0
      %1268 = vmatprep.subr.mxu0 0.0
      %1269 = vmatpush1.xpose.msra.mxu0 0.0
      %1270 = vmatprep.subr.mxu0 0.0
      %1271 = vmatpush1.xpose.msra.mxu0 0.0
      %1272 = vmatprep.subr.mxu0 0.0
      %1273 = vmatpush1.xpose.msra.mxu0 0.0
      %1274 = vmatprep.subr.mxu0 0.0
      %1275 = vmatpush1.xpose.msra.mxu0 0.0
      %1276 = vmatprep.subr.mxu0 0.0
      %1277 = vmatpush1.xpose.msra.mxu0 0.0
      %1278 = vmatprep.subr.mxu0 0.0
      %1279 = vmatpush1.xpose.msra.mxu0 0.0
      %1280 = vmatprep.subr.mxu0 0.0
      %1281 = vmatpush1.xpose.msra.mxu0 0.0
      %1282 = vmatprep.subr.mxu0 0.0
      %1283 = vmatpush1.xpose.msra.mxu0 0.0
      %1284 = vmatprep.subr.mxu0 0.0
      %1285 = vmatpush1.xpose.msra.mxu0 0.0
      %1286 = vmatprep.subr.mxu0 0.0
      %1287 = vmatpush1.xpose.msra.mxu0 0.0
      %1288 = vmatprep.subr.mxu0 0.0
      %1289 = vmatpush1.xpose.msra.mxu0 0.0
      %1290 = vmatprep.subr.mxu0 0.0
      %1291 = vmatpush1.xpose.msra.mxu0 0.0
      %1292 = vmatprep.subr.mxu0 0.0
      %1293 = vmatpush1.xpose.msra.mxu0 0.0
      %1294 = vmatprep.mubr.f32.mxu0 0.0
      %1295 = vmatmul.mubr.f32.gmra.mrb[0].mxu0 %v1198
      %v1296 = vpop.f32.mrb[0].mxu0
      %v1297 = vadd.f32 0.0, %v1296
      %v1298 = vpop.f32.mrb[0].mxu0
      %1299 = vmatprep.mubr.f32.mxu0 0.0
      %1300 = vmatmul.mubr.f32.gmra.mrb[0].mxu0 %v1200
      %v1301 = vpop.f32.mrb[0].mxu0
      %v1302 = vadd.f32 0.0, %v1301
      %v1303 = vpop.f32.mrb[0].mxu0
      %1304 = vmatprep.mubr.f32.mxu0 0.0
      %1305 = vmatmul.mubr.f32.gmra.mrb[0].mxu0 %v1202
      %v1306 = vpop.f32.mrb[0].mxu0
      %v1307 = vadd.f32 0.0, %v1306
      %v1308 = vpop.f32.mrb[0].mxu0
      %1309 = vmatprep.mubr.f32.mxu0 0.0
      %1310 = vmatmul.mubr.f32.gmra.mrb[0].mxu0 %v1204
      %v1311 = vpop.f32.mrb[0].mxu0
      %v1312 = vadd.f32 0.0, %v1311
      %v1313 = vpop.f32.mrb[0].mxu0
      %1314 = vmatprep.mubr.f32.mxu0 0.0
      %1315 = vmatmul.mubr.f32.gmra.mrb[0].mxu0 %v1206
      %v1316 = vpop.f32.mrb[0].mxu0
      %v1317 = vadd.f32 0.0, %v1316
      %v1318 = vpop.f32.mrb[0].mxu0
      %1319 = vmatprep.mubr.f32.mxu0 0.0
      %1320 = vmatmul.mubr.f32.gmra.mrb[0].mxu0 %v1208
      %v1321 = vpop.f32.mrb[0].mxu0
      %v1322 = vadd.f32 0.0, %v1321
      %v1323 = vpop.f32.mrb[0].mxu0
      %1324 = vmatprep.mubr.f32.mxu0 0.0
      %1325 = vmatmul.mubr.f32.gmra.mrb[0].mxu0 %v1210
      %v1326 = vpop.f32.mrb[0].mxu0
      %v1327 = vadd.f32 0.0, %v1326
      %v1328 = vpop.f32.mrb[0].mxu0
      %1329 = vmatprep.mubr.f32.mxu0 0.0
      %1330 = vmatmul.mubr.f32.gmra.mrb[0].mxu0 %v1212
      %v1331 = vpop.f32.mrb[0].mxu0
      %v1332 = vadd.f32 0.0, %v1331
      %v1333 = vpop.f32.mrb[0].mxu0
      %1334 = vdwg.mxu0
      %v1335 = vsel %vm754, %v1297, -10000.0
      %v1336 = vsel %vm755, %v1302, -10000.0
      %v1337 = vsel %vm756, %v1307, -10000.0
      %v1338 = vsel %vm757, %v1312, -10000.0
      %v1339 = vsel %vm758, %v1317, -10000.0
      %v1340 = vsel %vm759, %v1322, -10000.0
      %v1341 = vsel %vm760, %v1327, -10000.0
      %v1342 = vsel %vm761, %v1332, -10000.0
      %v1343 = vsel %vm948, %v1335, -inf
      %1344 = vmax.xlane.f32.xlu0 %v1343
      %v1345 = vpop.xlane.xlu0 %1344
      %v1346 = vsel %vm948, %v1336, -inf
      %1347 = vmax.xlane.f32.xlu0 %v1346
      %v1348 = vpop.xlane.xlu0 %1347
      %v1349 = vsel %vm948, %v1337, -inf
      %1350 = vmax.xlane.f32.xlu0 %v1349
      %v1351 = vpop.xlane.xlu0 %1350
      %v1352 = vsel %vm948, %v1338, -inf
      %1353 = vmax.xlane.f32.xlu0 %v1352
      %v1354 = vpop.xlane.xlu0 %1353
      %v1355 = vsel %vm948, %v1339, -inf
      %1356 = vmax.xlane.f32.xlu0 %v1355
      %v1357 = vpop.xlane.xlu0 %1356
      %v1358 = vsel %vm948, %v1340, -inf
      %1359 = vmax.xlane.f32.xlu0 %v1358
      %v1360 = vpop.xlane.xlu0 %1359
      %v1361 = vsel %vm948, %v1341, -inf
      %1362 = vmax.xlane.f32.xlu0 %v1361
      %v1363 = vpop.xlane.xlu0 %1362
      %v1364 = vsel %vm948, %v1342, -inf
      %1365 = vmax.xlane.f32.xlu0 %v1364
      %v1366 = vpop.xlane.xlu0 %1365
      %v1367 = vsub.f32 %v1335, %v1345
      %v1368 = vsub.f32 %v1336, %v1348
      %v1369 = vsub.f32 %v1337, %v1351
      %v1370 = vsub.f32 %v1338, %v1354
      %v1371 = vsub.f32 %v1339, %v1357
      %v1372 = vsub.f32 %v1340, %v1360
      %v1373 = vsub.f32 %v1341, %v1363
      %v1374 = vsub.f32 %v1342, %v1366
      %v1375 = vmul.f32 %v1367, 1.442695
      %v1376 = vpow.pop %v1375
      %v1377 = vmul.f32 %v1368, 1.442695
      %v1378 = vpow.pop %v1377
      %v1379 = vmul.f32 %v1369, 1.442695
      %v1380 = vpow.pop %v1379
      %v1381 = vmul.f32 %v1370, 1.442695
      %v1382 = vpow.pop %v1381
      %v1383 = vmul.f32 %v1371, 1.442695
      %v1384 = vpow.pop %v1383
      %v1385 = vmul.f32 %v1372, 1.442695
      %v1386 = vpow.pop %v1385
      %v1387 = vmul.f32 %v1373, 1.442695
      %v1388 = vpow.pop %v1387
      %v1389 = vmul.f32 %v1374, 1.442695
      %v1390 = vpow.pop %v1389
      %v1391 = vsel %vm948, %v1376, 0.0
      %1392 = vadd.xlane.f32.xlu0 %v1391
      %v1393 = vpop.xlane.xlu0 %1392
      %v1394 = vsel %vm948, %v1378, 0.0
      %1395 = vadd.xlane.f32.xlu0 %v1394
      %v1396 = vpop.xlane.xlu0 %1395
      %v1397 = vsel %vm948, %v1380, 0.0
      %1398 = vadd.xlane.f32.xlu0 %v1397
      %v1399 = vpop.xlane.xlu0 %1398
      %v1400 = vsel %vm948, %v1382, 0.0
      %1401 = vadd.xlane.f32.xlu0 %v1400
      %v1402 = vpop.xlane.xlu0 %1401
      %v1403 = vsel %vm948, %v1384, 0.0
      %1404 = vadd.xlane.f32.xlu0 %v1403
      %v1405 = vpop.xlane.xlu0 %1404
      %v1406 = vsel %vm948, %v1386, 0.0
      %1407 = vadd.xlane.f32.xlu0 %v1406
      %v1408 = vpop.xlane.xlu0 %1407
      %v1409 = vsel %vm948, %v1388, 0.0
      %1410 = vadd.xlane.f32.xlu0 %v1409
      %v1411 = vpop.xlane.xlu0 %1410
      %v1412 = vsel %vm948, %v1390, 0.0
      %1413 = vadd.xlane.f32.xlu0 %v1412
      %v1414 = vpop.xlane.xlu0 %1413
      %v1415 = vrcp.pop %v1393
      %v1416 = vrcp.pop %v1396
      %v1417 = vrcp.pop %v1399
      %v1418 = vrcp.pop %v1402
      %v1419 = vrcp.pop %v1405
      %v1420 = vrcp.pop %v1408
      %v1421 = vrcp.pop %v1411
      %v1422 = vrcp.pop %v1414
      %v1423 = vmul.f32 %v1376, %v1415
      %v1424 = vmul.f32 %v1378, %v1416
      %v1425 = vmul.f32 %v1380, %v1417
      %v1426 = vmul.f32 %v1382, %v1418
      %v1427 = vmul.f32 %v1384, %v1419
      %v1428 = vmul.f32 %v1386, %v1420
      %v1429 = vmul.f32 %v1388, %v1421
      %v1430 = vmul.f32 %v1390, %v1422
      %1439 = vrot.lane.b32.xlu0 %v705, 124
      %v1440 = vpop.permute.xlu0 %1439
      %1441 = vrot.lane.b32.xlu0 %v710, 124
      %v1442 = vpop.permute.xlu0 %1441
      %1443 = vrot.lane.b32.xlu0 %v715, 124
      %v1444 = vpop.permute.xlu0 %1443
      %1445 = vrot.lane.b32.xlu0 %v720, 124
      %v1446 = vpop.permute.xlu0 %1445
      %1447 = vrot.lane.b32.xlu0 %v725, 124
      %v1448 = vpop.permute.xlu0 %1447
      %1449 = vrot.lane.b32.xlu0 %v730, 124
      %v1450 = vpop.permute.xlu0 %1449
      %1451 = vrot.lane.b32.xlu0 %v735, 124
      %v1452 = vpop.permute.xlu0 %1451
      %1453 = vrot.lane.b32.xlu0 %v740, 124
      %v1454 = vpop.permute.xlu0 %1453
      %v1464 = vsel %vm948, %v1423, 0
      %v1467 = vsel %vm948, %v1424, 0
      %v1470 = vsel %vm948, %v1425, 0
      %v1473 = vsel %vm948, %v1426, 0
      %v1476 = vsel %vm948, %v1427, 0
      %v1479 = vsel %vm948, %v1428, 0
      %v1482 = vsel %vm948, %v1429, 0
      %v1485 = vsel %vm948, %v1430, 0
      %1487 = vmatprep.subr.mxu0 0.0
      %1488 = vmatpush1.msra.mxu0 %v1440
      %1489 = vmatprep.subr.mxu0 0.0
      %1490 = vmatpush1.msra.mxu0 %v1442
      %1491 = vmatprep.subr.mxu0 0.0
      %1492 = vmatpush1.msra.mxu0 %v1444
      %1493 = vmatprep.subr.mxu0 0.0
      %1494 = vmatpush1.msra.mxu0 %v1446
      %1495 = vmatprep.subr.mxu0 0.0
      %1496 = vmatpush1.msra.mxu0 %v1448
      %1497 = vmatprep.subr.mxu0 0.0
      %1498 = vmatpush1.msra.mxu0 %v1450
      %1499 = vmatprep.subr.mxu0 0.0
      %1500 = vmatpush1.msra.mxu0 %v1452
      %1501 = vmatprep.subr.mxu0 0.0
      %1502 = vmatpush1.msra.mxu0 %v1454
      %1503 = vmatprep.subr.mxu0 0.0
      %1504 = vmatpush1.msra.mxu0 0.0
      %1505 = vmatprep.subr.mxu0 0.0
      %1506 = vmatpush1.msra.mxu0 0.0
      %1507 = vmatprep.subr.mxu0 0.0
      %1508 = vmatpush1.msra.mxu0 0.0
      %1509 = vmatprep.subr.mxu0 0.0
      %1510 = vmatpush1.msra.mxu0 0.0
      %1511 = vmatprep.subr.mxu0 0.0
      %1512 = vmatpush1.msra.mxu0 0.0
      %1513 = vmatprep.subr.mxu0 0.0
      %1514 = vmatpush1.msra.mxu0 0.0
      %1515 = vmatprep.subr.mxu0 0.0
      %1516 = vmatpush1.msra.mxu0 0.0
      %1517 = vmatprep.subr.mxu0 0.0
      %1518 = vmatpush1.msra.mxu0 0.0
      %1519 = vmatprep.subr.mxu0 0.0
      %1520 = vmatpush1.msra.mxu0 0.0
      %1521 = vmatprep.subr.mxu0 0.0
      %1522 = vmatpush1.msra.mxu0 0.0
      %1523 = vmatprep.subr.mxu0 0.0
      %1524 = vmatpush1.msra.mxu0 0.0
      %1525 = vmatprep.subr.mxu0 0.0
      %1526 = vmatpush1.msra.mxu0 0.0
      %1527 = vmatprep.subr.mxu0 0.0
      %1528 = vmatpush1.msra.mxu0 0.0
      %1529 = vmatprep.subr.mxu0 0.0
      %1530 = vmatpush1.msra.mxu0 0.0
      %1531 = vmatprep.subr.mxu0 0.0
      %1532 = vmatpush1.msra.mxu0 0.0
      %1533 = vmatprep.subr.mxu0 0.0
      %1534 = vmatpush1.msra.mxu0 0.0
      %1535 = vmatprep.subr.mxu0 0.0
      %1536 = vmatpush1.msra.mxu0 0.0
      %1537 = vmatprep.subr.mxu0 0.0
      %1538 = vmatpush1.msra.mxu0 0.0
      %1539 = vmatprep.subr.mxu0 0.0
      %1540 = vmatpush1.msra.mxu0 0.0
      %1541 = vmatprep.subr.mxu0 0.0
      %1542 = vmatpush1.msra.mxu0 0.0
      %1543 = vmatprep.subr.mxu0 0.0
      %1544 = vmatpush1.msra.mxu0 0.0
      %1545 = vmatprep.subr.mxu0 0.0
      %1546 = vmatpush1.msra.mxu0 0.0
      %1547 = vmatprep.subr.mxu0 0.0
      %1548 = vmatpush1.msra.mxu0 0.0
      %1549 = vmatprep.subr.mxu0 0.0
      %1550 = vmatpush1.msra.mxu0 0.0
      %1551 = vmatprep.mubr.f32.mxu0 0.0
      %1552 = vmatmul.mubr.f32.gmra.mrb[0].mxu0 %v1464
      %v1553 = vpop.f32.mrb[0].mxu0
      %v1554 = vadd.f32 0.0, %v1553
      %v1555 = vpop.f32.mrb[0].mxu0
      %1556 = vmatprep.mubr.f32.mxu0 0.0
      %1557 = vmatmul.mubr.f32.gmra.mrb[0].mxu0 %v1467
      %v1558 = vpop.f32.mrb[0].mxu0
      %v1559 = vadd.f32 0.0, %v1558
      %v1560 = vpop.f32.mrb[0].mxu0
      %1561 = vmatprep.mubr.f32.mxu0 0.0
      %1562 = vmatmul.mubr.f32.gmra.mrb[0].mxu0 %v1470
      %v1563 = vpop.f32.mrb[0].mxu0
      %v1564 = vadd.f32 0.0, %v1563
      %v1565 = vpop.f32.mrb[0].mxu0
      %1566 = vmatprep.mubr.f32.mxu0 0.0
      %1567 = vmatmul.mubr.f32.gmra.mrb[0].mxu0 %v1473
      %v1568 = vpop.f32.mrb[0].mxu0
      %v1569 = vadd.f32 0.0, %v1568
      %v1570 = vpop.f32.mrb[0].mxu0
      %1571 = vmatprep.mubr.f32.mxu0 0.0
      %1572 = vmatmul.mubr.f32.gmra.mrb[0].mxu0 %v1476
      %v1573 = vpop.f32.mrb[0].mxu0
      %v1574 = vadd.f32 0.0, %v1573
      %v1575 = vpop.f32.mrb[0].mxu0
      %1576 = vmatprep.mubr.f32.mxu0 0.0
      %1577 = vmatmul.mubr.f32.gmra.mrb[0].mxu0 %v1479
      %v1578 = vpop.f32.mrb[0].mxu0
      %v1579 = vadd.f32 0.0, %v1578
      %v1580 = vpop.f32.mrb[0].mxu0
      %1581 = vmatprep.mubr.f32.mxu0 0.0
      %1582 = vmatmul.mubr.f32.gmra.mrb[0].mxu0 %v1482
      %v1583 = vpop.f32.mrb[0].mxu0
      %v1584 = vadd.f32 0.0, %v1583
      %v1585 = vpop.f32.mrb[0].mxu0
      %1586 = vmatprep.mubr.f32.mxu0 0.0
      %1587 = vmatmul.mubr.f32.gmra.mrb[0].mxu0 %v1485
      %v1588 = vpop.f32.mrb[0].mxu0
      %v1589 = vadd.f32 0.0, %v1588
      %v1590 = vpop.f32.mrb[0].mxu0
      %1591 = vdwg.mxu0
      %1592 = vrot.lane.b32.xlu0 %v443, 120
      %v1593 = vpop.permute.xlu0 %1592
      %1594 = vrot.lane.b32.xlu0 %v448, 120
      %v1595 = vpop.permute.xlu0 %1594
      %1596 = vrot.lane.b32.xlu0 %v453, 120
      %v1597 = vpop.permute.xlu0 %1596
      %1598 = vrot.lane.b32.xlu0 %v458, 120
      %v1599 = vpop.permute.xlu0 %1598
      %1600 = vrot.lane.b32.xlu0 %v463, 120
      %v1601 = vpop.permute.xlu0 %1600
      %1602 = vrot.lane.b32.xlu0 %v468, 120
      %v1603 = vpop.permute.xlu0 %1602
      %1604 = vrot.lane.b32.xlu0 %v473, 120
      %v1605 = vpop.permute.xlu0 %1604
      %1606 = vrot.lane.b32.xlu0 %v478, 120
      %v1607 = vpop.permute.xlu0 %1606
      %1608 = vrot.lane.b32.xlu0 %v587, 120
      %v1609 = vpop.permute.xlu0 %1608
      %1610 = vrot.lane.b32.xlu0 %v592, 120
      %v1611 = vpop.permute.xlu0 %1610
      %1612 = vrot.lane.b32.xlu0 %v597, 120
      %v1613 = vpop.permute.xlu0 %1612
      %1614 = vrot.lane.b32.xlu0 %v602, 120
      %v1615 = vpop.permute.xlu0 %1614
      %1616 = vrot.lane.b32.xlu0 %v607, 120
      %v1617 = vpop.permute.xlu0 %1616
      %1618 = vrot.lane.b32.xlu0 %v612, 120
      %v1619 = vpop.permute.xlu0 %1618
      %1620 = vrot.lane.b32.xlu0 %v617, 120
      %v1621 = vpop.permute.xlu0 %1620
      %1622 = vrot.lane.b32.xlu0 %v622, 120
      %v1623 = vpop.permute.xlu0 %1622
      %v1624 = vsel %vm786, %v1593, 0
      %v1626 = vsel %vm786, %v1595, 0
      %v1628 = vsel %vm786, %v1597, 0
      %v1630 = vsel %vm786, %v1599, 0
      %v1632 = vsel %vm786, %v1601, 0
      %v1634 = vsel %vm786, %v1603, 0
      %v1636 = vsel %vm786, %v1605, 0
      %v1638 = vsel %vm786, %v1607, 0
      %v1640 = vsel %vm786, %v1609, 0
      %v1642 = vsel %vm786, %v1611, 0
      %v1644 = vsel %vm786, %v1613, 0
      %v1646 = vsel %vm786, %v1615, 0
      %v1648 = vsel %vm786, %v1617, 0
      %v1650 = vsel %vm786, %v1619, 0
      %v1652 = vsel %vm786, %v1621, 0
      %v1654 = vsel %vm786, %v1623, 0
      %1656 = vmatprep.subr.mxu0 0.0
      %1657 = vmatpush1.xpose.msra.mxu0 %v1640
      %1658 = vmatprep.subr.mxu0 0.0
      %1659 = vmatpush1.xpose.msra.mxu0 %v1642
      %1660 = vmatprep.subr.mxu0 0.0
      %1661 = vmatpush1.xpose.msra.mxu0 %v1644
      %1662 = vmatprep.subr.mxu0 0.0
      %1663 = vmatpush1.xpose.msra.mxu0 %v1646
      %1664 = vmatprep.subr.mxu0 0.0
      %1665 = vmatpush1.xpose.msra.mxu0 %v1648
      %1666 = vmatprep.subr.mxu0 0.0
      %1667 = vmatpush1.xpose.msra.mxu0 %v1650
      %1668 = vmatprep.subr.mxu0 0.0
      %1669 = vmatpush1.xpose.msra.mxu0 %v1652
      %1670 = vmatprep.subr.mxu0 0.0
      %1671 = vmatpush1.xpose.msra.mxu0 %v1654
      %1672 = vmatprep.subr.mxu0 0.0
      %1673 = vmatpush1.xpose.msra.mxu0 0.0
      %1674 = vmatprep.subr.mxu0 0.0
      %1675 = vmatpush1.xpose.msra.mxu0 0.0
      %1676 = vmatprep.subr.mxu0 0.0
      %1677 = vmatpush1.xpose.msra.mxu0 0.0
      %1678 = vmatprep.subr.mxu0 0.0
      %1679 = vmatpush1.xpose.msra.mxu0 0.0
      %1680 = vmatprep.subr.mxu0 0.0
      %1681 = vmatpush1.xpose.msra.mxu0 0.0
      %1682 = vmatprep.subr.mxu0 0.0
      %1683 = vmatpush1.xpose.msra.mxu0 0.0
      %1684 = vmatprep.subr.mxu0 0.0
      %1685 = vmatpush1.xpose.msra.mxu0 0.0
      %1686 = vmatprep.subr.mxu0 0.0
      %1687 = vmatpush1.xpose.msra.mxu0 0.0
      %1688 = vmatprep.subr.mxu0 0.0
      %1689 = vmatpush1.xpose.msra.mxu0 0.0
      %1690 = vmatprep.subr.mxu0 0.0
      %1691 = vmatpush1.xpose.msra.mxu0 0.0
      %1692 = vmatprep.subr.mxu0 0.0
      %1693 = vmatpush1.xpose.msra.mxu0 0.0
      %1694 = vmatprep.subr.mxu0 0.0
      %1695 = vmatpush1.xpose.msra.mxu0 0.0
      %1696 = vmatprep.subr.mxu0 0.0
      %1697 = vmatpush1.xpose.msra.mxu0 0.0
      %1698 = vmatprep.subr.mxu0 0.0
      %1699 = vmatpush1.xpose.msra.mxu0 0.0
      %1700 = vmatprep.subr.mxu0 0.0
      %1701 = vmatpush1.xpose.msra.mxu0 0.0
      %1702 = vmatprep.subr.mxu0 0.0
      %1703 = vmatpush1.xpose.msra.mxu0 0.0
      %1704 = vmatprep.subr.mxu0 0.0
      %1705 = vmatpush1.xpose.msra.mxu0 0.0
      %1706 = vmatprep.subr.mxu0 0.0
      %1707 = vmatpush1.xpose.msra.mxu0 0.0
      %1708 = vmatprep.subr.mxu0 0.0
      %1709 = vmatpush1.xpose.msra.mxu0 0.0
      %1710 = vmatprep.subr.mxu0 0.0
      %1711 = vmatpush1.xpose.msra.mxu0 0.0
      %1712 = vmatprep.subr.mxu0 0.0
      %1713 = vmatpush1.xpose.msra.mxu0 0.0
      %1714 = vmatprep.subr.mxu0 0.0
      %1715 = vmatpush1.xpose.msra.mxu0 0.0
      %1716 = vmatprep.subr.mxu0 0.0
      %1717 = vmatpush1.xpose.msra.mxu0 0.0
      %1718 = vmatprep.subr.mxu0 0.0
      %1719 = vmatpush1.xpose.msra.mxu0 0.0
      %1720 = vmatprep.mubr.f32.mxu0 0.0
      %1721 = vmatmul.mubr.f32.gmra.mrb[0].mxu0 %v1624
      %v1722 = vpop.f32.mrb[0].mxu0
      %v1723 = vadd.f32 0.0, %v1722
      %v1724 = vpop.f32.mrb[0].mxu0
      %1725 = vmatprep.mubr.f32.mxu0 0.0
      %1726 = vmatmul.mubr.f32.gmra.mrb[0].mxu0 %v1626
      %v1727 = vpop.f32.mrb[0].mxu0
      %v1728 = vadd.f32 0.0, %v1727
      %v1729 = vpop.f32.mrb[0].mxu0
      %1730 = vmatprep.mubr.f32.mxu0 0.0
      %1731 = vmatmul.mubr.f32.gmra.mrb[0].mxu0 %v1628
      %v1732 = vpop.f32.mrb[0].mxu0
      %v1733 = vadd.f32 0.0, %v1732
      %v1734 = vpop.f32.mrb[0].mxu0
      %1735 = vmatprep.mubr.f32.mxu0 0.0
      %1736 = vmatmul.mubr.f32.gmra.mrb[0].mxu0 %v1630
      %v1737 = vpop.f32.mrb[0].mxu0
      %v1738 = vadd.f32 0.0, %v1737
      %v1739 = vpop.f32.mrb[0].mxu0
      %1740 = vmatprep.mubr.f32.mxu0 0.0
      %1741 = vmatmul.mubr.f32.gmra.mrb[0].mxu0 %v1632
      %v1742 = vpop.f32.mrb[0].mxu0
      %v1743 = vadd.f32 0.0, %v1742
      %v1744 = vpop.f32.mrb[0].mxu0
      %1745 = vmatprep.mubr.f32.mxu0 0.0
      %1746 = vmatmul.mubr.f32.gmra.mrb[0].mxu0 %v1634
      %v1747 = vpop.f32.mrb[0].mxu0
      %v1748 = vadd.f32 0.0, %v1747
      %v1749 = vpop.f32.mrb[0].mxu0
      %1750 = vmatprep.mubr.f32.mxu0 0.0
      %1751 = vmatmul.mubr.f32.gmra.mrb[0].mxu0 %v1636
      %v1752 = vpop.f32.mrb[0].mxu0
      %v1753 = vadd.f32 0.0, %v1752
      %v1754 = vpop.f32.mrb[0].mxu0
      %1755 = vmatprep.mubr.f32.mxu0 0.0
      %1756 = vmatmul.mubr.f32.gmra.mrb[0].mxu0 %v1638
      %v1757 = vpop.f32.mrb[0].mxu0
      %v1758 = vadd.f32 0.0, %v1757
      %v1759 = vpop.f32.mrb[0].mxu0
      %1760 = vdwg.mxu0
      %v1761 = vsel %vm754, %v1723, -10000.0
      %v1762 = vsel %vm755, %v1728, -10000.0
      %v1763 = vsel %vm756, %v1733, -10000.0
      %v1764 = vsel %vm757, %v1738, -10000.0
      %v1765 = vsel %vm758, %v1743, -10000.0
      %v1766 = vsel %vm759, %v1748, -10000.0
      %v1767 = vsel %vm760, %v1753, -10000.0
      %v1768 = vsel %vm761, %v1758, -10000.0
      %v1769 = vsel %vm948, %v1761, -inf
      %1770 = vmax.xlane.f32.xlu0 %v1769
      %v1771 = vpop.xlane.xlu0 %1770
      %v1772 = vsel %vm948, %v1762, -inf
      %1773 = vmax.xlane.f32.xlu0 %v1772
      %v1774 = vpop.xlane.xlu0 %1773
      %v1775 = vsel %vm948, %v1763, -inf
      %1776 = vmax.xlane.f32.xlu0 %v1775
      %v1777 = vpop.xlane.xlu0 %1776
      %v1778 = vsel %vm948, %v1764, -inf
      %1779 = vmax.xlane.f32.xlu0 %v1778
      %v1780 = vpop.xlane.xlu0 %1779
      %v1781 = vsel %vm948, %v1765, -inf
      %1782 = vmax.xlane.f32.xlu0 %v1781
      %v1783 = vpop.xlane.xlu0 %1782
      %v1784 = vsel %vm948, %v1766, -inf
      %1785 = vmax.xlane.f32.xlu0 %v1784
      %v1786 = vpop.xlane.xlu0 %1785
      %v1787 = vsel %vm948, %v1767, -inf
      %1788 = vmax.xlane.f32.xlu0 %v1787
      %v1789 = vpop.xlane.xlu0 %1788
      %v1790 = vsel %vm948, %v1768, -inf
      %1791 = vmax.xlane.f32.xlu0 %v1790
      %v1792 = vpop.xlane.xlu0 %1791
      %v1793 = vsub.f32 %v1761, %v1771
      %v1794 = vsub.f32 %v1762, %v1774
      %v1795 = vsub.f32 %v1763, %v1777
      %v1796 = vsub.f32 %v1764, %v1780
      %v1797 = vsub.f32 %v1765, %v1783
      %v1798 = vsub.f32 %v1766, %v1786
      %v1799 = vsub.f32 %v1767, %v1789
      %v1800 = vsub.f32 %v1768, %v1792
      %v1801 = vmul.f32 %v1793, 1.442695
      %v1802 = vpow.pop %v1801
      %v1803 = vmul.f32 %v1794, 1.442695
      %v1804 = vpow.pop %v1803
      %v1805 = vmul.f32 %v1795, 1.442695
      %v1806 = vpow.pop %v1805
      %v1807 = vmul.f32 %v1796, 1.442695
      %v1808 = vpow.pop %v1807
      %v1809 = vmul.f32 %v1797, 1.442695
      %v1810 = vpow.pop %v1809
      %v1811 = vmul.f32 %v1798, 1.442695
      %v1812 = vpow.pop %v1811
      %v1813 = vmul.f32 %v1799, 1.442695
      %v1814 = vpow.pop %v1813
      %v1815 = vmul.f32 %v1800, 1.442695
      %v1816 = vpow.pop %v1815
      %v1817 = vsel %vm948, %v1802, 0.0
      %1818 = vadd.xlane.f32.xlu0 %v1817
      %v1819 = vpop.xlane.xlu0 %1818
      %v1820 = vsel %vm948, %v1804, 0.0
      %1821 = vadd.xlane.f32.xlu0 %v1820
      %v1822 = vpop.xlane.xlu0 %1821
      %v1823 = vsel %vm948, %v1806, 0.0
      %1824 = vadd.xlane.f32.xlu0 %v1823
      %v1825 = vpop.xlane.xlu0 %1824
      %v1826 = vsel %vm948, %v1808, 0.0
      %1827 = vadd.xlane.f32.xlu0 %v1826
      %v1828 = vpop.xlane.xlu0 %1827
      %v1829 = vsel %vm948, %v1810, 0.0
      %1830 = vadd.xlane.f32.xlu0 %v1829
      %v1831 = vpop.xlane.xlu0 %1830
      %v1832 = vsel %vm948, %v1812, 0.0
      %1833 = vadd.xlane.f32.xlu0 %v1832
      %v1834 = vpop.xlane.xlu0 %1833
      %v1835 = vsel %vm948, %v1814, 0.0
      %1836 = vadd.xlane.f32.xlu0 %v1835
      %v1837 = vpop.xlane.xlu0 %1836
      %v1838 = vsel %vm948, %v1816, 0.0
      %1839 = vadd.xlane.f32.xlu0 %v1838
      %v1840 = vpop.xlane.xlu0 %1839
      %v1841 = vrcp.pop %v1819
      %v1842 = vrcp.pop %v1822
      %v1843 = vrcp.pop %v1825
      %v1844 = vrcp.pop %v1828
      %v1845 = vrcp.pop %v1831
      %v1846 = vrcp.pop %v1834
      %v1847 = vrcp.pop %v1837
      %v1848 = vrcp.pop %v1840
      %v1849 = vmul.f32 %v1802, %v1841
      %v1850 = vmul.f32 %v1804, %v1842
      %v1851 = vmul.f32 %v1806, %v1843
      %v1852 = vmul.f32 %v1808, %v1844
      %v1853 = vmul.f32 %v1810, %v1845
      %v1854 = vmul.f32 %v1812, %v1846
      %v1855 = vmul.f32 %v1814, %v1847
      %v1856 = vmul.f32 %v1816, %v1848
      %1857 = vrot.lane.b32.xlu0 %v705, 120
      %v1858 = vpop.permute.xlu0 %1857
      %1859 = vrot.lane.b32.xlu0 %v710, 120
      %v1860 = vpop.permute.xlu0 %1859
      %1861 = vrot.lane.b32.xlu0 %v715, 120
      %v1862 = vpop.permute.xlu0 %1861
      %1863 = vrot.lane.b32.xlu0 %v720, 120
      %v1864 = vpop.permute.xlu0 %1863
      %1865 = vrot.lane.b32.xlu0 %v725, 120
      %v1866 = vpop.permute.xlu0 %1865
      %1867 = vrot.lane.b32.xlu0 %v730, 120
      %v1868 = vpop.permute.xlu0 %1867
      %1869 = vrot.lane.b32.xlu0 %v735, 120
      %v1870 = vpop.permute.xlu0 %1869
      %1871 = vrot.lane.b32.xlu0 %v740, 120
      %v1872 = vpop.permute.xlu0 %1871
      %v1882 = vsel %vm948, %v1849, 0
      %v1885 = vsel %vm948, %v1850, 0
      %v1888 = vsel %vm948, %v1851, 0
      %v1891 = vsel %vm948, %v1852, 0
      %v1894 = vsel %vm948, %v1853, 0
      %v1897 = vsel %vm948, %v1854, 0
      %v1900 = vsel %vm948, %v1855, 0
      %v1903 = vsel %vm948, %v1856, 0
      %1905 = vmatprep.subr.mxu0 0.0
      %1906 = vmatpush1.msra.mxu0 %v1858
      %1907 = vmatprep.subr.mxu0 0.0
      %1908 = vmatpush1.msra.mxu0 %v1860
      %1909 = vmatprep.subr.mxu0 0.0
      %1910 = vmatpush1.msra.mxu0 %v1862
      %1911 = vmatprep.subr.mxu0 0.0
      %1912 = vmatpush1.msra.mxu0 %v1864
      %1913 = vmatprep.subr.mxu0 0.0
      %1914 = vmatpush1.msra.mxu0 %v1866
      %1915 = vmatprep.subr.mxu0 0.0
      %1916 = vmatpush1.msra.mxu0 %v1868
      %1917 = vmatprep.subr.mxu0 0.0
      %1918 = vmatpush1.msra.mxu0 %v1870
      %1919 = vmatprep.subr.mxu0 0.0
      %1920 = vmatpush1.msra.mxu0 %v1872
      %1921 = vmatprep.subr.mxu0 0.0
      %1922 = vmatpush1.msra.mxu0 0.0
      %1923 = vmatprep.subr.mxu0 0.0
      %1924 = vmatpush1.msra.mxu0 0.0
      %1925 = vmatprep.subr.mxu0 0.0
      %1926 = vmatpush1.msra.mxu0 0.0
      %1927 = vmatprep.subr.mxu0 0.0
      %1928 = vmatpush1.msra.mxu0 0.0
      %1929 = vmatprep.subr.mxu0 0.0
      %1930 = vmatpush1.msra.mxu0 0.0
      %1931 = vmatprep.subr.mxu0 0.0
      %1932 = vmatpush1.msra.mxu0 0.0
      %1933 = vmatprep.subr.mxu0 0.0
      %1934 = vmatpush1.msra.mxu0 0.0
      %1935 = vmatprep.subr.mxu0 0.0
      %1936 = vmatpush1.msra.mxu0 0.0
      %1937 = vmatprep.subr.mxu0 0.0
      %1938 = vmatpush1.msra.mxu0 0.0
      %1939 = vmatprep.subr.mxu0 0.0
      %1940 = vmatpush1.msra.mxu0 0.0
      %1941 = vmatprep.subr.mxu0 0.0
      %1942 = vmatpush1.msra.mxu0 0.0
      %1943 = vmatprep.subr.mxu0 0.0
      %1944 = vmatpush1.msra.mxu0 0.0
      %1945 = vmatprep.subr.mxu0 0.0
      %1946 = vmatpush1.msra.mxu0 0.0
      %1947 = vmatprep.subr.mxu0 0.0
      %1948 = vmatpush1.msra.mxu0 0.0
      %1949 = vmatprep.subr.mxu0 0.0
      %1950 = vmatpush1.msra.mxu0 0.0
      %1951 = vmatprep.subr.mxu0 0.0
      %1952 = vmatpush1.msra.mxu0 0.0
      %1953 = vmatprep.subr.mxu0 0.0
      %1954 = vmatpush1.msra.mxu0 0.0
      %1955 = vmatprep.subr.mxu0 0.0
      %1956 = vmatpush1.msra.mxu0 0.0
      %1957 = vmatprep.subr.mxu0 0.0
      %1958 = vmatpush1.msra.mxu0 0.0
      %1959 = vmatprep.subr.mxu0 0.0
      %1960 = vmatpush1.msra.mxu0 0.0
      %1961 = vmatprep.subr.mxu0 0.0
      %1962 = vmatpush1.msra.mxu0 0.0
      %1963 = vmatprep.subr.mxu0 0.0
      %1964 = vmatpush1.msra.mxu0 0.0
      %1965 = vmatprep.subr.mxu0 0.0
      %1966 = vmatpush1.msra.mxu0 0.0
      %1967 = vmatprep.subr.mxu0 0.0
      %1968 = vmatpush1.msra.mxu0 0.0
      %1969 = vmatprep.mubr.f32.mxu0 0.0
      %1970 = vmatmul.mubr.f32.gmra.mrb[0].mxu0 %v1882
      %v1971 = vpop.f32.mrb[0].mxu0
      %v1972 = vadd.f32 0.0, %v1971
      %v1973 = vpop.f32.mrb[0].mxu0
      %1974 = vmatprep.mubr.f32.mxu0 0.0
      %1975 = vmatmul.mubr.f32.gmra.mrb[0].mxu0 %v1885
      %v1976 = vpop.f32.mrb[0].mxu0
      %v1977 = vadd.f32 0.0, %v1976
      %v1978 = vpop.f32.mrb[0].mxu0
      %1979 = vmatprep.mubr.f32.mxu0 0.0
      %1980 = vmatmul.mubr.f32.gmra.mrb[0].mxu0 %v1888
      %v1981 = vpop.f32.mrb[0].mxu0
      %v1982 = vadd.f32 0.0, %v1981
      %v1983 = vpop.f32.mrb[0].mxu0
      %1984 = vmatprep.mubr.f32.mxu0 0.0
      %1985 = vmatmul.mubr.f32.gmra.mrb[0].mxu0 %v1891
      %v1986 = vpop.f32.mrb[0].mxu0
      %v1987 = vadd.f32 0.0, %v1986
      %v1988 = vpop.f32.mrb[0].mxu0
      %1989 = vmatprep.mubr.f32.mxu0 0.0
      %1990 = vmatmul.mubr.f32.gmra.mrb[0].mxu0 %v1894
      %v1991 = vpop.f32.mrb[0].mxu0
      %v1992 = vadd.f32 0.0, %v1991
      %v1993 = vpop.f32.mrb[0].mxu0
      %1994 = vmatprep.mubr.f32.mxu0 0.0
      %1995 = vmatmul.mubr.f32.gmra.mrb[0].mxu0 %v1897
      %v1996 = vpop.f32.mrb[0].mxu0
      %v1997 = vadd.f32 0.0, %v1996
      %v1998 = vpop.f32.mrb[0].mxu0
      %1999 = vmatprep.mubr.f32.mxu0 0.0
      %2000 = vmatmul.mubr.f32.gmra.mrb[0].mxu0 %v1900
      %v2001 = vpop.f32.mrb[0].mxu0
      %v2002 = vadd.f32 0.0, %v2001
      %v2003 = vpop.f32.mrb[0].mxu0
      %2004 = vmatprep.mubr.f32.mxu0 0.0
      %2005 = vmatmul.mubr.f32.gmra.mrb[0].mxu0 %v1903
      %v2006 = vpop.f32.mrb[0].mxu0
      %v2007 = vadd.f32 0.0, %v2006
      %v2008 = vpop.f32.mrb[0].mxu0
      %2009 = vdwg.mxu0
      %2010 = vrot.lane.b32.xlu0 %v443, 116
      %v2011 = vpop.permute.xlu0 %2010
      %2012 = vrot.lane.b32.xlu0 %v448, 116
      %v2013 = vpop.permute.xlu0 %2012
      %2014 = vrot.lane.b32.xlu0 %v453, 116
      %v2015 = vpop.permute.xlu0 %2014
      %2016 = vrot.lane.b32.xlu0 %v458, 116
      %v2017 = vpop.permute.xlu0 %2016
      %2018 = vrot.lane.b32.xlu0 %v463, 116
      %v2019 = vpop.permute.xlu0 %2018
      %2020 = vrot.lane.b32.xlu0 %v468, 116
      %v2021 = vpop.permute.xlu0 %2020
      %2022 = vrot.lane.b32.xlu0 %v473, 116
      %v2023 = vpop.permute.xlu0 %2022
      %2024 = vrot.lane.b32.xlu0 %v478, 116
      %v2025 = vpop.permute.xlu0 %2024
      %2026 = vrot.lane.b32.xlu0 %v587, 116
      %v2027 = vpop.permute.xlu0 %2026
      %2028 = vrot.lane.b32.xlu0 %v592, 116
      %v2029 = vpop.permute.xlu0 %2028
      %2030 = vrot.lane.b32.xlu0 %v597, 116
      %v2031 = vpop.permute.xlu0 %2030
      %2032 = vrot.lane.b32.xlu0 %v602, 116
      %v2033 = vpop.permute.xlu0 %2032
      %2034 = vrot.lane.b32.xlu0 %v607, 116
      %v2035 = vpop.permute.xlu0 %2034
      %2036 = vrot.lane.b32.xlu0 %v612, 116
      %v2037 = vpop.permute.xlu0 %2036
      %2038 = vrot.lane.b32.xlu0 %v617, 116
      %v2039 = vpop.permute.xlu0 %2038
      %2040 = vrot.lane.b32.xlu0 %v622, 116
      %v2041 = vpop.permute.xlu0 %2040
      %v2042 = vsel %vm786, %v2011, 0
      %v2044 = vsel %vm786, %v2013, 0
      %v2046 = vsel %vm786, %v2015, 0
      %v2048 = vsel %vm786, %v2017, 0
      %v2050 = vsel %vm786, %v2019, 0
      %v2052 = vsel %vm786, %v2021, 0
      %v2054 = vsel %vm786, %v2023, 0
      %v2056 = vsel %vm786, %v2025, 0
      %v2058 = vsel %vm786, %v2027, 0
      %v2060 = vsel %vm786, %v2029, 0
      %v2062 = vsel %vm786, %v2031, 0
      %v2064 = vsel %vm786, %v2033, 0
      %v2066 = vsel %vm786, %v2035, 0
      %v2068 = vsel %vm786, %v2037, 0
      %v2070 = vsel %vm786, %v2039, 0
      %v2072 = vsel %vm786, %v2041, 0
      %2074 = vmatprep.subr.mxu0 0.0
      %2075 = vmatpush1.xpose.msra.mxu0 %v2058
      %2076 = vmatprep.subr.mxu0 0.0
      %2077 = vmatpush1.xpose.msra.mxu0 %v2060
      %2078 = vmatprep.subr.mxu0 0.0
      %2079 = vmatpush1.xpose.msra.mxu0 %v2062
      %2080 = vmatprep.subr.mxu0 0.0
      %2081 = vmatpush1.xpose.msra.mxu0 %v2064
      %2082 = vmatprep.subr.mxu0 0.0
      %2083 = vmatpush1.xpose.msra.mxu0 %v2066
      %2084 = vmatprep.subr.mxu0 0.0
      %2085 = vmatpush1.xpose.msra.mxu0 %v2068
      %2086 = vmatprep.subr.mxu0 0.0
      %2087 = vmatpush1.xpose.msra.mxu0 %v2070
      %2088 = vmatprep.subr.mxu0 0.0
      %2089 = vmatpush1.xpose.msra.mxu0 %v2072
      %2090 = vmatprep.subr.mxu0 0.0
      %2091 = vmatpush1.xpose.msra.mxu0 0.0
      %2092 = vmatprep.subr.mxu0 0.0
      %2093 = vmatpush1.xpose.msra.mxu0 0.0
      %2094 = vmatprep.subr.mxu0 0.0
      %2095 = vmatpush1.xpose.msra.mxu0 0.0
      %2096 = vmatprep.subr.mxu0 0.0
      %2097 = vmatpush1.xpose.msra.mxu0 0.0
      %2098 = vmatprep.subr.mxu0 0.0
      %2099 = vmatpush1.xpose.msra.mxu0 0.0
      %2100 = vmatprep.subr.mxu0 0.0
      %2101 = vmatpush1.xpose.msra.mxu0 0.0
      %2102 = vmatprep.subr.mxu0 0.0
      %2103 = vmatpush1.xpose.msra.mxu0 0.0
      %2104 = vmatprep.subr.mxu0 0.0
      %2105 = vmatpush1.xpose.msra.mxu0 0.0
      %2106 = vmatprep.subr.mxu0 0.0
      %2107 = vmatpush1.xpose.msra.mxu0 0.0
      %2108 = vmatprep.subr.mxu0 0.0
      %2109 = vmatpush1.xpose.msra.mxu0 0.0
      %2110 = vmatprep.subr.mxu0 0.0
      %2111 = vmatpush1.xpose.msra.mxu0 0.0
      %2112 = vmatprep.subr.mxu0 0.0
      %2113 = vmatpush1.xpose.msra.mxu0 0.0
      %2114 = vmatprep.subr.mxu0 0.0
      %2115 = vmatpush1.xpose.msra.mxu0 0.0
      %2116 = vmatprep.subr.mxu0 0.0
      %2117 = vmatpush1.xpose.msra.mxu0 0.0
      %2118 = vmatprep.subr.mxu0 0.0
      %2119 = vmatpush1.xpose.msra.mxu0 0.0
      %2120 = vmatprep.subr.mxu0 0.0
      %2121 = vmatpush1.xpose.msra.mxu0 0.0
      %2122 = vmatprep.subr.mxu0 0.0
      %2123 = vmatpush1.xpose.msra.mxu0 0.0
      %2124 = vmatprep.subr.mxu0 0.0
      %2125 = vmatpush1.xpose.msra.mxu0 0.0
      %2126 = vmatprep.subr.mxu0 0.0
      %2127 = vmatpush1.xpose.msra.mxu0 0.0
      %2128 = vmatprep.subr.mxu0 0.0
      %2129 = vmatpush1.xpose.msra.mxu0 0.0
      %2130 = vmatprep.subr.mxu0 0.0
      %2131 = vmatpush1.xpose.msra.mxu0 0.0
      %2132 = vmatprep.subr.mxu0 0.0
      %2133 = vmatpush1.xpose.msra.mxu0 0.0
      %2134 = vmatprep.subr.mxu0 0.0
      %2135 = vmatpush1.xpose.msra.mxu0 0.0
      %2136 = vmatprep.subr.mxu0 0.0
      %2137 = vmatpush1.xpose.msra.mxu0 0.0
      %2138 = vmatprep.mubr.f32.mxu0 0.0
      %2139 = vmatmul.mubr.f32.gmra.mrb[0].mxu0 %v2042
      %v2140 = vpop.f32.mrb[0].mxu0
      %v2141 = vadd.f32 0.0, %v2140
      %v2142 = vpop.f32.mrb[0].mxu0
      %2143 = vmatprep.mubr.f32.mxu0 0.0
      %2144 = vmatmul.mubr.f32.gmra.mrb[0].mxu0 %v2044
      %v2145 = vpop.f32.mrb[0].mxu0
      %v2146 = vadd.f32 0.0, %v2145
      %v2147 = vpop.f32.mrb[0].mxu0
      %2148 = vmatprep.mubr.f32.mxu0 0.0
      %2149 = vmatmul.mubr.f32.gmra.mrb[0].mxu0 %v2046
      %v2150 = vpop.f32.mrb[0].mxu0
      %v2151 = vadd.f32 0.0, %v2150
      %v2152 = vpop.f32.mrb[0].mxu0
      %2153 = vmatprep.mubr.f32.mxu0 0.0
      %2154 = vmatmul.mubr.f32.gmra.mrb[0].mxu0 %v2048
      %v2155 = vpop.f32.mrb[0].mxu0
      %v2156 = vadd.f32 0.0, %v2155
      %v2157 = vpop.f32.mrb[0].mxu0
      %2158 = vmatprep.mubr.f32.mxu0 0.0
      %2159 = vmatmul.mubr.f32.gmra.mrb[0].mxu0 %v2050
      %v2160 = vpop.f32.mrb[0].mxu0
      %v2161 = vadd.f32 0.0, %v2160
      %v2162 = vpop.f32.mrb[0].mxu0
      %2163 = vmatprep.mubr.f32.mxu0 0.0
      %2164 = vmatmul.mubr.f32.gmra.mrb[0].mxu0 %v2052
      %v2165 = vpop.f32.mrb[0].mxu0
      %v2166 = vadd.f32 0.0, %v2165
      %v2167 = vpop.f32.mrb[0].mxu0
      %2168 = vmatprep.mubr.f32.mxu0 0.0
      %2169 = vmatmul.mubr.f32.gmra.mrb[0].mxu0 %v2054
      %v2170 = vpop.f32.mrb[0].mxu0
      %v2171 = vadd.f32 0.0, %v2170
      %v2172 = vpop.f32.mrb[0].mxu0
      %2173 = vmatprep.mubr.f32.mxu0 0.0
      %2174 = vmatmul.mubr.f32.gmra.mrb[0].mxu0 %v2056
      %v2175 = vpop.f32.mrb[0].mxu0
      %v2176 = vadd.f32 0.0, %v2175
      %v2177 = vpop.f32.mrb[0].mxu0
      %2178 = vdwg.mxu0
      %v2179 = vsel %vm754, %v2141, -10000.0
      %v2180 = vsel %vm755, %v2146, -10000.0
      %v2181 = vsel %vm756, %v2151, -10000.0
      %v2182 = vsel %vm757, %v2156, -10000.0
      %v2183 = vsel %vm758, %v2161, -10000.0
      %v2184 = vsel %vm759, %v2166, -10000.0
      %v2185 = vsel %vm760, %v2171, -10000.0
      %v2186 = vsel %vm761, %v2176, -10000.0
      %v2187 = vsel %vm948, %v2179, -inf
      %2188 = vmax.xlane.f32.xlu0 %v2187
      %v2189 = vpop.xlane.xlu0 %2188
      %v2190 = vsel %vm948, %v2180, -inf
      %2191 = vmax.xlane.f32.xlu0 %v2190
      %v2192 = vpop.xlane.xlu0 %2191
      %v2193 = vsel %vm948, %v2181, -inf
      %2194 = vmax.xlane.f32.xlu0 %v2193
      %v2195 = vpop.xlane.xlu0 %2194
      %v2196 = vsel %vm948, %v2182, -inf
      %2197 = vmax.xlane.f32.xlu0 %v2196
      %v2198 = vpop.xlane.xlu0 %2197
      %v2199 = vsel %vm948, %v2183, -inf
      %2200 = vmax.xlane.f32.xlu0 %v2199
      %v2201 = vpop.xlane.xlu0 %2200
      %v2202 = vsel %vm948, %v2184, -inf
      %2203 = vmax.xlane.f32.xlu0 %v2202
      %v2204 = vpop.xlane.xlu0 %2203
      %v2205 = vsel %vm948, %v2185, -inf
      %2206 = vmax.xlane.f32.xlu0 %v2205
      %v2207 = vpop.xlane.xlu0 %2206
      %v2208 = vsel %vm948, %v2186, -inf
      %2209 = vmax.xlane.f32.xlu0 %v2208
      %v2210 = vpop.xlane.xlu0 %2209
      %v2211 = vsub.f32 %v2179, %v2189
      %v2212 = vsub.f32 %v2180, %v2192
      %v2213 = vsub.f32 %v2181, %v2195
      %v2214 = vsub.f32 %v2182, %v2198
      %v2215 = vsub.f32 %v2183, %v2201
      %v2216 = vsub.f32 %v2184, %v2204
      %v2217 = vsub.f32 %v2185, %v2207
      %v2218 = vsub.f32 %v2186, %v2210
      %v2219 = vmul.f32 %v2211, 1.442695
      %v2220 = vpow.pop %v2219
      %v2221 = vmul.f32 %v2212, 1.442695
      %v2222 = vpow.pop %v2221
      %v2223 = vmul.f32 %v2213, 1.442695
      %v2224 = vpow.pop %v2223
      %v2225 = vmul.f32 %v2214, 1.442695
      %v2226 = vpow.pop %v2225
      %v2227 = vmul.f32 %v2215, 1.442695
      %v2228 = vpow.pop %v2227
      %v2229 = vmul.f32 %v2216, 1.442695
      %v2230 = vpow.pop %v2229
      %v2231 = vmul.f32 %v2217, 1.442695
      %v2232 = vpow.pop %v2231
      %v2233 = vmul.f32 %v2218, 1.442695
      %v2234 = vpow.pop %v2233
      %v2235 = vsel %vm948, %v2220, 0.0
      %2236 = vadd.xlane.f32.xlu0 %v2235
      %v2237 = vpop.xlane.xlu0 %2236
      %v2238 = vsel %vm948, %v2222, 0.0
      %2239 = vadd.xlane.f32.xlu0 %v2238
      %v2240 = vpop.xlane.xlu0 %2239
      %v2241 = vsel %vm948, %v2224, 0.0
      %2242 = vadd.xlane.f32.xlu0 %v2241
      %v2243 = vpop.xlane.xlu0 %2242
      %v2244 = vsel %vm948, %v2226, 0.0
      %2245 = vadd.xlane.f32.xlu0 %v2244
      %v2246 = vpop.xlane.xlu0 %2245
      %v2247 = vsel %vm948, %v2228, 0.0
      %2248 = vadd.xlane.f32.xlu0 %v2247
      %v2249 = vpop.xlane.xlu0 %2248
      %v2250 = vsel %vm948, %v2230, 0.0
      %2251 = vadd.xlane.f32.xlu0 %v2250
      %v2252 = vpop.xlane.xlu0 %2251
      %v2253 = vsel %vm948, %v2232, 0.0
      %2254 = vadd.xlane.f32.xlu0 %v2253
      %v2255 = vpop.xlane.xlu0 %2254
      %v2256 = vsel %vm948, %v2234, 0.0
      %2257 = vadd.xlane.f32.xlu0 %v2256
      %v2258 = vpop.xlane.xlu0 %2257
      %v2259 = vrcp.pop %v2237
      %v2260 = vrcp.pop %v2240
      %v2261 = vrcp.pop %v2243
      %v2262 = vrcp.pop %v2246
      %v2263 = vrcp.pop %v2249
      %v2264 = vrcp.pop %v2252
      %v2265 = vrcp.pop %v2255
      %v2266 = vrcp.pop %v2258
      %v2267 = vmul.f32 %v2220, %v2259
      %v2268 = vmul.f32 %v2222, %v2260
      %v2269 = vmul.f32 %v2224, %v2261
      %v2270 = vmul.f32 %v2226, %v2262
      %v2271 = vmul.f32 %v2228, %v2263
      %v2272 = vmul.f32 %v2230, %v2264
      %v2273 = vmul.f32 %v2232, %v2265
      %v2274 = vmul.f32 %v2234, %v2266
      %2275 = vrot.lane.b32.xlu0 %v705, 116
      %v2276 = vpop.permute.xlu0 %2275
      %2277 = vrot.lane.b32.xlu0 %v710, 116
      %v2278 = vpop.permute.xlu0 %2277
      %2279 = vrot.lane.b32.xlu0 %v715, 116
      %v2280 = vpop.permute.xlu0 %2279
      %2281 = vrot.lane.b32.xlu0 %v720, 116
      %v2282 = vpop.permute.xlu0 %2281
      %2283 = vrot.lane.b32.xlu0 %v725, 116
      %v2284 = vpop.permute.xlu0 %2283
      %2285 = vrot.lane.b32.xlu0 %v730, 116
      %v2286 = vpop.permute.xlu0 %2285
      %2287 = vrot.lane.b32.xlu0 %v735, 116
      %v2288 = vpop.permute.xlu0 %2287
      %2289 = vrot.lane.b32.xlu0 %v740, 116
      %v2290 = vpop.permute.xlu0 %2289
      %v2300 = vsel %vm948, %v2267, 0
      %v2303 = vsel %vm948, %v2268, 0
      %v2306 = vsel %vm948, %v2269, 0
      %v2309 = vsel %vm948, %v2270, 0
      %v2312 = vsel %vm948, %v2271, 0
      %v2315 = vsel %vm948, %v2272, 0
      %v2318 = vsel %vm948, %v2273, 0
      %v2321 = vsel %vm948, %v2274, 0
      %2323 = vmatprep.subr.mxu0 0.0
      %2324 = vmatpush1.msra.mxu0 %v2276
      %2325 = vmatprep.subr.mxu0 0.0
      %2326 = vmatpush1.msra.mxu0 %v2278
      %2327 = vmatprep.subr.mxu0 0.0
      %2328 = vmatpush1.msra.mxu0 %v2280
      %2329 = vmatprep.subr.mxu0 0.0
      %2330 = vmatpush1.msra.mxu0 %v2282
      %2331 = vmatprep.subr.mxu0 0.0
      %2332 = vmatpush1.msra.mxu0 %v2284
      %2333 = vmatprep.subr.mxu0 0.0
      %2334 = vmatpush1.msra.mxu0 %v2286
      %2335 = vmatprep.subr.mxu0 0.0
      %2336 = vmatpush1.msra.mxu0 %v2288
      %2337 = vmatprep.subr.mxu0 0.0
      %2338 = vmatpush1.msra.mxu0 %v2290
      %2339 = vmatprep.subr.mxu0 0.0
      %2340 = vmatpush1.msra.mxu0 0.0
      %2341 = vmatprep.subr.mxu0 0.0
      %2342 = vmatpush1.msra.mxu0 0.0
      %2343 = vmatprep.subr.mxu0 0.0
      %2344 = vmatpush1.msra.mxu0 0.0
      %2345 = vmatprep.subr.mxu0 0.0
      %2346 = vmatpush1.msra.mxu0 0.0
      %2347 = vmatprep.subr.mxu0 0.0
      %2348 = vmatpush1.msra.mxu0 0.0
      %2349 = vmatprep.subr.mxu0 0.0
      %2350 = vmatpush1.msra.mxu0 0.0
      %2351 = vmatprep.subr.mxu0 0.0
      %2352 = vmatpush1.msra.mxu0 0.0
      %2353 = vmatprep.subr.mxu0 0.0
      %2354 = vmatpush1.msra.mxu0 0.0
      %2355 = vmatprep.subr.mxu0 0.0
      %2356 = vmatpush1.msra.mxu0 0.0
      %2357 = vmatprep.subr.mxu0 0.0
      %2358 = vmatpush1.msra.mxu0 0.0
      %2359 = vmatprep.subr.mxu0 0.0
      %2360 = vmatpush1.msra.mxu0 0.0
      %2361 = vmatprep.subr.mxu0 0.0
      %2362 = vmatpush1.msra.mxu0 0.0
      %2363 = vmatprep.subr.mxu0 0.0
      %2364 = vmatpush1.msra.mxu0 0.0
      %2365 = vmatprep.subr.mxu0 0.0
      %2366 = vmatpush1.msra.mxu0 0.0
      %2367 = vmatprep.subr.mxu0 0.0
      %2368 = vmatpush1.msra.mxu0 0.0
      %2369 = vmatprep.subr.mxu0 0.0
      %2370 = vmatpush1.msra.mxu0 0.0
      %2371 = vmatprep.subr.mxu0 0.0
      %2372 = vmatpush1.msra.mxu0 0.0
      %2373 = vmatprep.subr.mxu0 0.0
      %2374 = vmatpush1.msra.mxu0 0.0
      %2375 = vmatprep.subr.mxu0 0.0
      %2376 = vmatpush1.msra.mxu0 0.0
      %2377 = vmatprep.subr.mxu0 0.0
      %2378 = vmatpush1.msra.mxu0 0.0
      %2379 = vmatprep.subr.mxu0 0.0
      %2380 = vmatpush1.msra.mxu0 0.0
      %2381 = vmatprep.subr.mxu0 0.0
      %2382 = vmatpush1.msra.mxu0 0.0
      %2383 = vmatprep.subr.mxu0 0.0
      %2384 = vmatpush1.msra.mxu0 0.0
      %2385 = vmatprep.subr.mxu0 0.0
      %2386 = vmatpush1.msra.mxu0 0.0
      %2387 = vmatprep.mubr.f32.mxu0 0.0
      %2388 = vmatmul.mubr.f32.gmra.mrb[0].mxu0 %v2300
      %v2389 = vpop.f32.mrb[0].mxu0
      %v2390 = vadd.f32 0.0, %v2389
      %v2391 = vpop.f32.mrb[0].mxu0
      %2392 = vmatprep.mubr.f32.mxu0 0.0
      %2393 = vmatmul.mubr.f32.gmra.mrb[0].mxu0 %v2303
      %v2394 = vpop.f32.mrb[0].mxu0
      %v2395 = vadd.f32 0.0, %v2394
      %v2396 = vpop.f32.mrb[0].mxu0
      %2397 = vmatprep.mubr.f32.mxu0 0.0
      %2398 = vmatmul.mubr.f32.gmra.mrb[0].mxu0 %v2306
      %v2399 = vpop.f32.mrb[0].mxu0
      %v2400 = vadd.f32 0.0, %v2399
      %v2401 = vpop.f32.mrb[0].mxu0
      %2402 = vmatprep.mubr.f32.mxu0 0.0
      %2403 = vmatmul.mubr.f32.gmra.mrb[0].mxu0 %v2309
      %v2404 = vpop.f32.mrb[0].mxu0
      %v2405 = vadd.f32 0.0, %v2404
      %v2406 = vpop.f32.mrb[0].mxu0
      %2407 = vmatprep.mubr.f32.mxu0 0.0
      %2408 = vmatmul.mubr.f32.gmra.mrb[0].mxu0 %v2312
      %v2409 = vpop.f32.mrb[0].mxu0
      %v2410 = vadd.f32 0.0, %v2409
      %v2411 = vpop.f32.mrb[0].mxu0
      %2412 = vmatprep.mubr.f32.mxu0 0.0
      %2413 = vmatmul.mubr.f32.gmra.mrb[0].mxu0 %v2315
      %v2414 = vpop.f32.mrb[0].mxu0
      %v2415 = vadd.f32 0.0, %v2414
      %v2416 = vpop.f32.mrb[0].mxu0
      %2417 = vmatprep.mubr.f32.mxu0 0.0
      %2418 = vmatmul.mubr.f32.gmra.mrb[0].mxu0 %v2318
      %v2419 = vpop.f32.mrb[0].mxu0
      %v2420 = vadd.f32 0.0, %v2419
      %v2421 = vpop.f32.mrb[0].mxu0
      %2422 = vmatprep.mubr.f32.mxu0 0.0
      %2423 = vmatmul.mubr.f32.gmra.mrb[0].mxu0 %v2321
      %v2424 = vpop.f32.mrb[0].mxu0
      %v2425 = vadd.f32 0.0, %v2424
      %v2426 = vpop.f32.mrb[0].mxu0
      %2427 = vdwg.mxu0
      %2428 = vrot.lane.b32.xlu0 %v443, 112
      %v2429 = vpop.permute.xlu0 %2428
      %2430 = vrot.lane.b32.xlu0 %v448, 112
      %v2431 = vpop.permute.xlu0 %2430
      %2432 = vrot.lane.b32.xlu0 %v453, 112
      %v2433 = vpop.permute.xlu0 %2432
      %2434 = vrot.lane.b32.xlu0 %v458, 112
      %v2435 = vpop.permute.xlu0 %2434
      %2436 = vrot.lane.b32.xlu0 %v463, 112
      %v2437 = vpop.permute.xlu0 %2436
      %2438 = vrot.lane.b32.xlu0 %v468, 112
      %v2439 = vpop.permute.xlu0 %2438
      %2440 = vrot.lane.b32.xlu0 %v473, 112
      %v2441 = vpop.permute.xlu0 %2440
      %2442 = vrot.lane.b32.xlu0 %v478, 112
      %v2443 = vpop.permute.xlu0 %2442
      %2444 = vrot.lane.b32.xlu0 %v587, 112
      %v2445 = vpop.permute.xlu0 %2444
      %2446 = vrot.lane.b32.xlu0 %v592, 112
      %v2447 = vpop.permute.xlu0 %2446
      %2448 = vrot.lane.b32.xlu0 %v597, 112
      %v2449 = vpop.permute.xlu0 %2448
      %2450 = vrot.lane.b32.xlu0 %v602, 112
      %v2451 = vpop.permute.xlu0 %2450
      %2452 = vrot.lane.b32.xlu0 %v607, 112
      %v2453 = vpop.permute.xlu0 %2452
      %2454 = vrot.lane.b32.xlu0 %v612, 112
      %v2455 = vpop.permute.xlu0 %2454
      %2456 = vrot.lane.b32.xlu0 %v617, 112
      %v2457 = vpop.permute.xlu0 %2456
      %2458 = vrot.lane.b32.xlu0 %v622, 112
      %v2459 = vpop.permute.xlu0 %2458
      %v2460 = vsel %vm786, %v2429, 0
      %v2462 = vsel %vm786, %v2431, 0
      %v2464 = vsel %vm786, %v2433, 0
      %v2466 = vsel %vm786, %v2435, 0
      %v2468 = vsel %vm786, %v2437, 0
      %v2470 = vsel %vm786, %v2439, 0
      %v2472 = vsel %vm786, %v2441, 0
      %v2474 = vsel %vm786, %v2443, 0
      %v2476 = vsel %vm786, %v2445, 0
      %v2478 = vsel %vm786, %v2447, 0
      %v2480 = vsel %vm786, %v2449, 0
      %v2482 = vsel %vm786, %v2451, 0
      %v2484 = vsel %vm786, %v2453, 0
      %v2486 = vsel %vm786, %v2455, 0
      %v2488 = vsel %vm786, %v2457, 0
      %v2490 = vsel %vm786, %v2459, 0
      %2492 = vmatprep.subr.mxu0 0.0
      %2493 = vmatpush1.xpose.msra.mxu0 %v2476
      %2494 = vmatprep.subr.mxu0 0.0
      %2495 = vmatpush1.xpose.msra.mxu0 %v2478
      %2496 = vmatprep.subr.mxu0 0.0
      %2497 = vmatpush1.xpose.msra.mxu0 %v2480
      %2498 = vmatprep.subr.mxu0 0.0
      %2499 = vmatpush1.xpose.msra.mxu0 %v2482
      %2500 = vmatprep.subr.mxu0 0.0
      %2501 = vmatpush1.xpose.msra.mxu0 %v2484
      %2502 = vmatprep.subr.mxu0 0.0
      %2503 = vmatpush1.xpose.msra.mxu0 %v2486
      %2504 = vmatprep.subr.mxu0 0.0
      %2505 = vmatpush1.xpose.msra.mxu0 %v2488
      %2506 = vmatprep.subr.mxu0 0.0
      %2507 = vmatpush1.xpose.msra.mxu0 %v2490
      %2508 = vmatprep.subr.mxu0 0.0
      %2509 = vmatpush1.xpose.msra.mxu0 0.0
      %2510 = vmatprep.subr.mxu0 0.0
      %2511 = vmatpush1.xpose.msra.mxu0 0.0
      %2512 = vmatprep.subr.mxu0 0.0
      %2513 = vmatpush1.xpose.msra.mxu0 0.0
      %2514 = vmatprep.subr.mxu0 0.0
      %2515 = vmatpush1.xpose.msra.mxu0 0.0
      %2516 = vmatprep.subr.mxu0 0.0
      %2517 = vmatpush1.xpose.msra.mxu0 0.0
      %2518 = vmatprep.subr.mxu0 0.0
      %2519 = vmatpush1.xpose.msra.mxu0 0.0
      %2520 = vmatprep.subr.mxu0 0.0
      %2521 = vmatpush1.xpose.msra.mxu0 0.0
      %2522 = vmatprep.subr.mxu0 0.0
      %2523 = vmatpush1.xpose.msra.mxu0 0.0
      %2524 = vmatprep.subr.mxu0 0.0
      %2525 = vmatpush1.xpose.msra.mxu0 0.0
      %2526 = vmatprep.subr.mxu0 0.0
      %2527 = vmatpush1.xpose.msra.mxu0 0.0
      %2528 = vmatprep.subr.mxu0 0.0
      %2529 = vmatpush1.xpose.msra.mxu0 0.0
      %2530 = vmatprep.subr.mxu0 0.0
      %2531 = vmatpush1.xpose.msra.mxu0 0.0
      %2532 = vmatprep.subr.mxu0 0.0
      %2533 = vmatpush1.xpose.msra.mxu0 0.0
      %2534 = vmatprep.subr.mxu0 0.0
      %2535 = vmatpush1.xpose.msra.mxu0 0.0
      %2536 = vmatprep.subr.mxu0 0.0
      %2537 = vmatpush1.xpose.msra.mxu0 0.0
      %2538 = vmatprep.subr.mxu0 0.0
      %2539 = vmatpush1.xpose.msra.mxu0 0.0
      %2540 = vmatprep.subr.mxu0 0.0
      %2541 = vmatpush1.xpose.msra.mxu0 0.0
      %2542 = vmatprep.subr.mxu0 0.0
      %2543 = vmatpush1.xpose.msra.mxu0 0.0
      %2544 = vmatprep.subr.mxu0 0.0
      %2545 = vmatpush1.xpose.msra.mxu0 0.0
      %2546 = vmatprep.subr.mxu0 0.0
      %2547 = vmatpush1.xpose.msra.mxu0 0.0
      %2548 = vmatprep.subr.mxu0 0.0
      %2549 = vmatpush1.xpose.msra.mxu0 0.0
      %2550 = vmatprep.subr.mxu0 0.0
      %2551 = vmatpush1.xpose.msra.mxu0 0.0
      %2552 = vmatprep.subr.mxu0 0.0
      %2553 = vmatpush1.xpose.msra.mxu0 0.0
      %2554 = vmatprep.subr.mxu0 0.0
      %2555 = vmatpush1.xpose.msra.mxu0 0.0
      %2556 = vmatprep.mubr.f32.mxu0 0.0
      %2557 = vmatmul.mubr.f32.gmra.mrb[0].mxu0 %v2460
      %v2558 = vpop.f32.mrb[0].mxu0
      %v2559 = vadd.f32 0.0, %v2558
      %v2560 = vpop.f32.mrb[0].mxu0
      %2561 = vmatprep.mubr.f32.mxu0 0.0
      %2562 = vmatmul.mubr.f32.gmra.mrb[0].mxu0 %v2462
      %v2563 = vpop.f32.mrb[0].mxu0
      %v2564 = vadd.f32 0.0, %v2563
      %v2565 = vpop.f32.mrb[0].mxu0
      %2566 = vmatprep.mubr.f32.mxu0 0.0
      %2567 = vmatmul.mubr.f32.gmra.mrb[0].mxu0 %v2464
      %v2568 = vpop.f32.mrb[0].mxu0
      %v2569 = vadd.f32 0.0, %v2568
      %v2570 = vpop.f32.mrb[0].mxu0
      %2571 = vmatprep.mubr.f32.mxu0 0.0
      %2572 = vmatmul.mubr.f32.gmra.mrb[0].mxu0 %v2466
      %v2573 = vpop.f32.mrb[0].mxu0
      %v2574 = vadd.f32 0.0, %v2573
      %v2575 = vpop.f32.mrb[0].mxu0
      %2576 = vmatprep.mubr.f32.mxu0 0.0
      %2577 = vmatmul.mubr.f32.gmra.mrb[0].mxu0 %v2468
      %v2578 = vpop.f32.mrb[0].mxu0
      %v2579 = vadd.f32 0.0, %v2578
      %v2580 = vpop.f32.mrb[0].mxu0
      %2581 = vmatprep.mubr.f32.mxu0 0.0
      %2582 = vmatmul.mubr.f32.gmra.mrb[0].mxu0 %v2470
      %v2583 = vpop.f32.mrb[0].mxu0
      %v2584 = vadd.f32 0.0, %v2583
      %v2585 = vpop.f32.mrb[0].mxu0
      %2586 = vmatprep.mubr.f32.mxu0 0.0
      %2587 = vmatmul.mubr.f32.gmra.mrb[0].mxu0 %v2472
      %v2588 = vpop.f32.mrb[0].mxu0
      %v2589 = vadd.f32 0.0, %v2588
      %v2590 = vpop.f32.mrb[0].mxu0
      %2591 = vmatprep.mubr.f32.mxu0 0.0
      %2592 = vmatmul.mubr.f32.gmra.mrb[0].mxu0 %v2474
      %v2593 = vpop.f32.mrb[0].mxu0
      %v2594 = vadd.f32 0.0, %v2593
      %v2595 = vpop.f32.mrb[0].mxu0
      %2596 = vdwg.mxu0
      %v2597 = vsel %vm754, %v2559, -10000.0
      %v2598 = vsel %vm755, %v2564, -10000.0
      %v2599 = vsel %vm756, %v2569, -10000.0
      %v2600 = vsel %vm757, %v2574, -10000.0
      %v2601 = vsel %vm758, %v2579, -10000.0
      %v2602 = vsel %vm759, %v2584, -10000.0
      %v2603 = vsel %vm760, %v2589, -10000.0
      %v2604 = vsel %vm761, %v2594, -10000.0
      %v2605 = vsel %vm948, %v2597, -inf
      %2606 = vmax.xlane.f32.xlu0 %v2605
      %v2607 = vpop.xlane.xlu0 %2606
      %v2608 = vsel %vm948, %v2598, -inf
      %2609 = vmax.xlane.f32.xlu0 %v2608
      %v2610 = vpop.xlane.xlu0 %2609
      %v2611 = vsel %vm948, %v2599, -inf
      %2612 = vmax.xlane.f32.xlu0 %v2611
      %v2613 = vpop.xlane.xlu0 %2612
      %v2614 = vsel %vm948, %v2600, -inf
      %2615 = vmax.xlane.f32.xlu0 %v2614
      %v2616 = vpop.xlane.xlu0 %2615
      %v2617 = vsel %vm948, %v2601, -inf
      %2618 = vmax.xlane.f32.xlu0 %v2617
      %v2619 = vpop.xlane.xlu0 %2618
      %v2620 = vsel %vm948, %v2602, -inf
      %2621 = vmax.xlane.f32.xlu0 %v2620
      %v2622 = vpop.xlane.xlu0 %2621
      %v2623 = vsel %vm948, %v2603, -inf
      %2624 = vmax.xlane.f32.xlu0 %v2623
      %v2625 = vpop.xlane.xlu0 %2624
      %v2626 = vsel %vm948, %v2604, -inf
      %2627 = vmax.xlane.f32.xlu0 %v2626
      %v2628 = vpop.xlane.xlu0 %2627
      %v2629 = vsub.f32 %v2597, %v2607
      %v2630 = vsub.f32 %v2598, %v2610
      %v2631 = vsub.f32 %v2599, %v2613
      %v2632 = vsub.f32 %v2600, %v2616
      %v2633 = vsub.f32 %v2601, %v2619
      %v2634 = vsub.f32 %v2602, %v2622
      %v2635 = vsub.f32 %v2603, %v2625
      %v2636 = vsub.f32 %v2604, %v2628
      %v2637 = vmul.f32 %v2629, 1.442695
      %v2638 = vpow.pop %v2637
      %v2639 = vmul.f32 %v2630, 1.442695
      %v2640 = vpow.pop %v2639
      %v2641 = vmul.f32 %v2631, 1.442695
      %v2642 = vpow.pop %v2641
      %v2643 = vmul.f32 %v2632, 1.442695
      %v2644 = vpow.pop %v2643
      %v2645 = vmul.f32 %v2633, 1.442695
      %v2646 = vpow.pop %v2645
      %v2647 = vmul.f32 %v2634, 1.442695
      %v2648 = vpow.pop %v2647
      %v2649 = vmul.f32 %v2635, 1.442695
      %v2650 = vpow.pop %v2649
      %v2651 = vmul.f32 %v2636, 1.442695
      %v2652 = vpow.pop %v2651
      %v2653 = vsel %vm948, %v2638, 0.0
      %2654 = vadd.xlane.f32.xlu0 %v2653
      %v2655 = vpop.xlane.xlu0 %2654
      %v2656 = vsel %vm948, %v2640, 0.0
      %2657 = vadd.xlane.f32.xlu0 %v2656
      %v2658 = vpop.xlane.xlu0 %2657
      %v2659 = vsel %vm948, %v2642, 0.0
      %2660 = vadd.xlane.f32.xlu0 %v2659
      %v2661 = vpop.xlane.xlu0 %2660
      %v2662 = vsel %vm948, %v2644, 0.0
      %2663 = vadd.xlane.f32.xlu0 %v2662
      %v2664 = vpop.xlane.xlu0 %2663
      %v2665 = vsel %vm948, %v2646, 0.0
      %2666 = vadd.xlane.f32.xlu0 %v2665
      %v2667 = vpop.xlane.xlu0 %2666
      %v2668 = vsel %vm948, %v2648, 0.0
      %2669 = vadd.xlane.f32.xlu0 %v2668
      %v2670 = vpop.xlane.xlu0 %2669
      %v2671 = vsel %vm948, %v2650, 0.0
      %2672 = vadd.xlane.f32.xlu0 %v2671
      %v2673 = vpop.xlane.xlu0 %2672
      %v2674 = vsel %vm948, %v2652, 0.0
      %2675 = vadd.xlane.f32.xlu0 %v2674
      %v2676 = vpop.xlane.xlu0 %2675
      %v2677 = vrcp.pop %v2655
      %v2678 = vrcp.pop %v2658
      %v2679 = vrcp.pop %v2661
      %v2680 = vrcp.pop %v2664
      %v2681 = vrcp.pop %v2667
      %v2682 = vrcp.pop %v2670
      %v2683 = vrcp.pop %v2673
      %v2684 = vrcp.pop %v2676
      %v2685 = vmul.f32 %v2638, %v2677
      %v2686 = vmul.f32 %v2640, %v2678
      %v2687 = vmul.f32 %v2642, %v2679
      %v2688 = vmul.f32 %v2644, %v2680
      %v2689 = vmul.f32 %v2646, %v2681
      %v2690 = vmul.f32 %v2648, %v2682
      %v2691 = vmul.f32 %v2650, %v2683
      %v2692 = vmul.f32 %v2652, %v2684
      %2693 = vrot.lane.b32.xlu0 %v705, 112
      %v2694 = vpop.permute.xlu0 %2693
      %2695 = vrot.lane.b32.xlu0 %v710, 112
      %v2696 = vpop.permute.xlu0 %2695
      %2697 = vrot.lane.b32.xlu0 %v715, 112
      %v2698 = vpop.permute.xlu0 %2697
      %2699 = vrot.lane.b32.xlu0 %v720, 112
      %v2700 = vpop.permute.xlu0 %2699
      %2701 = vrot.lane.b32.xlu0 %v725, 112
      %v2702 = vpop.permute.xlu0 %2701
      %2703 = vrot.lane.b32.xlu0 %v730, 112
      %v2704 = vpop.permute.xlu0 %2703
      %2705 = vrot.lane.b32.xlu0 %v735, 112
      %v2706 = vpop.permute.xlu0 %2705
      %2707 = vrot.lane.b32.xlu0 %v740, 112
      %v2708 = vpop.permute.xlu0 %2707
      %v2718 = vsel %vm948, %v2685, 0
      %v2721 = vsel %vm948, %v2686, 0
      %v2724 = vsel %vm948, %v2687, 0
      %v2727 = vsel %vm948, %v2688, 0
      %v2730 = vsel %vm948, %v2689, 0
      %v2733 = vsel %vm948, %v2690, 0
      %v2736 = vsel %vm948, %v2691, 0
      %v2739 = vsel %vm948, %v2692, 0
      %2741 = vmatprep.subr.mxu0 0.0
      %2742 = vmatpush1.msra.mxu0 %v2694
      %2743 = vmatprep.subr.mxu0 0.0
      %2744 = vmatpush1.msra.mxu0 %v2696
      %2745 = vmatprep.subr.mxu0 0.0
      %2746 = vmatpush1.msra.mxu0 %v2698
      %2747 = vmatprep.subr.mxu0 0.0
      %2748 = vmatpush1.msra.mxu0 %v2700
      %2749 = vmatprep.subr.mxu0 0.0
      %2750 = vmatpush1.msra.mxu0 %v2702
      %2751 = vmatprep.subr.mxu0 0.0
      %2752 = vmatpush1.msra.mxu0 %v2704
      %2753 = vmatprep.subr.mxu0 0.0
      %2754 = vmatpush1.msra.mxu0 %v2706
      %2755 = vmatprep.subr.mxu0 0.0
      %2756 = vmatpush1.msra.mxu0 %v2708
      %2757 = vmatprep.subr.mxu0 0.0
      %2758 = vmatpush1.msra.mxu0 0.0
      %2759 = vmatprep.subr.mxu0 0.0
      %2760 = vmatpush1.msra.mxu0 0.0
      %2761 = vmatprep.subr.mxu0 0.0
      %2762 = vmatpush1.msra.mxu0 0.0
      %2763 = vmatprep.subr.mxu0 0.0
      %2764 = vmatpush1.msra.mxu0 0.0
      %2765 = vmatprep.subr.mxu0 0.0
      %2766 = vmatpush1.msra.mxu0 0.0
      %2767 = vmatprep.subr.mxu0 0.0
      %2768 = vmatpush1.msra.mxu0 0.0
      %2769 = vmatprep.subr.mxu0 0.0
      %2770 = vmatpush1.msra.mxu0 0.0
      %2771 = vmatprep.subr.mxu0 0.0
      %2772 = vmatpush1.msra.mxu0 0.0
      %2773 = vmatprep.subr.mxu0 0.0
      %2774 = vmatpush1.msra.mxu0 0.0
      %2775 = vmatprep.subr.mxu0 0.0
      %2776 = vmatpush1.msra.mxu0 0.0
      %2777 = vmatprep.subr.mxu0 0.0
      %2778 = vmatpush1.msra.mxu0 0.0
      %2779 = vmatprep.subr.mxu0 0.0
      %2780 = vmatpush1.msra.mxu0 0.0
      %2781 = vmatprep.subr.mxu0 0.0
      %2782 = vmatpush1.msra.mxu0 0.0
      %2783 = vmatprep.subr.mxu0 0.0
      %2784 = vmatpush1.msra.mxu0 0.0
      %2785 = vmatprep.subr.mxu0 0.0
      %2786 = vmatpush1.msra.mxu0 0.0
      %2787 = vmatprep.subr.mxu0 0.0
      %2788 = vmatpush1.msra.mxu0 0.0
      %2789 = vmatprep.subr.mxu0 0.0
      %2790 = vmatpush1.msra.mxu0 0.0
      %2791 = vmatprep.subr.mxu0 0.0
      %2792 = vmatpush1.msra.mxu0 0.0
      %2793 = vmatprep.subr.mxu0 0.0
      %2794 = vmatpush1.msra.mxu0 0.0
      %2795 = vmatprep.subr.mxu0 0.0
      %2796 = vmatpush1.msra.mxu0 0.0
      %2797 = vmatprep.subr.mxu0 0.0
      %2798 = vmatpush1.msra.mxu0 0.0
      %2799 = vmatprep.subr.mxu0 0.0
      %2800 = vmatpush1.msra.mxu0 0.0
      %2801 = vmatprep.subr.mxu0 0.0
      %2802 = vmatpush1.msra.mxu0 0.0
      %2803 = vmatprep.subr.mxu0 0.0
      %2804 = vmatpush1.msra.mxu0 0.0
      %2805 = vmatprep.mubr.f32.mxu0 0.0
      %2806 = vmatmul.mubr.f32.gmra.mrb[0].mxu0 %v2718
      %v2807 = vpop.f32.mrb[0].mxu0
      %v2808 = vadd.f32 0.0, %v2807
      %v2809 = vpop.f32.mrb[0].mxu0
      %2810 = vmatprep.mubr.f32.mxu0 0.0
      %2811 = vmatmul.mubr.f32.gmra.mrb[0].mxu0 %v2721
      %v2812 = vpop.f32.mrb[0].mxu0
      %v2813 = vadd.f32 0.0, %v2812
      %v2814 = vpop.f32.mrb[0].mxu0
      %2815 = vmatprep.mubr.f32.mxu0 0.0
      %2816 = vmatmul.mubr.f32.gmra.mrb[0].mxu0 %v2724
      %v2817 = vpop.f32.mrb[0].mxu0
      %v2818 = vadd.f32 0.0, %v2817
      %v2819 = vpop.f32.mrb[0].mxu0
      %2820 = vmatprep.mubr.f32.mxu0 0.0
      %2821 = vmatmul.mubr.f32.gmra.mrb[0].mxu0 %v2727
      %v2822 = vpop.f32.mrb[0].mxu0
      %v2823 = vadd.f32 0.0, %v2822
      %v2824 = vpop.f32.mrb[0].mxu0
      %2825 = vmatprep.mubr.f32.mxu0 0.0
      %2826 = vmatmul.mubr.f32.gmra.mrb[0].mxu0 %v2730
      %v2827 = vpop.f32.mrb[0].mxu0
      %v2828 = vadd.f32 0.0, %v2827
      %v2829 = vpop.f32.mrb[0].mxu0
      %2830 = vmatprep.mubr.f32.mxu0 0.0
      %2831 = vmatmul.mubr.f32.gmra.mrb[0].mxu0 %v2733
      %v2832 = vpop.f32.mrb[0].mxu0
      %v2833 = vadd.f32 0.0, %v2832
      %v2834 = vpop.f32.mrb[0].mxu0
      %2835 = vmatprep.mubr.f32.mxu0 0.0
      %2836 = vmatmul.mubr.f32.gmra.mrb[0].mxu0 %v2736
      %v2837 = vpop.f32.mrb[0].mxu0
      %v2838 = vadd.f32 0.0, %v2837
      %v2839 = vpop.f32.mrb[0].mxu0
      %2840 = vmatprep.mubr.f32.mxu0 0.0
      %2841 = vmatmul.mubr.f32.gmra.mrb[0].mxu0 %v2739
      %v2842 = vpop.f32.mrb[0].mxu0
      %v2843 = vadd.f32 0.0, %v2842
      %v2844 = vpop.f32.mrb[0].mxu0
      %2845 = vdwg.mxu0
      %2846 = vrot.lane.b32.xlu0 %v443, 108
      %v2847 = vpop.permute.xlu0 %2846
      %2848 = vrot.lane.b32.xlu0 %v448, 108
      %v2849 = vpop.permute.xlu0 %2848
      %2850 = vrot.lane.b32.xlu0 %v453, 108
      %v2851 = vpop.permute.xlu0 %2850
      %2852 = vrot.lane.b32.xlu0 %v458, 108
      %v2853 = vpop.permute.xlu0 %2852
      %2854 = vrot.lane.b32.xlu0 %v463, 108
      %v2855 = vpop.permute.xlu0 %2854
      %2856 = vrot.lane.b32.xlu0 %v468, 108
      %v2857 = vpop.permute.xlu0 %2856
      %2858 = vrot.lane.b32.xlu0 %v473, 108
      %v2859 = vpop.permute.xlu0 %2858
      %2860 = vrot.lane.b32.xlu0 %v478, 108
      %v2861 = vpop.permute.xlu0 %2860
      %2862 = vrot.lane.b32.xlu0 %v587, 108
      %v2863 = vpop.permute.xlu0 %2862
      %2864 = vrot.lane.b32.xlu0 %v592, 108
      %v2865 = vpop.permute.xlu0 %2864
      %2866 = vrot.lane.b32.xlu0 %v597, 108
      %v2867 = vpop.permute.xlu0 %2866
      %2868 = vrot.lane.b32.xlu0 %v602, 108
      %v2869 = vpop.permute.xlu0 %2868
      %2870 = vrot.lane.b32.xlu0 %v607, 108
      %v2871 = vpop.permute.xlu0 %2870
      %2872 = vrot.lane.b32.xlu0 %v612, 108
      %v2873 = vpop.permute.xlu0 %2872
      %2874 = vrot.lane.b32.xlu0 %v617, 108
      %v2875 = vpop.permute.xlu0 %2874
      %2876 = vrot.lane.b32.xlu0 %v622, 108
      %v2877 = vpop.permute.xlu0 %2876
      %v2878 = vsel %vm786, %v2847, 0
      %v2880 = vsel %vm786, %v2849, 0
      %v2882 = vsel %vm786, %v2851, 0
      %v2884 = vsel %vm786, %v2853, 0
      %v2886 = vsel %vm786, %v2855, 0
      %v2888 = vsel %vm786, %v2857, 0
      %v2890 = vsel %vm786, %v2859, 0
      %v2892 = vsel %vm786, %v2861, 0
      %v2894 = vsel %vm786, %v2863, 0
      %v2896 = vsel %vm786, %v2865, 0
      %v2898 = vsel %vm786, %v2867, 0
      %v2900 = vsel %vm786, %v2869, 0
      %v2902 = vsel %vm786, %v2871, 0
      %v2904 = vsel %vm786, %v2873, 0
      %v2906 = vsel %vm786, %v2875, 0
      %v2908 = vsel %vm786, %v2877, 0
      %2910 = vmatprep.subr.mxu0 0.0
      %2911 = vmatpush1.xpose.msra.mxu0 %v2894
      %2912 = vmatprep.subr.mxu0 0.0
      %2913 = vmatpush1.xpose.msra.mxu0 %v2896
      %2914 = vmatprep.subr.mxu0 0.0
      %2915 = vmatpush1.xpose.msra.mxu0 %v2898
      %2916 = vmatprep.subr.mxu0 0.0
      %2917 = vmatpush1.xpose.msra.mxu0 %v2900
      %2918 = vmatprep.subr.mxu0 0.0
      %2919 = vmatpush1.xpose.msra.mxu0 %v2902
      %2920 = vmatprep.subr.mxu0 0.0
      %2921 = vmatpush1.xpose.msra.mxu0 %v2904
      %2922 = vmatprep.subr.mxu0 0.0
      %2923 = vmatpush1.xpose.msra.mxu0 %v2906
      %2924 = vmatprep.subr.mxu0 0.0
      %2925 = vmatpush1.xpose.msra.mxu0 %v2908
      %2926 = vmatprep.subr.mxu0 0.0
      %2927 = vmatpush1.xpose.msra.mxu0 0.0
      %2928 = vmatprep.subr.mxu0 0.0
      %2929 = vmatpush1.xpose.msra.mxu0 0.0
      %2930 = vmatprep.subr.mxu0 0.0
      %2931 = vmatpush1.xpose.msra.mxu0 0.0
      %2932 = vmatprep.subr.mxu0 0.0
      %2933 = vmatpush1.xpose.msra.mxu0 0.0
      %2934 = vmatprep.subr.mxu0 0.0
      %2935 = vmatpush1.xpose.msra.mxu0 0.0
      %2936 = vmatprep.subr.mxu0 0.0
      %2937 = vmatpush1.xpose.msra.mxu0 0.0
      %2938 = vmatprep.subr.mxu0 0.0
      %2939 = vmatpush1.xpose.msra.mxu0 0.0
      %2940 = vmatprep.subr.mxu0 0.0
      %2941 = vmatpush1.xpose.msra.mxu0 0.0
      %2942 = vmatprep.subr.mxu0 0.0
      %2943 = vmatpush1.xpose.msra.mxu0 0.0
      %2944 = vmatprep.subr.mxu0 0.0
      %2945 = vmatpush1.xpose.msra.mxu0 0.0
      %2946 = vmatprep.subr.mxu0 0.0
      %2947 = vmatpush1.xpose.msra.mxu0 0.0
      %2948 = vmatprep.subr.mxu0 0.0
      %2949 = vmatpush1.xpose.msra.mxu0 0.0
      %2950 = vmatprep.subr.mxu0 0.0
      %2951 = vmatpush1.xpose.msra.mxu0 0.0
      %2952 = vmatprep.subr.mxu0 0.0
      %2953 = vmatpush1.xpose.msra.mxu0 0.0
      %2954 = vmatprep.subr.mxu0 0.0
      %2955 = vmatpush1.xpose.msra.mxu0 0.0
      %2956 = vmatprep.subr.mxu0 0.0
      %2957 = vmatpush1.xpose.msra.mxu0 0.0
      %2958 = vmatprep.subr.mxu0 0.0
      %2959 = vmatpush1.xpose.msra.mxu0 0.0
      %2960 = vmatprep.subr.mxu0 0.0
      %2961 = vmatpush1.xpose.msra.mxu0 0.0
      %2962 = vmatprep.subr.mxu0 0.0
      %2963 = vmatpush1.xpose.msra.mxu0 0.0
      %2964 = vmatprep.subr.mxu0 0.0
      %2965 = vmatpush1.xpose.msra.mxu0 0.0
      %2966 = vmatprep.subr.mxu0 0.0
      %2967 = vmatpush1.xpose.msra.mxu0 0.0
      %2968 = vmatprep.subr.mxu0 0.0
      %2969 = vmatpush1.xpose.msra.mxu0 0.0
      %2970 = vmatprep.subr.mxu0 0.0
      %2971 = vmatpush1.xpose.msra.mxu0 0.0
      %2972 = vmatprep.subr.mxu0 0.0
      %2973 = vmatpush1.xpose.msra.mxu0 0.0
      %2974 = vmatprep.mubr.f32.mxu0 0.0
      %2975 = vmatmul.mubr.f32.gmra.mrb[0].mxu0 %v2878
      %v2976 = vpop.f32.mrb[0].mxu0
      %v2977 = vadd.f32 0.0, %v2976
      %v2978 = vpop.f32.mrb[0].mxu0
      %2979 = vmatprep.mubr.f32.mxu0 0.0
      %2980 = vmatmul.mubr.f32.gmra.mrb[0].mxu0 %v2880
      %v2981 = vpop.f32.mrb[0].mxu0
      %v2982 = vadd.f32 0.0, %v2981
      %v2983 = vpop.f32.mrb[0].mxu0
      %2984 = vmatprep.mubr.f32.mxu0 0.0
      %2985 = vmatmul.mubr.f32.gmra.mrb[0].mxu0 %v2882
      %v2986 = vpop.f32.mrb[0].mxu0
      %v2987 = vadd.f32 0.0, %v2986
      %v2988 = vpop.f32.mrb[0].mxu0
      %2989 = vmatprep.mubr.f32.mxu0 0.0
      %2990 = vmatmul.mubr.f32.gmra.mrb[0].mxu0 %v2884
      %v2991 = vpop.f32.mrb[0].mxu0
      %v2992 = vadd.f32 0.0, %v2991
      %v2993 = vpop.f32.mrb[0].mxu0
      %2994 = vmatprep.mubr.f32.mxu0 0.0
      %2995 = vmatmul.mubr.f32.gmra.mrb[0].mxu0 %v2886
      %v2996 = vpop.f32.mrb[0].mxu0
      %v2997 = vadd.f32 0.0, %v2996
      %v2998 = vpop.f32.mrb[0].mxu0
      %2999 = vmatprep.mubr.f32.mxu0 0.0
      %3000 = vmatmul.mubr.f32.gmra.mrb[0].mxu0 %v2888
      %v3001 = vpop.f32.mrb[0].mxu0
      %v3002 = vadd.f32 0.0, %v3001
      %v3003 = vpop.f32.mrb[0].mxu0
      %3004 = vmatprep.mubr.f32.mxu0 0.0
      %3005 = vmatmul.mubr.f32.gmra.mrb[0].mxu0 %v2890
      %v3006 = vpop.f32.mrb[0].mxu0
      %v3007 = vadd.f32 0.0, %v3006
      %v3008 = vpop.f32.mrb[0].mxu0
      %3009 = vmatprep.mubr.f32.mxu0 0.0
      %3010 = vmatmul.mubr.f32.gmra.mrb[0].mxu0 %v2892
      %v3011 = vpop.f32.mrb[0].mxu0
      %v3012 = vadd.f32 0.0, %v3011
      %v3013 = vpop.f32.mrb[0].mxu0
      %3014 = vdwg.mxu0
      %v3015 = vsel %vm754, %v2977, -10000.0
      %v3016 = vsel %vm755, %v2982, -10000.0
      %v3017 = vsel %vm756, %v2987, -10000.0
      %v3018 = vsel %vm757, %v2992, -10000.0
      %v3019 = vsel %vm758, %v2997, -10000.0
      %v3020 = vsel %vm759, %v3002, -10000.0
      %v3021 = vsel %vm760, %v3007, -10000.0
      %v3022 = vsel %vm761, %v3012, -10000.0
      %v3023 = vsel %vm948, %v3015, -inf
      %3024 = vmax.xlane.f32.xlu0 %v3023
      %v3025 = vpop.xlane.xlu0 %3024
      %v3026 = vsel %vm948, %v3016, -inf
      %3027 = vmax.xlane.f32.xlu0 %v3026
      %v3028 = vpop.xlane.xlu0 %3027
      %v3029 = vsel %vm948, %v3017, -inf
      %3030 = vmax.xlane.f32.xlu0 %v3029
      %v3031 = vpop.xlane.xlu0 %3030
      %v3032 = vsel %vm948, %v3018, -inf
      %3033 = vmax.xlane.f32.xlu0 %v3032
      %v3034 = vpop.xlane.xlu0 %3033
      %v3035 = vsel %vm948, %v3019, -inf
      %3036 = vmax.xlane.f32.xlu0 %v3035
      %v3037 = vpop.xlane.xlu0 %3036
      %v3038 = vsel %vm948, %v3020, -inf
      %3039 = vmax.xlane.f32.xlu0 %v3038
      %v3040 = vpop.xlane.xlu0 %3039
      %v3041 = vsel %vm948, %v3021, -inf
      %3042 = vmax.xlane.f32.xlu0 %v3041
      %v3043 = vpop.xlane.xlu0 %3042
      %v3044 = vsel %vm948, %v3022, -inf
      %3045 = vmax.xlane.f32.xlu0 %v3044
      %v3046 = vpop.xlane.xlu0 %3045
      %v3047 = vsub.f32 %v3015, %v3025
      %v3048 = vsub.f32 %v3016, %v3028
      %v3049 = vsub.f32 %v3017, %v3031
      %v3050 = vsub.f32 %v3018, %v3034
      %v3051 = vsub.f32 %v3019, %v3037
      %v3052 = vsub.f32 %v3020, %v3040
      %v3053 = vsub.f32 %v3021, %v3043
      %v3054 = vsub.f32 %v3022, %v3046
      %v3055 = vmul.f32 %v3047, 1.442695
      %v3056 = vpow.pop %v3055
      %v3057 = vmul.f32 %v3048, 1.442695
      %v3058 = vpow.pop %v3057
      %v3059 = vmul.f32 %v3049, 1.442695
      %v3060 = vpow.pop %v3059
      %v3061 = vmul.f32 %v3050, 1.442695
      %v3062 = vpow.pop %v3061
      %v3063 = vmul.f32 %v3051, 1.442695
      %v3064 = vpow.pop %v3063
      %v3065 = vmul.f32 %v3052, 1.442695
      %v3066 = vpow.pop %v3065
      %v3067 = vmul.f32 %v3053, 1.442695
      %v3068 = vpow.pop %v3067
      %v3069 = vmul.f32 %v3054, 1.442695
      %v3070 = vpow.pop %v3069
      %v3071 = vsel %vm948, %v3056, 0.0
      %3072 = vadd.xlane.f32.xlu0 %v3071
      %v3073 = vpop.xlane.xlu0 %3072
      %v3074 = vsel %vm948, %v3058, 0.0
      %3075 = vadd.xlane.f32.xlu0 %v3074
      %v3076 = vpop.xlane.xlu0 %3075
      %v3077 = vsel %vm948, %v3060, 0.0
      %3078 = vadd.xlane.f32.xlu0 %v3077
      %v3079 = vpop.xlane.xlu0 %3078
      %v3080 = vsel %vm948, %v3062, 0.0
      %3081 = vadd.xlane.f32.xlu0 %v3080
      %v3082 = vpop.xlane.xlu0 %3081
      %v3083 = vsel %vm948, %v3064, 0.0
      %3084 = vadd.xlane.f32.xlu0 %v3083
      %v3085 = vpop.xlane.xlu0 %3084
      %v3086 = vsel %vm948, %v3066, 0.0
      %3087 = vadd.xlane.f32.xlu0 %v3086
      %v3088 = vpop.xlane.xlu0 %3087
      %v3089 = vsel %vm948, %v3068, 0.0
      %3090 = vadd.xlane.f32.xlu0 %v3089
      %v3091 = vpop.xlane.xlu0 %3090
      %v3092 = vsel %vm948, %v3070, 0.0
      %3093 = vadd.xlane.f32.xlu0 %v3092
      %v3094 = vpop.xlane.xlu0 %3093
      %v3095 = vrcp.pop %v3073
      %v3096 = vrcp.pop %v3076
      %v3097 = vrcp.pop %v3079
      %v3098 = vrcp.pop %v3082
      %v3099 = vrcp.pop %v3085
      %v3100 = vrcp.pop %v3088
      %v3101 = vrcp.pop %v3091
      %v3102 = vrcp.pop %v3094
      %v3103 = vmul.f32 %v3056, %v3095
      %v3104 = vmul.f32 %v3058, %v3096
      %v3105 = vmul.f32 %v3060, %v3097
      %v3106 = vmul.f32 %v3062, %v3098
      %v3107 = vmul.f32 %v3064, %v3099
      %v3108 = vmul.f32 %v3066, %v3100
      %v3109 = vmul.f32 %v3068, %v3101
      %v3110 = vmul.f32 %v3070, %v3102
      %3111 = vrot.lane.b32.xlu0 %v705, 108
      %v3112 = vpop.permute.xlu0 %3111
      %3113 = vrot.lane.b32.xlu0 %v710, 108
      %v3114 = vpop.permute.xlu0 %3113
      %3115 = vrot.lane.b32.xlu0 %v715, 108
      %v3116 = vpop.permute.xlu0 %3115
      %3117 = vrot.lane.b32.xlu0 %v720, 108
      %v3118 = vpop.permute.xlu0 %3117
      %3119 = vrot.lane.b32.xlu0 %v725, 108
      %v3120 = vpop.permute.xlu0 %3119
      %3121 = vrot.lane.b32.xlu0 %v730, 108
      %v3122 = vpop.permute.xlu0 %3121
      %3123 = vrot.lane.b32.xlu0 %v735, 108
      %v3124 = vpop.permute.xlu0 %3123
      %3125 = vrot.lane.b32.xlu0 %v740, 108
      %v3126 = vpop.permute.xlu0 %3125
      %v3136 = vsel %vm948, %v3103, 0
      %v3139 = vsel %vm948, %v3104, 0
      %v3142 = vsel %vm948, %v3105, 0
      %v3145 = vsel %vm948, %v3106, 0
      %v3148 = vsel %vm948, %v3107, 0
      %v3151 = vsel %vm948, %v3108, 0
      %v3154 = vsel %vm948, %v3109, 0
      %v3157 = vsel %vm948, %v3110, 0
      %3159 = vmatprep.subr.mxu0 0.0
      %3160 = vmatpush1.msra.mxu0 %v3112
      %3161 = vmatprep.subr.mxu0 0.0
      %3162 = vmatpush1.msra.mxu0 %v3114
      %3163 = vmatprep.subr.mxu0 0.0
      %3164 = vmatpush1.msra.mxu0 %v3116
      %3165 = vmatprep.subr.mxu0 0.0
      %3166 = vmatpush1.msra.mxu0 %v3118
      %3167 = vmatprep.subr.mxu0 0.0
      %3168 = vmatpush1.msra.mxu0 %v3120
      %3169 = vmatprep.subr.mxu0 0.0
      %3170 = vmatpush1.msra.mxu0 %v3122
      %3171 = vmatprep.subr.mxu0 0.0
      %3172 = vmatpush1.msra.mxu0 %v3124
      %3173 = vmatprep.subr.mxu0 0.0
      %3174 = vmatpush1.msra.mxu0 %v3126
      %3175 = vmatprep.subr.mxu0 0.0
      %3176 = vmatpush1.msra.mxu0 0.0
      %3177 = vmatprep.subr.mxu0 0.0
      %3178 = vmatpush1.msra.mxu0 0.0
      %3179 = vmatprep.subr.mxu0 0.0
      %3180 = vmatpush1.msra.mxu0 0.0
      %3181 = vmatprep.subr.mxu0 0.0
      %3182 = vmatpush1.msra.mxu0 0.0
      %3183 = vmatprep.subr.mxu0 0.0
      %3184 = vmatpush1.msra.mxu0 0.0
      %3185 = vmatprep.subr.mxu0 0.0
      %3186 = vmatpush1.msra.mxu0 0.0
      %3187 = vmatprep.subr.mxu0 0.0
      %3188 = vmatpush1.msra.mxu0 0.0
      %3189 = vmatprep.subr.mxu0 0.0
      %3190 = vmatpush1.msra.mxu0 0.0
      %3191 = vmatprep.subr.mxu0 0.0
      %3192 = vmatpush1.msra.mxu0 0.0
      %3193 = vmatprep.subr.mxu0 0.0
      %3194 = vmatpush1.msra.mxu0 0.0
      %3195 = vmatprep.subr.mxu0 0.0
      %3196 = vmatpush1.msra.mxu0 0.0
      %3197 = vmatprep.subr.mxu0 0.0
      %3198 = vmatpush1.msra.mxu0 0.0
      %3199 = vmatprep.subr.mxu0 0.0
      %3200 = vmatpush1.msra.mxu0 0.0
      %3201 = vmatprep.subr.mxu0 0.0
      %3202 = vmatpush1.msra.mxu0 0.0
      %3203 = vmatprep.subr.mxu0 0.0
      %3204 = vmatpush1.msra.mxu0 0.0
      %3205 = vmatprep.subr.mxu0 0.0
      %3206 = vmatpush1.msra.mxu0 0.0
      %3207 = vmatprep.subr.mxu0 0.0
      %3208 = vmatpush1.msra.mxu0 0.0
      %3209 = vmatprep.subr.mxu0 0.0
      %3210 = vmatpush1.msra.mxu0 0.0
      %3211 = vmatprep.subr.mxu0 0.0
      %3212 = vmatpush1.msra.mxu0 0.0
      %3213 = vmatprep.subr.mxu0 0.0
      %3214 = vmatpush1.msra.mxu0 0.0
      %3215 = vmatprep.subr.mxu0 0.0
      %3216 = vmatpush1.msra.mxu0 0.0
      %3217 = vmatprep.subr.mxu0 0.0
      %3218 = vmatpush1.msra.mxu0 0.0
      %3219 = vmatprep.subr.mxu0 0.0
      %3220 = vmatpush1.msra.mxu0 0.0
      %3221 = vmatprep.subr.mxu0 0.0
      %3222 = vmatpush1.msra.mxu0 0.0
      %3223 = vmatprep.mubr.f32.mxu0 0.0
      %3224 = vmatmul.mubr.f32.gmra.mrb[0].mxu0 %v3136
      %v3225 = vpop.f32.mrb[0].mxu0
      %v3226 = vadd.f32 0.0, %v3225
      %v3227 = vpop.f32.mrb[0].mxu0
      %3228 = vmatprep.mubr.f32.mxu0 0.0
      %3229 = vmatmul.mubr.f32.gmra.mrb[0].mxu0 %v3139
      %v3230 = vpop.f32.mrb[0].mxu0
      %v3231 = vadd.f32 0.0, %v3230
      %v3232 = vpop.f32.mrb[0].mxu0
      %3233 = vmatprep.mubr.f32.mxu0 0.0
      %3234 = vmatmul.mubr.f32.gmra.mrb[0].mxu0 %v3142
      %v3235 = vpop.f32.mrb[0].mxu0
      %v3236 = vadd.f32 0.0, %v3235
      %v3237 = vpop.f32.mrb[0].mxu0
      %3238 = vmatprep.mubr.f32.mxu0 0.0
      %3239 = vmatmul.mubr.f32.gmra.mrb[0].mxu0 %v3145
      %v3240 = vpop.f32.mrb[0].mxu0
      %v3241 = vadd.f32 0.0, %v3240
      %v3242 = vpop.f32.mrb[0].mxu0
      %3243 = vmatprep.mubr.f32.mxu0 0.0
      %3244 = vmatmul.mubr.f32.gmra.mrb[0].mxu0 %v3148
      %v3245 = vpop.f32.mrb[0].mxu0
      %v3246 = vadd.f32 0.0, %v3245
      %v3247 = vpop.f32.mrb[0].mxu0
      %3248 = vmatprep.mubr.f32.mxu0 0.0
      %3249 = vmatmul.mubr.f32.gmra.mrb[0].mxu0 %v3151
      %v3250 = vpop.f32.mrb[0].mxu0
      %v3251 = vadd.f32 0.0, %v3250
      %v3252 = vpop.f32.mrb[0].mxu0
      %3253 = vmatprep.mubr.f32.mxu0 0.0
      %3254 = vmatmul.mubr.f32.gmra.mrb[0].mxu0 %v3154
      %v3255 = vpop.f32.mrb[0].mxu0
      %v3256 = vadd.f32 0.0, %v3255
      %v3257 = vpop.f32.mrb[0].mxu0
      %3258 = vmatprep.mubr.f32.mxu0 0.0
      %3259 = vmatmul.mubr.f32.gmra.mrb[0].mxu0 %v3157
      %v3260 = vpop.f32.mrb[0].mxu0
      %v3261 = vadd.f32 0.0, %v3260
      %v3262 = vpop.f32.mrb[0].mxu0
      %3263 = vdwg.mxu0
      %3264 = vrot.lane.b32.xlu0 %v443, 104
      %v3265 = vpop.permute.xlu0 %3264
      %3266 = vrot.lane.b32.xlu0 %v448, 104
      %v3267 = vpop.permute.xlu0 %3266
      %3268 = vrot.lane.b32.xlu0 %v453, 104
      %v3269 = vpop.permute.xlu0 %3268
      %3270 = vrot.lane.b32.xlu0 %v458, 104
      %v3271 = vpop.permute.xlu0 %3270
      %3272 = vrot.lane.b32.xlu0 %v463, 104
      %v3273 = vpop.permute.xlu0 %3272
      %3274 = vrot.lane.b32.xlu0 %v468, 104
      %v3275 = vpop.permute.xlu0 %3274
      %3276 = vrot.lane.b32.xlu0 %v473, 104
      %v3277 = vpop.permute.xlu0 %3276
      %3278 = vrot.lane.b32.xlu0 %v478, 104
      %v3279 = vpop.permute.xlu0 %3278
      %3280 = vrot.lane.b32.xlu0 %v587, 104
      %v3281 = vpop.permute.xlu0 %3280
      %3282 = vrot.lane.b32.xlu0 %v592, 104
      %v3283 = vpop.permute.xlu0 %3282
      %3284 = vrot.lane.b32.xlu0 %v597, 104
      %v3285 = vpop.permute.xlu0 %3284
      %3286 = vrot.lane.b32.xlu0 %v602, 104
      %v3287 = vpop.permute.xlu0 %3286
      %3288 = vrot.lane.b32.xlu0 %v607, 104
      %v3289 = vpop.permute.xlu0 %3288
      %3290 = vrot.lane.b32.xlu0 %v612, 104
      %v3291 = vpop.permute.xlu0 %3290
      %3292 = vrot.lane.b32.xlu0 %v617, 104
      %v3293 = vpop.permute.xlu0 %3292
      %3294 = vrot.lane.b32.xlu0 %v622, 104
      %v3295 = vpop.permute.xlu0 %3294
      %v3296 = vsel %vm786, %v3265, 0
      %v3298 = vsel %vm786, %v3267, 0
      %v3300 = vsel %vm786, %v3269, 0
      %v3302 = vsel %vm786, %v3271, 0
      %v3304 = vsel %vm786, %v3273, 0
      %v3306 = vsel %vm786, %v3275, 0
      %v3308 = vsel %vm786, %v3277, 0
      %v3310 = vsel %vm786, %v3279, 0
      %v3312 = vsel %vm786, %v3281, 0
      %v3314 = vsel %vm786, %v3283, 0
      %v3316 = vsel %vm786, %v3285, 0
      %v3318 = vsel %vm786, %v3287, 0
      %v3320 = vsel %vm786, %v3289, 0
      %v3322 = vsel %vm786, %v3291, 0
      %v3324 = vsel %vm786, %v3293, 0
      %v3326 = vsel %vm786, %v3295, 0
      %3328 = vmatprep.subr.mxu0 0.0
      %3329 = vmatpush1.xpose.msra.mxu0 %v3312
      %3330 = vmatprep.subr.mxu0 0.0
      %3331 = vmatpush1.xpose.msra.mxu0 %v3314
      %3332 = vmatprep.subr.mxu0 0.0
      %3333 = vmatpush1.xpose.msra.mxu0 %v3316
      %3334 = vmatprep.subr.mxu0 0.0
      %3335 = vmatpush1.xpose.msra.mxu0 %v3318
      %3336 = vmatprep.subr.mxu0 0.0
      %3337 = vmatpush1.xpose.msra.mxu0 %v3320
      %3338 = vmatprep.subr.mxu0 0.0
      %3339 = vmatpush1.xpose.msra.mxu0 %v3322
      %3340 = vmatprep.subr.mxu0 0.0
      %3341 = vmatpush1.xpose.msra.mxu0 %v3324
      %3342 = vmatprep.subr.mxu0 0.0
      %3343 = vmatpush1.xpose.msra.mxu0 %v3326
      %3344 = vmatprep.subr.mxu0 0.0
      %3345 = vmatpush1.xpose.msra.mxu0 0.0
      %3346 = vmatprep.subr.mxu0 0.0
      %3347 = vmatpush1.xpose.msra.mxu0 0.0
      %3348 = vmatprep.subr.mxu0 0.0
      %3349 = vmatpush1.xpose.msra.mxu0 0.0
      %3350 = vmatprep.subr.mxu0 0.0
      %3351 = vmatpush1.xpose.msra.mxu0 0.0
      %3352 = vmatprep.subr.mxu0 0.0
      %3353 = vmatpush1.xpose.msra.mxu0 0.0
      %3354 = vmatprep.subr.mxu0 0.0
      %3355 = vmatpush1.xpose.msra.mxu0 0.0
      %3356 = vmatprep.subr.mxu0 0.0
      %3357 = vmatpush1.xpose.msra.mxu0 0.0
      %3358 = vmatprep.subr.mxu0 0.0
      %3359 = vmatpush1.xpose.msra.mxu0 0.0
      %3360 = vmatprep.subr.mxu0 0.0
      %3361 = vmatpush1.xpose.msra.mxu0 0.0
      %3362 = vmatprep.subr.mxu0 0.0
      %3363 = vmatpush1.xpose.msra.mxu0 0.0
      %3364 = vmatprep.subr.mxu0 0.0
      %3365 = vmatpush1.xpose.msra.mxu0 0.0
      %3366 = vmatprep.subr.mxu0 0.0
      %3367 = vmatpush1.xpose.msra.mxu0 0.0
      %3368 = vmatprep.subr.mxu0 0.0
      %3369 = vmatpush1.xpose.msra.mxu0 0.0
      %3370 = vmatprep.subr.mxu0 0.0
      %3371 = vmatpush1.xpose.msra.mxu0 0.0
      %3372 = vmatprep.subr.mxu0 0.0
      %3373 = vmatpush1.xpose.msra.mxu0 0.0
      %3374 = vmatprep.subr.mxu0 0.0
      %3375 = vmatpush1.xpose.msra.mxu0 0.0
      %3376 = vmatprep.subr.mxu0 0.0
      %3377 = vmatpush1.xpose.msra.mxu0 0.0
      %3378 = vmatprep.subr.mxu0 0.0
      %3379 = vmatpush1.xpose.msra.mxu0 0.0
      %3380 = vmatprep.subr.mxu0 0.0
      %3381 = vmatpush1.xpose.msra.mxu0 0.0
      %3382 = vmatprep.subr.mxu0 0.0
      %3383 = vmatpush1.xpose.msra.mxu0 0.0
      %3384 = vmatprep.subr.mxu0 0.0
      %3385 = vmatpush1.xpose.msra.mxu0 0.0
      %3386 = vmatprep.subr.mxu0 0.0
      %3387 = vmatpush1.xpose.msra.mxu0 0.0
      %3388 = vmatprep.subr.mxu0 0.0
      %3389 = vmatpush1.xpose.msra.mxu0 0.0
      %3390 = vmatprep.subr.mxu0 0.0
      %3391 = vmatpush1.xpose.msra.mxu0 0.0
      %3392 = vmatprep.mubr.f32.mxu0 0.0
      %3393 = vmatmul.mubr.f32.gmra.mrb[0].mxu0 %v3296
      %v3394 = vpop.f32.mrb[0].mxu0
      %v3395 = vadd.f32 0.0, %v3394
      %v3396 = vpop.f32.mrb[0].mxu0
      %3397 = vmatprep.mubr.f32.mxu0 0.0
      %3398 = vmatmul.mubr.f32.gmra.mrb[0].mxu0 %v3298
      %v3399 = vpop.f32.mrb[0].mxu0
      %v3400 = vadd.f32 0.0, %v3399
      %v3401 = vpop.f32.mrb[0].mxu0
      %3402 = vmatprep.mubr.f32.mxu0 0.0
      %3403 = vmatmul.mubr.f32.gmra.mrb[0].mxu0 %v3300
      %v3404 = vpop.f32.mrb[0].mxu0
      %v3405 = vadd.f32 0.0, %v3404
      %v3406 = vpop.f32.mrb[0].mxu0
      %3407 = vmatprep.mubr.f32.mxu0 0.0
      %3408 = vmatmul.mubr.f32.gmra.mrb[0].mxu0 %v3302
      %v3409 = vpop.f32.mrb[0].mxu0
      %v3410 = vadd.f32 0.0, %v3409
      %v3411 = vpop.f32.mrb[0].mxu0
      %3412 = vmatprep.mubr.f32.mxu0 0.0
      %3413 = vmatmul.mubr.f32.gmra.mrb[0].mxu0 %v3304
      %v3414 = vpop.f32.mrb[0].mxu0
      %v3415 = vadd.f32 0.0, %v3414
      %v3416 = vpop.f32.mrb[0].mxu0
      %3417 = vmatprep.mubr.f32.mxu0 0.0
      %3418 = vmatmul.mubr.f32.gmra.mrb[0].mxu0 %v3306
      %v3419 = vpop.f32.mrb[0].mxu0
      %v3420 = vadd.f32 0.0, %v3419
      %v3421 = vpop.f32.mrb[0].mxu0
      %3422 = vmatprep.mubr.f32.mxu0 0.0
      %3423 = vmatmul.mubr.f32.gmra.mrb[0].mxu0 %v3308
      %v3424 = vpop.f32.mrb[0].mxu0
      %v3425 = vadd.f32 0.0, %v3424
      %v3426 = vpop.f32.mrb[0].mxu0
      %3427 = vmatprep.mubr.f32.mxu0 0.0
      %3428 = vmatmul.mubr.f32.gmra.mrb[0].mxu0 %v3310
      %v3429 = vpop.f32.mrb[0].mxu0
      %v3430 = vadd.f32 0.0, %v3429
      %v3431 = vpop.f32.mrb[0].mxu0
      %3432 = vdwg.mxu0
      %v3433 = vsel %vm754, %v3395, -10000.0
      %v3434 = vsel %vm755, %v3400, -10000.0
      %v3435 = vsel %vm756, %v3405, -10000.0
      %v3436 = vsel %vm757, %v3410, -10000.0
      %v3437 = vsel %vm758, %v3415, -10000.0
      %v3438 = vsel %vm759, %v3420, -10000.0
      %v3439 = vsel %vm760, %v3425, -10000.0
      %v3440 = vsel %vm761, %v3430, -10000.0
      %v3441 = vsel %vm948, %v3433, -inf
      %3442 = vmax.xlane.f32.xlu0 %v3441
      %v3443 = vpop.xlane.xlu0 %3442
      %v3444 = vsel %vm948, %v3434, -inf
      %3445 = vmax.xlane.f32.xlu0 %v3444
      %v3446 = vpop.xlane.xlu0 %3445
      %v3447 = vsel %vm948, %v3435, -inf
      %3448 = vmax.xlane.f32.xlu0 %v3447
      %v3449 = vpop.xlane.xlu0 %3448
      %v3450 = vsel %vm948, %v3436, -inf
      %3451 = vmax.xlane.f32.xlu0 %v3450
      %v3452 = vpop.xlane.xlu0 %3451
      %v3453 = vsel %vm948, %v3437, -inf
      %3454 = vmax.xlane.f32.xlu0 %v3453
      %v3455 = vpop.xlane.xlu0 %3454
      %v3456 = vsel %vm948, %v3438, -inf
      %3457 = vmax.xlane.f32.xlu0 %v3456
      %v3458 = vpop.xlane.xlu0 %3457
      %v3459 = vsel %vm948, %v3439, -inf
      %3460 = vmax.xlane.f32.xlu0 %v3459
      %v3461 = vpop.xlane.xlu0 %3460
      %v3462 = vsel %vm948, %v3440, -inf
      %3463 = vmax.xlane.f32.xlu0 %v3462
      %v3464 = vpop.xlane.xlu0 %3463
      %v3465 = vsub.f32 %v3433, %v3443
      %v3466 = vsub.f32 %v3434, %v3446
      %v3467 = vsub.f32 %v3435, %v3449
      %v3468 = vsub.f32 %v3436, %v3452
      %v3469 = vsub.f32 %v3437, %v3455
      %v3470 = vsub.f32 %v3438, %v3458
      %v3471 = vsub.f32 %v3439, %v3461
      %v3472 = vsub.f32 %v3440, %v3464
      %v3473 = vmul.f32 %v3465, 1.442695
      %v3474 = vpow.pop %v3473
      %v3475 = vmul.f32 %v3466, 1.442695
      %v3476 = vpow.pop %v3475
      %v3477 = vmul.f32 %v3467, 1.442695
      %v3478 = vpow.pop %v3477
      %v3479 = vmul.f32 %v3468, 1.442695
      %v3480 = vpow.pop %v3479
      %v3481 = vmul.f32 %v3469, 1.442695
      %v3482 = vpow.pop %v3481
      %v3483 = vmul.f32 %v3470, 1.442695
      %v3484 = vpow.pop %v3483
      %v3485 = vmul.f32 %v3471, 1.442695
      %v3486 = vpow.pop %v3485
      %v3487 = vmul.f32 %v3472, 1.442695
      %v3488 = vpow.pop %v3487
      %v3489 = vsel %vm948, %v3474, 0.0
      %3490 = vadd.xlane.f32.xlu0 %v3489
      %v3491 = vpop.xlane.xlu0 %3490
      %v3492 = vsel %vm948, %v3476, 0.0
      %3493 = vadd.xlane.f32.xlu0 %v3492
      %v3494 = vpop.xlane.xlu0 %3493
      %v3495 = vsel %vm948, %v3478, 0.0
      %3496 = vadd.xlane.f32.xlu0 %v3495
      %v3497 = vpop.xlane.xlu0 %3496
      %v3498 = vsel %vm948, %v3480, 0.0
      %3499 = vadd.xlane.f32.xlu0 %v3498
      %v3500 = vpop.xlane.xlu0 %3499
      %v3501 = vsel %vm948, %v3482, 0.0
      %3502 = vadd.xlane.f32.xlu0 %v3501
      %v3503 = vpop.xlane.xlu0 %3502
      %v3504 = vsel %vm948, %v3484, 0.0
      %3505 = vadd.xlane.f32.xlu0 %v3504
      %v3506 = vpop.xlane.xlu0 %3505
      %v3507 = vsel %vm948, %v3486, 0.0
      %3508 = vadd.xlane.f32.xlu0 %v3507
      %v3509 = vpop.xlane.xlu0 %3508
      %v3510 = vsel %vm948, %v3488, 0.0
      %3511 = vadd.xlane.f32.xlu0 %v3510
      %v3512 = vpop.xlane.xlu0 %3511
      %v3513 = vrcp.pop %v3491
      %v3514 = vrcp.pop %v3494
      %v3515 = vrcp.pop %v3497
      %v3516 = vrcp.pop %v3500
      %v3517 = vrcp.pop %v3503
      %v3518 = vrcp.pop %v3506
      %v3519 = vrcp.pop %v3509
      %v3520 = vrcp.pop %v3512
      %v3521 = vmul.f32 %v3474, %v3513
      %v3522 = vmul.f32 %v3476, %v3514
      %v3523 = vmul.f32 %v3478, %v3515
      %v3524 = vmul.f32 %v3480, %v3516
      %v3525 = vmul.f32 %v3482, %v3517
      %v3526 = vmul.f32 %v3484, %v3518
      %v3527 = vmul.f32 %v3486, %v3519
      %v3528 = vmul.f32 %v3488, %v3520
      %3529 = vrot.lane.b32.xlu0 %v705, 104
      %v3530 = vpop.permute.xlu0 %3529
      %3531 = vrot.lane.b32.xlu0 %v710, 104
      %v3532 = vpop.permute.xlu0 %3531
      %3533 = vrot.lane.b32.xlu0 %v715, 104
      %v3534 = vpop.permute.xlu0 %3533
      %3535 = vrot.lane.b32.xlu0 %v720, 104
      %v3536 = vpop.permute.xlu0 %3535
      %3537 = vrot.lane.b32.xlu0 %v725, 104
      %v3538 = vpop.permute.xlu0 %3537
      %3539 = vrot.lane.b32.xlu0 %v730, 104
      %v3540 = vpop.permute.xlu0 %3539
      %3541 = vrot.lane.b32.xlu0 %v735, 104
      %v3542 = vpop.permute.xlu0 %3541
      %3543 = vrot.lane.b32.xlu0 %v740, 104
      %v3544 = vpop.permute.xlu0 %3543
      %v3554 = vsel %vm948, %v3521, 0
      %v3557 = vsel %vm948, %v3522, 0
      %v3560 = vsel %vm948, %v3523, 0
      %v3563 = vsel %vm948, %v3524, 0
      %v3566 = vsel %vm948, %v3525, 0
      %v3569 = vsel %vm948, %v3526, 0
      %v3572 = vsel %vm948, %v3527, 0
      %v3575 = vsel %vm948, %v3528, 0
      %3577 = vmatprep.subr.mxu0 0.0
      %3578 = vmatpush1.msra.mxu0 %v3530
      %3579 = vmatprep.subr.mxu0 0.0
      %3580 = vmatpush1.msra.mxu0 %v3532
      %3581 = vmatprep.subr.mxu0 0.0
      %3582 = vmatpush1.msra.mxu0 %v3534
      %3583 = vmatprep.subr.mxu0 0.0
      %3584 = vmatpush1.msra.mxu0 %v3536
      %3585 = vmatprep.subr.mxu0 0.0
      %3586 = vmatpush1.msra.mxu0 %v3538
      %3587 = vmatprep.subr.mxu0 0.0
      %3588 = vmatpush1.msra.mxu0 %v3540
      %3589 = vmatprep.subr.mxu0 0.0
      %3590 = vmatpush1.msra.mxu0 %v3542
      %3591 = vmatprep.subr.mxu0 0.0
      %3592 = vmatpush1.msra.mxu0 %v3544
      %3593 = vmatprep.subr.mxu0 0.0
      %3594 = vmatpush1.msra.mxu0 0.0
      %3595 = vmatprep.subr.mxu0 0.0
      %3596 = vmatpush1.msra.mxu0 0.0
      %3597 = vmatprep.subr.mxu0 0.0
      %3598 = vmatpush1.msra.mxu0 0.0
      %3599 = vmatprep.subr.mxu0 0.0
      %3600 = vmatpush1.msra.mxu0 0.0
      %3601 = vmatprep.subr.mxu0 0.0
      %3602 = vmatpush1.msra.mxu0 0.0
      %3603 = vmatprep.subr.mxu0 0.0
      %3604 = vmatpush1.msra.mxu0 0.0
      %3605 = vmatprep.subr.mxu0 0.0
      %3606 = vmatpush1.msra.mxu0 0.0
      %3607 = vmatprep.subr.mxu0 0.0
      %3608 = vmatpush1.msra.mxu0 0.0
      %3609 = vmatprep.subr.mxu0 0.0
      %3610 = vmatpush1.msra.mxu0 0.0
      %3611 = vmatprep.subr.mxu0 0.0
      %3612 = vmatpush1.msra.mxu0 0.0
      %3613 = vmatprep.subr.mxu0 0.0
      %3614 = vmatpush1.msra.mxu0 0.0
      %3615 = vmatprep.subr.mxu0 0.0
      %3616 = vmatpush1.msra.mxu0 0.0
      %3617 = vmatprep.subr.mxu0 0.0
      %3618 = vmatpush1.msra.mxu0 0.0
      %3619 = vmatprep.subr.mxu0 0.0
      %3620 = vmatpush1.msra.mxu0 0.0
      %3621 = vmatprep.subr.mxu0 0.0
      %3622 = vmatpush1.msra.mxu0 0.0
      %3623 = vmatprep.subr.mxu0 0.0
      %3624 = vmatpush1.msra.mxu0 0.0
      %3625 = vmatprep.subr.mxu0 0.0
      %3626 = vmatpush1.msra.mxu0 0.0
      %3627 = vmatprep.subr.mxu0 0.0
      %3628 = vmatpush1.msra.mxu0 0.0
      %3629 = vmatprep.subr.mxu0 0.0
      %3630 = vmatpush1.msra.mxu0 0.0
      %3631 = vmatprep.subr.mxu0 0.0
      %3632 = vmatpush1.msra.mxu0 0.0
      %3633 = vmatprep.subr.mxu0 0.0
      %3634 = vmatpush1.msra.mxu0 0.0
      %3635 = vmatprep.subr.mxu0 0.0
      %3636 = vmatpush1.msra.mxu0 0.0
      %3637 = vmatprep.subr.mxu0 0.0
      %3638 = vmatpush1.msra.mxu0 0.0
      %3639 = vmatprep.subr.mxu0 0.0
      %3640 = vmatpush1.msra.mxu0 0.0
      %3641 = vmatprep.mubr.f32.mxu0 0.0
      %3642 = vmatmul.mubr.f32.gmra.mrb[0].mxu0 %v3554
      %v3643 = vpop.f32.mrb[0].mxu0
      %v3644 = vadd.f32 0.0, %v3643
      %v3645 = vpop.f32.mrb[0].mxu0
      %3646 = vmatprep.mubr.f32.mxu0 0.0
      %3647 = vmatmul.mubr.f32.gmra.mrb[0].mxu0 %v3557
      %v3648 = vpop.f32.mrb[0].mxu0
      %v3649 = vadd.f32 0.0, %v3648
      %v3650 = vpop.f32.mrb[0].mxu0
      %3651 = vmatprep.mubr.f32.mxu0 0.0
      %3652 = vmatmul.mubr.f32.gmra.mrb[0].mxu0 %v3560
      %v3653 = vpop.f32.mrb[0].mxu0
      %v3654 = vadd.f32 0.0, %v3653
      %v3655 = vpop.f32.mrb[0].mxu0
      %3656 = vmatprep.mubr.f32.mxu0 0.0
      %3657 = vmatmul.mubr.f32.gmra.mrb[0].mxu0 %v3563
      %v3658 = vpop.f32.mrb[0].mxu0
      %v3659 = vadd.f32 0.0, %v3658
      %v3660 = vpop.f32.mrb[0].mxu0
      %3661 = vmatprep.mubr.f32.mxu0 0.0
      %3662 = vmatmul.mubr.f32.gmra.mrb[0].mxu0 %v3566
      %v3663 = vpop.f32.mrb[0].mxu0
      %v3664 = vadd.f32 0.0, %v3663
      %v3665 = vpop.f32.mrb[0].mxu0
      %3666 = vmatprep.mubr.f32.mxu0 0.0
      %3667 = vmatmul.mubr.f32.gmra.mrb[0].mxu0 %v3569
      %v3668 = vpop.f32.mrb[0].mxu0
      %v3669 = vadd.f32 0.0, %v3668
      %v3670 = vpop.f32.mrb[0].mxu0
      %3671 = vmatprep.mubr.f32.mxu0 0.0
      %3672 = vmatmul.mubr.f32.gmra.mrb[0].mxu0 %v3572
      %v3673 = vpop.f32.mrb[0].mxu0
      %v3674 = vadd.f32 0.0, %v3673
      %v3675 = vpop.f32.mrb[0].mxu0
      %3676 = vmatprep.mubr.f32.mxu0 0.0
      %3677 = vmatmul.mubr.f32.gmra.mrb[0].mxu0 %v3575
      %v3678 = vpop.f32.mrb[0].mxu0
      %v3679 = vadd.f32 0.0, %v3678
      %v3680 = vpop.f32.mrb[0].mxu0
      %3681 = vdwg.mxu0
      %3682 = vrot.lane.b32.xlu0 %v443, 100
      %v3683 = vpop.permute.xlu0 %3682
      %3684 = vrot.lane.b32.xlu0 %v448, 100
      %v3685 = vpop.permute.xlu0 %3684
      %3686 = vrot.lane.b32.xlu0 %v453, 100
      %v3687 = vpop.permute.xlu0 %3686
      %3688 = vrot.lane.b32.xlu0 %v458, 100
      %v3689 = vpop.permute.xlu0 %3688
      %3690 = vrot.lane.b32.xlu0 %v463, 100
      %v3691 = vpop.permute.xlu0 %3690
      %3692 = vrot.lane.b32.xlu0 %v468, 100
      %v3693 = vpop.permute.xlu0 %3692
      %3694 = vrot.lane.b32.xlu0 %v473, 100
      %v3695 = vpop.permute.xlu0 %3694
      %3696 = vrot.lane.b32.xlu0 %v478, 100
      %v3697 = vpop.permute.xlu0 %3696
      %3698 = vrot.lane.b32.xlu0 %v587, 100
      %v3699 = vpop.permute.xlu0 %3698
      %3700 = vrot.lane.b32.xlu0 %v592, 100
      %v3701 = vpop.permute.xlu0 %3700
      %3702 = vrot.lane.b32.xlu0 %v597, 100
      %v3703 = vpop.permute.xlu0 %3702
      %3704 = vrot.lane.b32.xlu0 %v602, 100
      %v3705 = vpop.permute.xlu0 %3704
      %3706 = vrot.lane.b32.xlu0 %v607, 100
      %v3707 = vpop.permute.xlu0 %3706
      %3708 = vrot.lane.b32.xlu0 %v612, 100
      %v3709 = vpop.permute.xlu0 %3708
      %3710 = vrot.lane.b32.xlu0 %v617, 100
      %v3711 = vpop.permute.xlu0 %3710
      %3712 = vrot.lane.b32.xlu0 %v622, 100
      %v3713 = vpop.permute.xlu0 %3712
      %v3714 = vsel %vm786, %v3683, 0
      %v3716 = vsel %vm786, %v3685, 0
      %v3718 = vsel %vm786, %v3687, 0
      %v3720 = vsel %vm786, %v3689, 0
      %v3722 = vsel %vm786, %v3691, 0
      %v3724 = vsel %vm786, %v3693, 0
      %v3726 = vsel %vm786, %v3695, 0
      %v3728 = vsel %vm786, %v3697, 0
      %v3730 = vsel %vm786, %v3699, 0
      %v3732 = vsel %vm786, %v3701, 0
      %v3734 = vsel %vm786, %v3703, 0
      %v3736 = vsel %vm786, %v3705, 0
      %v3738 = vsel %vm786, %v3707, 0
      %v3740 = vsel %vm786, %v3709, 0
      %v3742 = vsel %vm786, %v3711, 0
      %v3744 = vsel %vm786, %v3713, 0
      %3746 = vmatprep.subr.mxu0 0.0
      %3747 = vmatpush1.xpose.msra.mxu0 %v3730
      %3748 = vmatprep.subr.mxu0 0.0
      %3749 = vmatpush1.xpose.msra.mxu0 %v3732
      %3750 = vmatprep.subr.mxu0 0.0
      %3751 = vmatpush1.xpose.msra.mxu0 %v3734
      %3752 = vmatprep.subr.mxu0 0.0
      %3753 = vmatpush1.xpose.msra.mxu0 %v3736
      %3754 = vmatprep.subr.mxu0 0.0
      %3755 = vmatpush1.xpose.msra.mxu0 %v3738
      %3756 = vmatprep.subr.mxu0 0.0
      %3757 = vmatpush1.xpose.msra.mxu0 %v3740
      %3758 = vmatprep.subr.mxu0 0.0
      %3759 = vmatpush1.xpose.msra.mxu0 %v3742
      %3760 = vmatprep.subr.mxu0 0.0
      %3761 = vmatpush1.xpose.msra.mxu0 %v3744
      %3762 = vmatprep.subr.mxu0 0.0
      %3763 = vmatpush1.xpose.msra.mxu0 0.0
      %3764 = vmatprep.subr.mxu0 0.0
      %3765 = vmatpush1.xpose.msra.mxu0 0.0
      %3766 = vmatprep.subr.mxu0 0.0
      %3767 = vmatpush1.xpose.msra.mxu0 0.0
      %3768 = vmatprep.subr.mxu0 0.0
      %3769 = vmatpush1.xpose.msra.mxu0 0.0
      %3770 = vmatprep.subr.mxu0 0.0
      %3771 = vmatpush1.xpose.msra.mxu0 0.0
      %3772 = vmatprep.subr.mxu0 0.0
      %3773 = vmatpush1.xpose.msra.mxu0 0.0
      %3774 = vmatprep.subr.mxu0 0.0
      %3775 = vmatpush1.xpose.msra.mxu0 0.0
      %3776 = vmatprep.subr.mxu0 0.0
      %3777 = vmatpush1.xpose.msra.mxu0 0.0
      %3778 = vmatprep.subr.mxu0 0.0
      %3779 = vmatpush1.xpose.msra.mxu0 0.0
      %3780 = vmatprep.subr.mxu0 0.0
      %3781 = vmatpush1.xpose.msra.mxu0 0.0
      %3782 = vmatprep.subr.mxu0 0.0
      %3783 = vmatpush1.xpose.msra.mxu0 0.0
      %3784 = vmatprep.subr.mxu0 0.0
      %3785 = vmatpush1.xpose.msra.mxu0 0.0
      %3786 = vmatprep.subr.mxu0 0.0
      %3787 = vmatpush1.xpose.msra.mxu0 0.0
      %3788 = vmatprep.subr.mxu0 0.0
      %3789 = vmatpush1.xpose.msra.mxu0 0.0
      %3790 = vmatprep.subr.mxu0 0.0
      %3791 = vmatpush1.xpose.msra.mxu0 0.0
      %3792 = vmatprep.subr.mxu0 0.0
      %3793 = vmatpush1.xpose.msra.mxu0 0.0
      %3794 = vmatprep.subr.mxu0 0.0
      %3795 = vmatpush1.xpose.msra.mxu0 0.0
      %3796 = vmatprep.subr.mxu0 0.0
      %3797 = vmatpush1.xpose.msra.mxu0 0.0
      %3798 = vmatprep.subr.mxu0 0.0
      %3799 = vmatpush1.xpose.msra.mxu0 0.0
      %3800 = vmatprep.subr.mxu0 0.0
      %3801 = vmatpush1.xpose.msra.mxu0 0.0
      %3802 = vmatprep.subr.mxu0 0.0
      %3803 = vmatpush1.xpose.msra.mxu0 0.0
      %3804 = vmatprep.subr.mxu0 0.0
      %3805 = vmatpush1.xpose.msra.mxu0 0.0
      %3806 = vmatprep.subr.mxu0 0.0
      %3807 = vmatpush1.xpose.msra.mxu0 0.0
      %3808 = vmatprep.subr.mxu0 0.0
      %3809 = vmatpush1.xpose.msra.mxu0 0.0
      %3810 = vmatprep.mubr.f32.mxu0 0.0
      %3811 = vmatmul.mubr.f32.gmra.mrb[0].mxu0 %v3714
      %v3812 = vpop.f32.mrb[0].mxu0
      %v3813 = vadd.f32 0.0, %v3812
      %v3814 = vpop.f32.mrb[0].mxu0
      %3815 = vmatprep.mubr.f32.mxu0 0.0
      %3816 = vmatmul.mubr.f32.gmra.mrb[0].mxu0 %v3716
      %v3817 = vpop.f32.mrb[0].mxu0
      %v3818 = vadd.f32 0.0, %v3817
      %v3819 = vpop.f32.mrb[0].mxu0
      %3820 = vmatprep.mubr.f32.mxu0 0.0
      %3821 = vmatmul.mubr.f32.gmra.mrb[0].mxu0 %v3718
      %v3822 = vpop.f32.mrb[0].mxu0
      %v3823 = vadd.f32 0.0, %v3822
      %v3824 = vpop.f32.mrb[0].mxu0
      %3825 = vmatprep.mubr.f32.mxu0 0.0
      %3826 = vmatmul.mubr.f32.gmra.mrb[0].mxu0 %v3720
      %v3827 = vpop.f32.mrb[0].mxu0
      %v3828 = vadd.f32 0.0, %v3827
      %v3829 = vpop.f32.mrb[0].mxu0
      %3830 = vmatprep.mubr.f32.mxu0 0.0
      %3831 = vmatmul.mubr.f32.gmra.mrb[0].mxu0 %v3722
      %v3832 = vpop.f32.mrb[0].mxu0
      %v3833 = vadd.f32 0.0, %v3832
      %v3834 = vpop.f32.mrb[0].mxu0
      %3835 = vmatprep.mubr.f32.mxu0 0.0
      %3836 = vmatmul.mubr.f32.gmra.mrb[0].mxu0 %v3724
      %v3837 = vpop.f32.mrb[0].mxu0
      %v3838 = vadd.f32 0.0, %v3837
      %v3839 = vpop.f32.mrb[0].mxu0
      %3840 = vmatprep.mubr.f32.mxu0 0.0
      %3841 = vmatmul.mubr.f32.gmra.mrb[0].mxu0 %v3726
      %v3842 = vpop.f32.mrb[0].mxu0
      %v3843 = vadd.f32 0.0, %v3842
      %v3844 = vpop.f32.mrb[0].mxu0
      %3845 = vmatprep.mubr.f32.mxu0 0.0
      %3846 = vmatmul.mubr.f32.gmra.mrb[0].mxu0 %v3728
      %v3847 = vpop.f32.mrb[0].mxu0
      %v3848 = vadd.f32 0.0, %v3847
      %v3849 = vpop.f32.mrb[0].mxu0
      %3850 = vdwg.mxu0
      %v3851 = vsel %vm754, %v3813, -10000.0
      %v3852 = vsel %vm755, %v3818, -10000.0
      %v3853 = vsel %vm756, %v3823, -10000.0
      %v3854 = vsel %vm757, %v3828, -10000.0
      %v3855 = vsel %vm758, %v3833, -10000.0
      %v3856 = vsel %vm759, %v3838, -10000.0
      %v3857 = vsel %vm760, %v3843, -10000.0
      %v3858 = vsel %vm761, %v3848, -10000.0
      %v3859 = vsel %vm948, %v3851, -inf
      %3860 = vmax.xlane.f32.xlu0 %v3859
      %v3861 = vpop.xlane.xlu0 %3860
      %v3862 = vsel %vm948, %v3852, -inf
      %3863 = vmax.xlane.f32.xlu0 %v3862
      %v3864 = vpop.xlane.xlu0 %3863
      %v3865 = vsel %vm948, %v3853, -inf
      %3866 = vmax.xlane.f32.xlu0 %v3865
      %v3867 = vpop.xlane.xlu0 %3866
      %v3868 = vsel %vm948, %v3854, -inf
      %3869 = vmax.xlane.f32.xlu0 %v3868
      %v3870 = vpop.xlane.xlu0 %3869
      %v3871 = vsel %vm948, %v3855, -inf
      %3872 = vmax.xlane.f32.xlu0 %v3871
      %v3873 = vpop.xlane.xlu0 %3872
      %v3874 = vsel %vm948, %v3856, -inf
      %3875 = vmax.xlane.f32.xlu0 %v3874
      %v3876 = vpop.xlane.xlu0 %3875
      %v3877 = vsel %vm948, %v3857, -inf
      %3878 = vmax.xlane.f32.xlu0 %v3877
      %v3879 = vpop.xlane.xlu0 %3878
      %v3880 = vsel %vm948, %v3858, -inf
      %3881 = vmax.xlane.f32.xlu0 %v3880
      %v3882 = vpop.xlane.xlu0 %3881
      %v3883 = vsub.f32 %v3851, %v3861
      %v3884 = vsub.f32 %v3852, %v3864
      %v3885 = vsub.f32 %v3853, %v3867
      %v3886 = vsub.f32 %v3854, %v3870
      %v3887 = vsub.f32 %v3855, %v3873
      %v3888 = vsub.f32 %v3856, %v3876
      %v3889 = vsub.f32 %v3857, %v3879
      %v3890 = vsub.f32 %v3858, %v3882
      %v3891 = vmul.f32 %v3883, 1.442695
      %v3892 = vpow.pop %v3891
      %v3893 = vmul.f32 %v3884, 1.442695
      %v3894 = vpow.pop %v3893
      %v3895 = vmul.f32 %v3885, 1.442695
      %v3896 = vpow.pop %v3895
      %v3897 = vmul.f32 %v3886, 1.442695
      %v3898 = vpow.pop %v3897
      %v3899 = vmul.f32 %v3887, 1.442695
      %v3900 = vpow.pop %v3899
      %v3901 = vmul.f32 %v3888, 1.442695
      %v3902 = vpow.pop %v3901
      %v3903 = vmul.f32 %v3889, 1.442695
      %v3904 = vpow.pop %v3903
      %v3905 = vmul.f32 %v3890, 1.442695
      %v3906 = vpow.pop %v3905
      %v3907 = vsel %vm948, %v3892, 0.0
      %3908 = vadd.xlane.f32.xlu0 %v3907
      %v3909 = vpop.xlane.xlu0 %3908
      %v3910 = vsel %vm948, %v3894, 0.0
      %3911 = vadd.xlane.f32.xlu0 %v3910
      %v3912 = vpop.xlane.xlu0 %3911
      %v3913 = vsel %vm948, %v3896, 0.0
      %3914 = vadd.xlane.f32.xlu0 %v3913
      %v3915 = vpop.xlane.xlu0 %3914
      %v3916 = vsel %vm948, %v3898, 0.0
      %3917 = vadd.xlane.f32.xlu0 %v3916
      %v3918 = vpop.xlane.xlu0 %3917
      %v3919 = vsel %vm948, %v3900, 0.0
      %3920 = vadd.xlane.f32.xlu0 %v3919
      %v3921 = vpop.xlane.xlu0 %3920
      %v3922 = vsel %vm948, %v3902, 0.0
      %3923 = vadd.xlane.f32.xlu0 %v3922
      %v3924 = vpop.xlane.xlu0 %3923
      %v3925 = vsel %vm948, %v3904, 0.0
      %3926 = vadd.xlane.f32.xlu0 %v3925
      %v3927 = vpop.xlane.xlu0 %3926
      %v3928 = vsel %vm948, %v3906, 0.0
      %3929 = vadd.xlane.f32.xlu0 %v3928
      %v3930 = vpop.xlane.xlu0 %3929
      %v3931 = vrcp.pop %v3909
      %v3932 = vrcp.pop %v3912
      %v3933 = vrcp.pop %v3915
      %v3934 = vrcp.pop %v3918
      %v3935 = vrcp.pop %v3921
      %v3936 = vrcp.pop %v3924
      %v3937 = vrcp.pop %v3927
      %v3938 = vrcp.pop %v3930
      %v3939 = vmul.f32 %v3892, %v3931
      %v3940 = vmul.f32 %v3894, %v3932
      %v3941 = vmul.f32 %v3896, %v3933
      %v3942 = vmul.f32 %v3898, %v3934
      %v3943 = vmul.f32 %v3900, %v3935
      %v3944 = vmul.f32 %v3902, %v3936
      %v3945 = vmul.f32 %v3904, %v3937
      %v3946 = vmul.f32 %v3906, %v3938
      %3947 = vrot.lane.b32.xlu0 %v705, 100
      %v3948 = vpop.permute.xlu0 %3947
      %3949 = vrot.lane.b32.xlu0 %v710, 100
      %v3950 = vpop.permute.xlu0 %3949
      %3951 = vrot.lane.b32.xlu0 %v715, 100
      %v3952 = vpop.permute.xlu0 %3951
      %3953 = vrot.lane.b32.xlu0 %v720, 100
      %v3954 = vpop.permute.xlu0 %3953
      %3955 = vrot.lane.b32.xlu0 %v725, 100
      %v3956 = vpop.permute.xlu0 %3955
      %3957 = vrot.lane.b32.xlu0 %v730, 100
      %v3958 = vpop.permute.xlu0 %3957
      %3959 = vrot.lane.b32.xlu0 %v735, 100
      %v3960 = vpop.permute.xlu0 %3959
      %3961 = vrot.lane.b32.xlu0 %v740, 100
      %v3962 = vpop.permute.xlu0 %3961
      %v3972 = vsel %vm948, %v3939, 0
      %v3975 = vsel %vm948, %v3940, 0
      %v3978 = vsel %vm948, %v3941, 0
      %v3981 = vsel %vm948, %v3942, 0
      %v3984 = vsel %vm948, %v3943, 0
      %v3987 = vsel %vm948, %v3944, 0
      %v3990 = vsel %vm948, %v3945, 0
      %v3993 = vsel %vm948, %v3946, 0
      %3995 = vmatprep.subr.mxu0 0.0
      %3996 = vmatpush1.msra.mxu0 %v3948
      %3997 = vmatprep.subr.mxu0 0.0
      %3998 = vmatpush1.msra.mxu0 %v3950
      %3999 = vmatprep.subr.mxu0 0.0
      %4000 = vmatpush1.msra.mxu0 %v3952
      %4001 = vmatprep.subr.mxu0 0.0
      %4002 = vmatpush1.msra.mxu0 %v3954
      %4003 = vmatprep.subr.mxu0 0.0
      %4004 = vmatpush1.msra.mxu0 %v3956
      %4005 = vmatprep.subr.mxu0 0.0
      %4006 = vmatpush1.msra.mxu0 %v3958
      %4007 = vmatprep.subr.mxu0 0.0
      %4008 = vmatpush1.msra.mxu0 %v3960
      %4009 = vmatprep.subr.mxu0 0.0
      %4010 = vmatpush1.msra.mxu0 %v3962
      %4011 = vmatprep.subr.mxu0 0.0
      %4012 = vmatpush1.msra.mxu0 0.0
      %4013 = vmatprep.subr.mxu0 0.0
      %4014 = vmatpush1.msra.mxu0 0.0
      %4015 = vmatprep.subr.mxu0 0.0
      %4016 = vmatpush1.msra.mxu0 0.0
      %4017 = vmatprep.subr.mxu0 0.0
      %4018 = vmatpush1.msra.mxu0 0.0
      %4019 = vmatprep.subr.mxu0 0.0
      %4020 = vmatpush1.msra.mxu0 0.0
      %4021 = vmatprep.subr.mxu0 0.0
      %4022 = vmatpush1.msra.mxu0 0.0
      %4023 = vmatprep.subr.mxu0 0.0
      %4024 = vmatpush1.msra.mxu0 0.0
      %4025 = vmatprep.subr.mxu0 0.0
      %4026 = vmatpush1.msra.mxu0 0.0
      %4027 = vmatprep.subr.mxu0 0.0
      %4028 = vmatpush1.msra.mxu0 0.0
      %4029 = vmatprep.subr.mxu0 0.0
      %4030 = vmatpush1.msra.mxu0 0.0
      %4031 = vmatprep.subr.mxu0 0.0
      %4032 = vmatpush1.msra.mxu0 0.0
      %4033 = vmatprep.subr.mxu0 0.0
      %4034 = vmatpush1.msra.mxu0 0.0
      %4035 = vmatprep.subr.mxu0 0.0
      %4036 = vmatpush1.msra.mxu0 0.0
      %4037 = vmatprep.subr.mxu0 0.0
      %4038 = vmatpush1.msra.mxu0 0.0
      %4039 = vmatprep.subr.mxu0 0.0
      %4040 = vmatpush1.msra.mxu0 0.0
      %4041 = vmatprep.subr.mxu0 0.0
      %4042 = vmatpush1.msra.mxu0 0.0
      %4043 = vmatprep.subr.mxu0 0.0
      %4044 = vmatpush1.msra.mxu0 0.0
      %4045 = vmatprep.subr.mxu0 0.0
      %4046 = vmatpush1.msra.mxu0 0.0
      %4047 = vmatprep.subr.mxu0 0.0
      %4048 = vmatpush1.msra.mxu0 0.0
      %4049 = vmatprep.subr.mxu0 0.0
      %4050 = vmatpush1.msra.mxu0 0.0
      %4051 = vmatprep.subr.mxu0 0.0
      %4052 = vmatpush1.msra.mxu0 0.0
      %4053 = vmatprep.subr.mxu0 0.0
      %4054 = vmatpush1.msra.mxu0 0.0
      %4055 = vmatprep.subr.mxu0 0.0
      %4056 = vmatpush1.msra.mxu0 0.0
      %4057 = vmatprep.subr.mxu0 0.0
      %4058 = vmatpush1.msra.mxu0 0.0
      %4059 = vmatprep.mubr.f32.mxu0 0.0
      %4060 = vmatmul.mubr.f32.gmra.mrb[0].mxu0 %v3972
      %v4061 = vpop.f32.mrb[0].mxu0
      %v4062 = vadd.f32 0.0, %v4061
      %v4063 = vpop.f32.mrb[0].mxu0
      %4064 = vmatprep.mubr.f32.mxu0 0.0
      %4065 = vmatmul.mubr.f32.gmra.mrb[0].mxu0 %v3975
      %v4066 = vpop.f32.mrb[0].mxu0
      %v4067 = vadd.f32 0.0, %v4066
      %v4068 = vpop.f32.mrb[0].mxu0
      %4069 = vmatprep.mubr.f32.mxu0 0.0
      %4070 = vmatmul.mubr.f32.gmra.mrb[0].mxu0 %v3978
      %v4071 = vpop.f32.mrb[0].mxu0
      %v4072 = vadd.f32 0.0, %v4071
      %v4073 = vpop.f32.mrb[0].mxu0
      %4074 = vmatprep.mubr.f32.mxu0 0.0
      %4075 = vmatmul.mubr.f32.gmra.mrb[0].mxu0 %v3981
      %v4076 = vpop.f32.mrb[0].mxu0
      %v4077 = vadd.f32 0.0, %v4076
      %v4078 = vpop.f32.mrb[0].mxu0
      %4079 = vmatprep.mubr.f32.mxu0 0.0
      %4080 = vmatmul.mubr.f32.gmra.mrb[0].mxu0 %v3984
      %v4081 = vpop.f32.mrb[0].mxu0
      %v4082 = vadd.f32 0.0, %v4081
      %v4083 = vpop.f32.mrb[0].mxu0
      %4084 = vmatprep.mubr.f32.mxu0 0.0
      %4085 = vmatmul.mubr.f32.gmra.mrb[0].mxu0 %v3987
      %v4086 = vpop.f32.mrb[0].mxu0
      %v4087 = vadd.f32 0.0, %v4086
      %v4088 = vpop.f32.mrb[0].mxu0
      %4089 = vmatprep.mubr.f32.mxu0 0.0
      %4090 = vmatmul.mubr.f32.gmra.mrb[0].mxu0 %v3990
      %v4091 = vpop.f32.mrb[0].mxu0
      %v4092 = vadd.f32 0.0, %v4091
      %v4093 = vpop.f32.mrb[0].mxu0
      %4094 = vmatprep.mubr.f32.mxu0 0.0
      %4095 = vmatmul.mubr.f32.gmra.mrb[0].mxu0 %v3993
      %v4096 = vpop.f32.mrb[0].mxu0
      %v4097 = vadd.f32 0.0, %v4096
      %v4098 = vpop.f32.mrb[0].mxu0
      %4099 = vdwg.mxu0
      %4108 = vrot.lane.b32.xlu0 %v1554, 4
      %v4109 = vpop.permute.xlu0 %4108
      %4110 = vrot.lane.b32.xlu0 %v1559, 4
      %v4111 = vpop.permute.xlu0 %4110
      %4112 = vrot.lane.b32.xlu0 %v1564, 4
      %v4113 = vpop.permute.xlu0 %4112
      %4114 = vrot.lane.b32.xlu0 %v1569, 4
      %v4115 = vpop.permute.xlu0 %4114
      %4116 = vrot.lane.b32.xlu0 %v1574, 4
      %v4117 = vpop.permute.xlu0 %4116
      %4118 = vrot.lane.b32.xlu0 %v1579, 4
      %v4119 = vpop.permute.xlu0 %4118
      %4120 = vrot.lane.b32.xlu0 %v1584, 4
      %v4121 = vpop.permute.xlu0 %4120
      %4122 = vrot.lane.b32.xlu0 %v1589, 4
      %v4123 = vpop.permute.xlu0 %4122
      %4140 = vrot.lane.b32.xlu0 %v1972, 8
      %v4141 = vpop.permute.xlu0 %4140
      %4142 = vrot.lane.b32.xlu0 %v1977, 8
      %v4143 = vpop.permute.xlu0 %4142
      %4144 = vrot.lane.b32.xlu0 %v1982, 8
      %v4145 = vpop.permute.xlu0 %4144
      %4146 = vrot.lane.b32.xlu0 %v1987, 8
      %v4147 = vpop.permute.xlu0 %4146
      %4148 = vrot.lane.b32.xlu0 %v1992, 8
      %v4149 = vpop.permute.xlu0 %4148
      %4150 = vrot.lane.b32.xlu0 %v1997, 8
      %v4151 = vpop.permute.xlu0 %4150
      %4152 = vrot.lane.b32.xlu0 %v2002, 8
      %v4153 = vpop.permute.xlu0 %4152
      %4154 = vrot.lane.b32.xlu0 %v2007, 8
      %v4155 = vpop.permute.xlu0 %4154
      %4172 = vrot.lane.b32.xlu0 %v2390, 12
      %v4173 = vpop.permute.xlu0 %4172
      %4174 = vrot.lane.b32.xlu0 %v2395, 12
      %v4175 = vpop.permute.xlu0 %4174
      %4176 = vrot.lane.b32.xlu0 %v2400, 12
      %v4177 = vpop.permute.xlu0 %4176
      %4178 = vrot.lane.b32.xlu0 %v2405, 12
      %v4179 = vpop.permute.xlu0 %4178
      %4180 = vrot.lane.b32.xlu0 %v2410, 12
      %v4181 = vpop.permute.xlu0 %4180
      %4182 = vrot.lane.b32.xlu0 %v2415, 12
      %v4183 = vpop.permute.xlu0 %4182
      %4184 = vrot.lane.b32.xlu0 %v2420, 12
      %v4185 = vpop.permute.xlu0 %4184
      %4186 = vrot.lane.b32.xlu0 %v2425, 12
      %v4187 = vpop.permute.xlu0 %4186
      %4204 = vrot.lane.b32.xlu0 %v2808, 16
      %v4205 = vpop.permute.xlu0 %4204
      %4206 = vrot.lane.b32.xlu0 %v2813, 16
      %v4207 = vpop.permute.xlu0 %4206
      %4208 = vrot.lane.b32.xlu0 %v2818, 16
      %v4209 = vpop.permute.xlu0 %4208
      %4210 = vrot.lane.b32.xlu0 %v2823, 16
      %v4211 = vpop.permute.xlu0 %4210
      %4212 = vrot.lane.b32.xlu0 %v2828, 16
      %v4213 = vpop.permute.xlu0 %4212
      %4214 = vrot.lane.b32.xlu0 %v2833, 16
      %v4215 = vpop.permute.xlu0 %4214
      %4216 = vrot.lane.b32.xlu0 %v2838, 16
      %v4217 = vpop.permute.xlu0 %4216
      %4218 = vrot.lane.b32.xlu0 %v2843, 16
      %v4219 = vpop.permute.xlu0 %4218
      %4236 = vrot.lane.b32.xlu0 %v3226, 20
      %v4237 = vpop.permute.xlu0 %4236
      %4238 = vrot.lane.b32.xlu0 %v3231, 20
      %v4239 = vpop.permute.xlu0 %4238
      %4240 = vrot.lane.b32.xlu0 %v3236, 20
      %v4241 = vpop.permute.xlu0 %4240
      %4242 = vrot.lane.b32.xlu0 %v3241, 20
      %v4243 = vpop.permute.xlu0 %4242
      %4244 = vrot.lane.b32.xlu0 %v3246, 20
      %v4245 = vpop.permute.xlu0 %4244
      %4246 = vrot.lane.b32.xlu0 %v3251, 20
      %v4247 = vpop.permute.xlu0 %4246
      %4248 = vrot.lane.b32.xlu0 %v3256, 20
      %v4249 = vpop.permute.xlu0 %4248
      %4250 = vrot.lane.b32.xlu0 %v3261, 20
      %v4251 = vpop.permute.xlu0 %4250
      %4268 = vrot.lane.b32.xlu0 %v3644, 24
      %v4269 = vpop.permute.xlu0 %4268
      %4270 = vrot.lane.b32.xlu0 %v3649, 24
      %v4271 = vpop.permute.xlu0 %4270
      %4272 = vrot.lane.b32.xlu0 %v3654, 24
      %v4273 = vpop.permute.xlu0 %4272
      %4274 = vrot.lane.b32.xlu0 %v3659, 24
      %v4275 = vpop.permute.xlu0 %4274
      %4276 = vrot.lane.b32.xlu0 %v3664, 24
      %v4277 = vpop.permute.xlu0 %4276
      %4278 = vrot.lane.b32.xlu0 %v3669, 24
      %v4279 = vpop.permute.xlu0 %4278
      %4280 = vrot.lane.b32.xlu0 %v3674, 24
      %v4281 = vpop.permute.xlu0 %4280
      %4282 = vrot.lane.b32.xlu0 %v3679, 24
      %v4283 = vpop.permute.xlu0 %4282
      %4300 = vrot.lane.b32.xlu0 %v4062, 28
      %v4301 = vpop.permute.xlu0 %4300
      %4302 = vrot.lane.b32.xlu0 %v4067, 28
      %v4303 = vpop.permute.xlu0 %4302
      %4304 = vrot.lane.b32.xlu0 %v4072, 28
      %v4305 = vpop.permute.xlu0 %4304
      %4306 = vrot.lane.b32.xlu0 %v4077, 28
      %v4307 = vpop.permute.xlu0 %4306
      %4308 = vrot.lane.b32.xlu0 %v4082, 28
      %v4309 = vpop.permute.xlu0 %4308
      %4310 = vrot.lane.b32.xlu0 %v4087, 28
      %v4311 = vpop.permute.xlu0 %4310
      %4312 = vrot.lane.b32.xlu0 %v4092, 28
      %v4313 = vpop.permute.xlu0 %4312
      %4314 = vrot.lane.b32.xlu0 %v4097, 28
      %v4315 = vpop.permute.xlu0 %4314
      %v4324 = vsel %vm786, %v1128, %v4109
      %v4325 = vsel %vm786, %v1133, %v4111
      %v4326 = vsel %vm786, %v1138, %v4113
      %v4327 = vsel %vm786, %v1143, %v4115
      %v4328 = vsel %vm786, %v1148, %v4117
      %v4329 = vsel %vm786, %v1153, %v4119
      %v4330 = vsel %vm786, %v1158, %v4121
      %v4331 = vsel %vm786, %v1163, %v4123
      %vm4332 = vcmask 64512
      %v4333 = vsel %vm4332, %v4324, %v4141
      %v4334 = vsel %vm4332, %v4325, %v4143
      %v4335 = vsel %vm4332, %v4326, %v4145
      %v4336 = vsel %vm4332, %v4327, %v4147
      %v4337 = vsel %vm4332, %v4328, %v4149
      %v4338 = vsel %vm4332, %v4329, %v4151
      %v4339 = vsel %vm4332, %v4330, %v4153
      %v4340 = vsel %vm4332, %v4331, %v4155
      %vm4341 = vcmask 97280
      %v4342 = vsel %vm4341, %v4333, %v4173
      %v4343 = vsel %vm4341, %v4334, %v4175
      %v4344 = vsel %vm4341, %v4335, %v4177
      %v4345 = vsel %vm4341, %v4336, %v4179
      %v4346 = vsel %vm4341, %v4337, %v4181
      %v4347 = vsel %vm4341, %v4338, %v4183
      %v4348 = vsel %vm4341, %v4339, %v4185
      %v4349 = vsel %vm4341, %v4340, %v4187
      %v4350 = vsel %vm351, %v4342, %v4205
      %v4351 = vsel %vm351, %v4343, %v4207
      %v4352 = vsel %vm351, %v4344, %v4209
      %v4353 = vsel %vm351, %v4345, %v4211
      %v4354 = vsel %vm351, %v4346, %v4213
      %v4355 = vsel %vm351, %v4347, %v4215
      %v4356 = vsel %vm351, %v4348, %v4217
      %v4357 = vsel %vm351, %v4349, %v4219
      %v4358 = vsel %vm491, %v4350, %v4237
      %v4359 = vsel %vm491, %v4351, %v4239
      %v4360 = vsel %vm491, %v4352, %v4241
      %v4361 = vsel %vm491, %v4353, %v4243
      %v4362 = vsel %vm491, %v4354, %v4245
      %v4363 = vsel %vm491, %v4355, %v4247
      %v4364 = vsel %vm491, %v4356, %v4249
      %v4365 = vsel %vm491, %v4357, %v4251
      %vm4366 = vcmask 195584
      %v4367 = vsel %vm4366, %v4358, %v4269
      %v4368 = vsel %vm4366, %v4359, %v4271
      %v4369 = vsel %vm4366, %v4360, %v4273
      %v4370 = vsel %vm4366, %v4361, %v4275
      %v4371 = vsel %vm4366, %v4362, %v4277
      %v4372 = vsel %vm4366, %v4363, %v4279
      %v4373 = vsel %vm4366, %v4364, %v4281
      %v4374 = vsel %vm4366, %v4365, %v4283
      %vm4375 = vcmask 228352
      %v4376 = vsel %vm4375, %v4367, %v4301
      %v4377 = vsel %vm4375, %v4368, %v4303
      %v4378 = vsel %vm4375, %v4369, %v4305
      %v4379 = vsel %vm4375, %v4370, %v4307
      %v4380 = vsel %vm4375, %v4371, %v4309
      %v4381 = vsel %vm4375, %v4372, %v4311
      %v4382 = vsel %vm4375, %v4373, %v4313
      %v4383 = vsel %vm4375, %v4374, %v4315
      %v4384 = vmul.f32 %v4376, %v778
      %v4385 = vmul.f32 %v4377, %v779
      %v4386 = vmul.f32 %v4378, %v780
      %v4387 = vmul.f32 %v4379, %v781
      %v4388 = vmul.f32 %v4380, %v782
      %v4389 = vmul.f32 %v4381, %v783
      %v4390 = vmul.f32 %v4382, %v784
      %v4391 = vmul.f32 %v4383, %v785
      %vm4392 = vcmask 261120
      %4393 = vst.msk [vmem:[%s325] sm:$0xff] %vm4392, %v4384
      %4394 = vst.msk [vmem:[%s325 + $0x8] sm:$0xff] %vm4392, %v4385
      %4395 = vst.msk [vmem:[%s325 + $0x10] sm:$0xff] %vm4392, %v4386
      %4396 = vst.msk [vmem:[%s325 + $0x18] sm:$0xff] %vm4392, %v4387
      %4397 = vst.msk [vmem:[%s325 + $0x20] sm:$0xff] %vm4392, %v4388
      %4398 = vst.msk [vmem:[%s325 + $0x28] sm:$0xff] %vm4392, %v4389
      %4399 = vst.msk [vmem:[%s325 + $0x30] sm:$0xff] %vm4392, %v4390
      %4400 = vst.msk [vmem:[%s325 + $0x38] sm:$0xff] %vm4392, %v4391
      %p4401 = scmp.lt.s32.totalorder %s19, 1
      %s4402 = scalar_select %p4401, %s19, 1
      %s4403 = smul.addr %s4402, 8
      %s4404 = smul.addr %s4403, 8
      %s4405 = scalar_lea.vmem %s8, %s4404
      // Predicated region
      $region53: #{tpu_custom_call.1} parent=51 // pred_check
        %p4406 = pneg %p215
      $region54: #{tpu_custom_call.1} parent=51 // pred_check_branch
        %4408 = sbr.rel (%p4406) target = $region56
      $region55: #{tpu_custom_call.1} parent=51 // pred_region
        _
      $region56: #{tpu_custom_call.1} parent=51 // pred_fallthru
        _
    $region52: #{tpu_custom_call.1} parent=5 // pred_fallthru
      _
    %p4409 = scmp.le.s32.totalorder 2, %s14
    // Predicated region
    $region57: #{tpu_custom_call.1} parent=5 // pred_check
      %p4410 = pneg %p4409
    $region58: #{tpu_custom_call.1} parent=5 // pred_check_branch
      %4412 = sbr.rel (%p4410) target = $region60
    $region59: #{tpu_custom_call.1} parent=5 // pred_region
      %s4413 = ssub.s32 %s14, 2
      // Predicated region
      $region61: #{tpu_custom_call.1} parent=59 // pred_check
        %p4414 = pneg %p221
      $region62: #{tpu_custom_call.1} parent=59 // pred_check_branch
        %4416 = sbr.rel (%p4414) target = $region64
      $region63: #{tpu_custom_call.1} parent=59 // pred_region
        %p4417 = scmp.lt.s32.totalorder %s20, 1
        %s4418 = scalar_select %p4417, %s20, 1
        %s4419 = smul.addr %s4418, 8
        %s4420 = smul.addr %s4419, 8
        %s4421 = scalar_lea.vmem %s8, %s4420
      $region64: #{tpu_custom_call.1} parent=59 // pred_fallthru
        _
    $region60: #{tpu_custom_call.1} parent=5 // pred_fallthru
      _
  $region6: #{tpu_custom_call.1} parent=0 // loop_footer
    %s18 = sadd.s32 1, %s14
  $region7: #{tpu_custom_call.1} parent=0 // loop_footer_branch
    %13 = sbr.rel target = $region3
  $region8: #{tpu_custom_call.1} parent=0 // loop_exit
    _

</llo_original>
